<compile_context>
chip_gen: v5e
topology: v5e:2x2
jax: 0.10.0
libtpu: 0.0.40
codegen_flags: <defaults>
</compile_context>

<pallas_src>
import functools
import math

import jax
import jax.numpy as jnp
import numpy as np
from jax.experimental import pallas as pl
from jax.experimental.pallas import tpu as pltpu

NEG_INF = -1e20     # parlai neginf() for float32
LN_EPS = 1e-5

# Row order of the packed [N, D] bias / LayerNorm-parameter table.
_BIAS_D_ROWS = (
    'ci_br', 'ci_b2', 'ci_g', 'ci_beta',
    'sa_bq', 'sa_bk', 'sa_bv', 'sa_bo', 'sa_g', 'sa_beta',
    'ca_bq', 'ca_bk', 'ca_bv', 'ca_bo', 'ca_g', 'ca_beta',
    'ka_bq', 'ka_bk', 'ka_bv', 'ka_bo', 'ka_g', 'ka_beta',
    'oi_bc', 'oi_bk', 'oi_b2', 'oi_g', 'oi_beta',
)

# Order of the (pre-transposed, optionally bf16) weight-matrix operands.
_W_NAMES = (
    'ci_wr', 'ci_w1', 'ci_w2',
    'sa_wqkv', 'sa_wo',
    'ca_wq', 'ca_wkv', 'ca_wo',
    'ka_wq', 'ka_wkv', 'ka_wo',
    'oi_wc', 'oi_wk', 'oi_w1', 'oi_w2',
)


# ------------------------- in-kernel building blocks -------------------------

def _ln(x, g, b):
    """LayerNorm with PyTorch semantics (biased variance, eps=1e-5). f32 math."""
    mu = jnp.mean(x, axis=-1, keepdims=True)
    var = jnp.mean((x - mu) ** 2, axis=-1, keepdims=True)
    return (x - mu) * jax.lax.rsqrt(var + LN_EPS) * g + b


def _mha_core(q, k, v, bias, wo_ref, bo, n_heads, mxu_dtype):
    """Multi-head attention core on 2-D VMEM tiles.

    q: [T, D] f32 queries (already projected, bias added);
    k, v: [K, D] f32 keys/values (already projected, bias added);
    bias: f32 additive logits bias broadcastable to [T, K] (0 = attend, -1e20 = blocked);
    wo_ref: Ref [D, D] output projection ([in, out], stored in mxu_dtype);
    bo: [1, D] f32 output bias.
    """
    f32 = jnp.float32
    T, D = q.shape
    dph = D // n_heads
    inv_scale = 1.0 / math.sqrt(dph)

    qm = q.astype(mxu_dtype)
    km = k.astype(mxu_dtype)

    # Per-head logits, masked per [T, K] block (no [H*T, K] mask tensor), then
    # stacked along the sublane axis so the softmax max/exp/sum runs once.
    blocks = []
    for hh in range(n_heads):
        sl = slice(hh * dph, (hh + 1) * dph)
        lg = jax.lax.dot_general(qm[:, sl], km[:, sl], (((1,), (1,)), ((), ())),
                                 preferred_element_type=f32)
        blocks.append(lg * inv_scale + bias)
    logits = jnp.concatenate(blocks, axis=0)                        # [H*T, K]

    logits = logits - jnp.max(logits, axis=-1, keepdims=True)
    p = jnp.exp(logits)
    denom = jnp.sum(p, axis=-1, keepdims=True)
    inv = pl.reciprocal(denom, approx=True)     # EUP slot (otherwise idle)
    inv = inv * (2.0 - denom * inv)             # one Newton step -> ~f32 exact
    attn = (p * inv).astype(mxu_dtype)                               # [H*T, K]

    vm = v.astype(mxu_dtype)
    # Per-head contexts, lane-concatenated into a single [T, D] tile, then ONE
    # full-depth matmul against the output projection.
    ctx = jnp.concatenate(
        [jnp.dot(attn[hh * T:(hh + 1) * T, :], vm[:, hh * dph:(hh + 1) * dph],
                 preferred_element_type=f32) for hh in range(n_heads)],
        axis=1)                                                      # [T, D]
    return jnp.dot(ctx.astype(mxu_dtype), wo_ref[...],
                   preferred_element_type=f32) + bo


# ------------------------------ fused layer kernel ---------------------------

def _decoder_layer_kernel(
        x_ref, fus_ref, ctx_ref, cbias_ref, kno_ref, kbias_ref,
        bias_d_ref, bias_f_ref,
        ci_wr, ci_w1, ci_w2,
        sa_wqkv, sa_wo,
        ca_wq, ca_wkv, ca_wo,
        ka_wq, ka_wkv, ka_wo,
        oi_wc, oi_wk, oi_w1, oi_w2,
        o_ref, *, n_heads, mxu_dtype):
    """One batch element of the full TransIKGDecoderLayer forward pass."""
    f32 = jnp.float32

    def mm(a, w):
        # MXU matmul: operands in mxu_dtype (bf16 in production), f32 accumulate.
        return jnp.dot(a.astype(mxu_dtype), w, preferred_element_type=f32)

    def brow(name):
        i = _BIAS_D_ROWS.index(name)            # static python index
        return bias_d_ref[i:i + 1, :]           # [1, D] f32

    x = x_ref[0].astype(f32)                    # [T, D]
    fus = fus_ref[0].astype(f32)                # [1, D]  (fusion_out row)
    T, D = x.shape

    # --- correlation integration (ci_ffn) + residual + ci_norm ----------------
    # fusion branch of the r-gate is a [1,D]x[D,D] matmul broadcast over T.
    r = jax.nn.sigmoid(mm(x, ci_wr[:D, :]) + mm(fus, ci_wr[D:, :]) + brow('ci_br'))
    ry = r * fus                                                     # [T, D]
    h = jnp.maximum(mm(x, ci_w1[:D, :]) + mm(ry, ci_w1[D:, :])
                    + bias_f_ref[0:1, :], 0.0)
    ci = mm(h, ci_w2[...]) + brow('ci_b2')
    x = _ln(x + ci, brow('ci_g'), brow('ci_beta'))

    # --- causal self-attention + residual + self_norm -------------------------
    qkv = mm(x, sa_wqkv[...])                                        # [T, 3D]
    q = qkv[:, :D] + brow('sa_bq')
    k = qkv[:, D:2 * D] + brow('sa_bk')
    v = qkv[:, 2 * D:] + brow('sa_bv')
    row = jax.lax.broadcasted_iota(jnp.int32, (T, T), 0)
    col = jax.lax.broadcasted_iota(jnp.int32, (T, T), 1)
    causal_bias = jnp.where(col <= row, 0.0, NEG_INF).astype(f32)    # additive
    sa = _mha_core(q, k, v, causal_bias, sa_wo, brow('sa_bo'), n_heads, mxu_dtype)
    x = _ln(sa + x, brow('sa_g'), brow('sa_beta'))

    # --- encoder/decoder (context) attention + residual + context_norm --------
    ctx = ctx_ref[0].astype(f32)                                     # [S_C, D]
    q_c = mm(x, ca_wq[...]) + brow('ca_bq')
    kv_c = mm(ctx, ca_wkv[...])                                      # [S_C, 2D]
    a_c = _mha_core(q_c, kv_c[:, :D] + brow('ca_bk'), kv_c[:, D:] + brow('ca_bv'),
                    cbias_ref[0], ca_wo, brow('ca_bo'), n_heads, mxu_dtype)
    x_c = _ln(x + a_c, brow('ca_g'), brow('ca_beta'))

    # --- knowledge attention + residual + know_norm ----------------------------
    kno = kno_ref[0].astype(f32)                                     # [S_K, D]
    q_k = mm(x, ka_wq[...]) + brow('ka_bq')
    kv_k = mm(kno, ka_wkv[...])                                      # [S_K, 2D]
    a_k = _mha_core(q_k, kv_k[:, :D] + brow('ka_bk'), kv_k[:, D:] + brow('ka_bv'),
                    kbias_ref[0], ka_wo, brow('ka_bo'), n_heads, mxu_dtype)
    x_k = _ln(x + a_k, brow('ka_g'), brow('ka_beta'))

    # --- overall integration (oi_ffn) + residual + oi_norm --------------------
    c = jax.nn.sigmoid(mm(x, oi_wc[:D, :]) + mm(x_c, oi_wc[D:, :]) + brow('oi_bc'))
    g = jax.nn.sigmoid(mm(x, oi_wk[:D, :]) + mm(x_k, oi_wk[D:, :]) + brow('oi_bk'))
    h = jnp.maximum(mm(x, oi_w1[:D, :]) + mm(c * x_c, oi_w1[D:2 * D, :])
                    + mm(g * x_k, oi_w1[2 * D:, :]) + bias_f_ref[1:2, :], 0.0)
    oi = mm(h, oi_w2[...]) + brow('oi_b2')
    out = _ln(x + x_c + x_k + oi, brow('oi_g'), brow('oi_beta'))
    o_ref[0] = out.astype(o_ref.dtype)
    # TODO(synk): use_dialogue_position (dpf / bias_linear), dropout > 0 and
    # incremental-state decoding (new_incr_state output) are not implemented.


# ---------------------------- parameter packing -----------------------------

def pack_params(p, param_dtype=jnp.bfloat16):
    """One-time conversion of PyTorch-layout params ([out,in] weights, [out]
    biases) into kernel layout: [in,out] weight matrices cast to `param_dtype`
    (bf16 for production MXU use), fused QKV / KV projections, and all
    [D]-sized biases / LayerNorm params packed into a single f32 [N, D] table
    (plus a [2, F] table for the FFN hidden biases)."""
    f32 = jnp.float32

    def T(w):
        return jnp.asarray(w, f32).T.astype(param_dtype)

    ci, sa = p['ci_ffn'], p['self_attn']
    ca, ka, oi = p['context_attn'], p['know_attn'], p['oi_ffn']

    out = {}
    out['ci_wr'], out['ci_w1'], out['ci_w2'] = T(ci['wr']), T(ci['w1']), T(ci['w2'])
    out['sa_wqkv'] = jnp.concatenate([T(sa['wq']), T(sa['wk']), T(sa['wv'])], axis=1)
    out['sa_wo'] = T(sa['wo'])
    out['ca_wq'] = T(ca['wq'])
    out['ca_wkv'] = jnp.concatenate([T(ca['wk']), T(ca['wv'])], axis=1)
    out['ca_wo'] = T(ca['wo'])
    out['ka_wq'] = T(ka['wq'])
    out['ka_wkv'] = jnp.concatenate([T(ka['wk']), T(ka['wv'])], axis=1)
    out['ka_wo'] = T(ka['wo'])
    out['oi_wc'], out['oi_wk'] = T(oi['wc']), T(oi['wk'])
    out['oi_w1'], out['oi_w2'] = T(oi['w1']), T(oi['w2'])

    rows = {
        'ci_br': ci['br'], 'ci_b2': ci['b2'],
        'ci_g': p['ci_norm'][0], 'ci_beta': p['ci_norm'][1],
        'sa_bq': sa['bq'], 'sa_bk': sa['bk'], 'sa_bv': sa['bv'], 'sa_bo': sa['bo'],
        'sa_g': p['self_norm'][0], 'sa_beta': p['self_norm'][1],
        'ca_bq': ca['bq'], 'ca_bk': ca['bk'], 'ca_bv': ca['bv'], 'ca_bo': ca['bo'],
        'ca_g': p['context_norm'][0], 'ca_beta': p['context_norm'][1],
        'ka_bq': ka['bq'], 'ka_bk': ka['bk'], 'ka_bv': ka['bv'], 'ka_bo': ka['bo'],
        'ka_g': p['know_norm'][0], 'ka_beta': p['know_norm'][1],
        'oi_bc': oi['bc'], 'oi_bk': oi['bk'], 'oi_b2': oi['b2'],
        'oi_g': p['oi_norm'][0], 'oi_beta': p['oi_norm'][1],
    }
    out['bias_d'] = jnp.stack([jnp.asarray(rows[n], f32) for n in _BIAS_D_ROWS], axis=0)
    out['bias_f'] = jnp.stack([jnp.asarray(ci['b1'], f32),
                               jnp.asarray(oi['b1'], f32)], axis=0)
    return out


# --------------------------------- wrapper -----------------------------------

def _vmem_limit_bytes():
    """Explicit scoped-VMEM limit: ~75% of physical, capped at 100 MiB."""
    try:
        cap = pltpu.get_tpu_info().vmem_capacity_bytes
    except Exception:
        cap = 64 * 1024 * 1024
    return int(min(cap * 3 // 4, 100 * 1024 * 1024))


def trans_ikg_decoder_layer(x, context_out, context_mask, know_out, know_mask,
                            fusion_out, packed, n_heads):
    """Fused Pallas implementation of TransIKGDecoderLayer.forward (incr_state=None).

    `packed` must come from pack_params() (weights pre-transposed / pre-fused /
    pre-cast once; biases packed into one table).
    """
    B, T, D = x.shape
    S_C = context_out.shape[1]
    S_K = know_out.shape[1]
    f32 = jnp.float32

    # Padding masks as additive logit biases (0 = attend, -1e20 = blocked).
    cbias = jnp.where(context_mask.reshape(B, 1, S_C) > 0, 0.0, NEG_INF).astype(f32)
    kbias = jnp.where(know_mask.reshape(B, 1, S_K) > 0, 0.0, NEG_INF).astype(f32)

    w_list = [packed[n] for n in _W_NAMES]
    mxu_dtype = w_list[0].dtype

    act_specs = [
        pl.BlockSpec((1, T, D), lambda b: (b, 0, 0)),      # x
        pl.BlockSpec((1, 1, D), lambda b: (b, 0, 0)),      # fusion_out
        pl.BlockSpec((1, S_C, D), lambda b: (b, 0, 0)),    # context_out
        pl.BlockSpec((1, 1, S_C), lambda b: (b, 0, 0)),    # context bias
        pl.BlockSpec((1, S_K, D), lambda b: (b, 0, 0)),    # know_out
        pl.BlockSpec((1, 1, S_K), lambda b: (b, 0, 0)),    # know bias
    ]
    # Weights / bias tables: whole-array, single-buffered, resident in VMEM for
    # the entire call (no per-grid-step double buffering).
    w_specs = [pl.BlockSpec(memory_space=pltpu.MemorySpace.VMEM)] * (2 + len(w_list))

    kern = functools.partial(_decoder_layer_kernel, n_heads=n_heads,
                             mxu_dtype=mxu_dtype)
    return pl.pallas_call(
        kern,
        out_shape=jax.ShapeDtypeStruct((B, T, D), x.dtype),
        grid=(B,),
        in_specs=act_specs + w_specs,
        out_specs=pl.BlockSpec((1, T, D), lambda b: (b, 0, 0)),
        compiler_params=pltpu.CompilerParams(
            dimension_semantics=("parallel",),   # shard batch across TCs on v7x
            vmem_limit_bytes=_vmem_limit_bytes()),
    )(x, fusion_out, context_out, cbias, know_out, kbias,
      packed['bias_d'], packed['bias_f'], *w_list)


# ---------------------------- pure-JAX reference -----------------------------

_HI = jax.lax.Precision.HIGHEST


def _lin(t, w, b):
    return jnp.matmul(t, w.T, precision=_HI) + b


def _ln_ref(x, g, b):
    mu = jnp.mean(x, -1, keepdims=True)
    var = jnp.mean((x - mu) ** 2, -1, keepdims=True)
    return (x - mu) / jnp.sqrt(var + LN_EPS) * g + b


def _mha_ref(query, key, value, mask, p, n_heads):
    B, T, D = query.shape
    dph = D // n_heads
    scale = math.sqrt(dph)

    def prep(t):
        b, s, _ = t.shape
        return t.reshape(b, s, n_heads, dph).transpose(0, 2, 1, 3).reshape(b * n_heads, s, dph)

    q = prep(_lin(query, p['wq'], p['bq'])) / scale
    k = prep(_lin(key, p['wk'], p['bk']))
    v = prep(_lin(value, p['wv'], p['bv']))
    K = k.shape[1]
    dot = jnp.einsum('bqd,bkd->bqk', q, k, precision=_HI)
    m = jnp.broadcast_to(mask.reshape(B, 1, -1, K), (B, n_heads, T, K)).reshape(B * n_heads, T, K)
    dot = jnp.where(m == 0, NEG_INF, dot)
    attn = jax.nn.softmax(dot, axis=-1)
    ctx = jnp.einsum('bqk,bkd->bqd', attn, v, precision=_HI)
    ctx = ctx.reshape(B, n_heads, T, dph).transpose(0, 2, 1, 3).reshape(B, T, D)
    return _lin(ctx, p['wo'], p['bo'])


def _ci_ffn_ref(x, y, p):
    r = jax.nn.sigmoid(_lin(jnp.concatenate([x, y], -1), p['wr'], p['br']))
    h = jax.nn.relu(_lin(jnp.concatenate([x, r * y], -1), p['w1'], p['b1']))
    return _lin(h, p['w2'], p['b2'])


def _oi_ffn_ref(x, y, z, p):
    c = jax.nn.sigmoid(_lin(jnp.concatenate([x, y], -1), p['wc'], p['bc']))
    k = jax.nn.sigmoid(_lin(jnp.concatenate([x, z], -1), p['wk'], p['bk']))
    h = jax.nn.relu(_lin(jnp.concatenate([x, c * y, k * z], -1), p['w1'], p['b1']))
    return _lin(h, p['w2'], p['b2'])


def decoder_layer_ref(x, context_out, context_mask, know_out, know_mask,
                      fusion_out, params, n_heads):
    B, T, _ = x.shape
    dec_mask = jnp.broadcast_to(jnp.tril(jnp.ones((T, T), x.dtype))[None], (B, T, T))
    y = jnp.broadcast_to(fusion_out, x.shape)
    residual = x
    x = _ln_ref(residual + _ci_ffn_ref(x, y, params['ci_ffn']), *params['ci_norm'])
    residual = x
    a = _mha_ref(x, x, x, dec_mask, params['self_attn'], n_heads)
    x = _ln_ref(a + residual, *params['self_norm'])
    residual = x
    a_c = _mha_ref(x, context_out, context_out, context_mask, params['context_attn'], n_heads)
    x_c = _ln_ref(residual + a_c, *params['context_norm'])
    a_k = _mha_ref(x, know_out, know_out, know_mask, params['know_attn'], n_heads)
    x_k = _ln_ref(residual + a_k, *params['know_norm'])
    residual = x + x_c + x_k
    h = _oi_ffn_ref(x, x_c, x_k, params['oi_ffn'])
    return _ln_ref(residual + h, *params['oi_norm'])


# ------------------------------- params --------------------------------------

def init_params(key, D, F):
    keys = iter(jax.random.split(key, 64))

    def lin_p(out_dim, in_dim):
        w = jax.random.normal(next(keys), (out_dim, in_dim), jnp.float32) / math.sqrt(in_dim)
        b = 0.02 * jax.random.normal(next(keys), (out_dim,), jnp.float32)
        return w, b

    def attn_p():
        wq, bq = lin_p(D, D)
        wk, bk = lin_p(D, D)
        wv, bv = lin_p(D, D)
        wo, bo = lin_p(D, D)
        return dict(wq=wq, bq=bq, wk=wk, bk=bk, wv=wv, bv=bv, wo=wo, bo=bo)

    def norm_p():
        g = 1.0 + 0.1 * jax.random.normal(next(keys), (D,), jnp.float32)
        b = 0.05 * jax.random.normal(next(keys), (D,), jnp.float32)
        return (g, b)

    wr, br = lin_p(D, 2 * D)
    w1c, b1c = lin_p(F, 2 * D)
    w2c, b2c = lin_p(D, F)
    wc, bc = lin_p(D, 2 * D)
    wk_, bk_ = lin_p(D, 2 * D)
    w1o, b1o = lin_p(F, 3 * D)
    w2o, b2o = lin_p(D, F)

    return {
        'ci_ffn': dict(wr=wr, br=br, w1=w1c, b1=b1c, w2=w2c, b2=b2c),
        'ci_norm': norm_p(),
        'self_attn': attn_p(),
        'self_norm': norm_p(),
        'context_attn': attn_p(),
        'context_norm': norm_p(),
        'know_attn': attn_p(),
        'know_norm': norm_p(),
        'oi_ffn': dict(wc=wc, bc=bc, wk=wk_, bk=bk_, w1=w1o, b1=b1o, w2=w2o, b2=b2o),
        'oi_norm': norm_p(),
    }


# --------------------------------- main ---------------------------------------

if __name__ == "__main__":
    B, T, D, H, F_DIM = 2, 8, 32, 4, 64
    S_C, S_K = 8, 16

    root = jax.random.PRNGKey(0)
    kx, kc, kk, kf, kp = jax.random.split(root, 5)

    x = jax.random.normal(kx, (B, T, D), jnp.float32)
    context_out = jax.random.normal(kc, (B, S_C, D), jnp.float32)
    know_out = jax.random.normal(kk, (B, S_K, D), jnp.float32)
    fusion_out = jax.random.normal(kf, (B, 1, D), jnp.float32)

    ctx_lens = jnp.array([S_C, S_C - 3])
    context_mask = (jnp.arange(S_C)[None, :] < ctx_lens[:, None]).astype(jnp.float32)
    know_lens = jnp.array([S_K - 2, S_K])
    know_mask = (jnp.arange(S_K)[None, :] < know_lens[:, None]).astype(jnp.float32)

    params = init_params(kp, D, F_DIM)

    ref = decoder_layer_ref(x, context_out, context_mask, know_out, know_mask,
                            fusion_out, params, H)
    ref = np.asarray(jax.block_until_ready(ref))

    fwd = jax.jit(functools.partial(trans_ikg_decoder_layer, n_heads=H))

    # 1) f32 weights: tight correctness check against the pure-JAX reference.
    out_f32 = fwd(x, context_out, context_mask, know_out, know_mask, fusion_out,
                  pack_params(params, jnp.float32))
    out_f32 = np.asarray(jax.block_until_ready(out_f32))
    np.testing.assert_allclose(out_f32, ref, rtol=2e-3, atol=2e-3)

    # 2) bf16 weights / MXU operands (production config): loose sanity check
    #    (bf16 quantization of weights + matmul operands; f32 accumulation).
    out_bf16 = fwd(x, context_out, context_mask, know_out, know_mask, fusion_out,
                   pack_params(params, jnp.bfloat16))
    out_bf16 = np.asarray(jax.block_until_ready(out_bf16))
    np.testing.assert_allclose(out_bf16, ref, rtol=0.0, atol=0.3)

    print("KERNEL_OK")
</pallas_src>

<mosaic_0001>
module attributes {stable_mosaic.version = 11 : i64} {
  func.func @_decoder_layer_kernel(%arg0: i32, %arg1: memref<1x8x32xf32, #tpu.memory_space<vmem>>, %arg2: memref<1x1x32xf32, #tpu.memory_space<vmem>>, %arg3: memref<1x8x32xf32, #tpu.memory_space<vmem>>, %arg4: memref<1x1x8xf32, #tpu.memory_space<vmem>>, %arg5: memref<1x16x32xf32, #tpu.memory_space<vmem>>, %arg6: memref<1x1x16xf32, #tpu.memory_space<vmem>>, %arg7: memref<27x32xf32, #tpu.memory_space<vmem>>, %arg8: memref<2x64xf32, #tpu.memory_space<vmem>>, %arg9: memref<64x32xf32, #tpu.memory_space<vmem>>, %arg10: memref<64x64xf32, #tpu.memory_space<vmem>>, %arg11: memref<64x32xf32, #tpu.memory_space<vmem>>, %arg12: memref<32x96xf32, #tpu.memory_space<vmem>>, %arg13: memref<32x32xf32, #tpu.memory_space<vmem>>, %arg14: memref<32x32xf32, #tpu.memory_space<vmem>>, %arg15: memref<32x64xf32, #tpu.memory_space<vmem>>, %arg16: memref<32x32xf32, #tpu.memory_space<vmem>>, %arg17: memref<32x32xf32, #tpu.memory_space<vmem>>, %arg18: memref<32x64xf32, #tpu.memory_space<vmem>>, %arg19: memref<32x32xf32, #tpu.memory_space<vmem>>, %arg20: memref<64x32xf32, #tpu.memory_space<vmem>>, %arg21: memref<64x32xf32, #tpu.memory_space<vmem>>, %arg22: memref<96x64xf32, #tpu.memory_space<vmem>>, %arg23: memref<64x32xf32, #tpu.memory_space<vmem>>, %arg24: memref<1x8x32xf32, #tpu.memory_space<vmem>>) attributes {dimension_semantics = [#tpu.dimension_semantics<parallel>], iteration_bounds = array<i64: 2>, scalar_prefetch = 0 : i64, scratch_operands = 0 : i64, tpu.core_type = #tpu.core_type<tc>, window_params = [{transform_indices = @transform_0, window_bounds = array<i64: 1, 8, 32>}, {transform_indices = @transform_1, window_bounds = array<i64: 1, 1, 32>}, {transform_indices = @transform_2, window_bounds = array<i64: 1, 8, 32>}, {transform_indices = @transform_3, window_bounds = array<i64: 1, 1, 8>}, {transform_indices = @transform_4, window_bounds = array<i64: 1, 16, 32>}, {transform_indices = @transform_5, window_bounds = array<i64: 1, 1, 16>}, {pipeline_mode = #tpu.pipeline_mode<synchronous>, transform_indices = @transform_6, window_bounds = array<i64: 27, 32>}, {pipeline_mode = #tpu.pipeline_mode<synchronous>, transform_indices = @transform_7, window_bounds = array<i64: 2, 64>}, {pipeline_mode = #tpu.pipeline_mode<synchronous>, transform_indices = @transform_8, window_bounds = array<i64: 64, 32>}, {pipeline_mode = #tpu.pipeline_mode<synchronous>, transform_indices = @transform_9, window_bounds = array<i64: 64, 64>}, {pipeline_mode = #tpu.pipeline_mode<synchronous>, transform_indices = @transform_10, window_bounds = array<i64: 64, 32>}, {pipeline_mode = #tpu.pipeline_mode<synchronous>, transform_indices = @transform_11, window_bounds = array<i64: 32, 96>}, {pipeline_mode = #tpu.pipeline_mode<synchronous>, transform_indices = @transform_12, window_bounds = array<i64: 32, 32>}, {pipeline_mode = #tpu.pipeline_mode<synchronous>, transform_indices = @transform_13, window_bounds = array<i64: 32, 32>}, {pipeline_mode = #tpu.pipeline_mode<synchronous>, transform_indices = @transform_14, window_bounds = array<i64: 32, 64>}, {pipeline_mode = #tpu.pipeline_mode<synchronous>, transform_indices = @transform_15, window_bounds = array<i64: 32, 32>}, {pipeline_mode = #tpu.pipeline_mode<synchronous>, transform_indices = @transform_16, window_bounds = array<i64: 32, 32>}, {pipeline_mode = #tpu.pipeline_mode<synchronous>, transform_indices = @transform_17, window_bounds = array<i64: 32, 64>}, {pipeline_mode = #tpu.pipeline_mode<synchronous>, transform_indices = @transform_18, window_bounds = array<i64: 32, 32>}, {pipeline_mode = #tpu.pipeline_mode<synchronous>, transform_indices = @transform_19, window_bounds = array<i64: 64, 32>}, {pipeline_mode = #tpu.pipeline_mode<synchronous>, transform_indices = @transform_20, window_bounds = array<i64: 64, 32>}, {pipeline_mode = #tpu.pipeline_mode<synchronous>, transform_indices = @transform_21, window_bounds = array<i64: 96, 64>}, {pipeline_mode = #tpu.pipeline_mode<synchronous>, transform_indices = @transform_22, window_bounds = array<i64: 64, 32>}, {transform_indices = @transform_23, window_bounds = array<i64: 1, 8, 32>}]} {
    %c0 = arith.constant 0 : index
    %c0_0 = arith.constant 0 : index
    %c0_1 = arith.constant 0 : index
    %0 = vector.load %arg1[%c0, %c0_0, %c0_1] : memref<1x8x32xf32, #tpu.memory_space<vmem>>, vector<1x8x32xf32>
    %1 = vector.shape_cast %0 : vector<1x8x32xf32> to vector<8x32xf32>
    %c0_2 = arith.constant 0 : index
    %c0_3 = arith.constant 0 : index
    %c0_4 = arith.constant 0 : index
    %2 = vector.load %arg2[%c0_2, %c0_3, %c0_4] : memref<1x1x32xf32, #tpu.memory_space<vmem>>, vector<1x1x32xf32>
    %3 = vector.shape_cast %2 : vector<1x1x32xf32> to vector<1x32xf32>
    %c0_5 = arith.constant 0 : index
    %c0_6 = arith.constant 0 : index
    %4 = vector.load %arg9[%c0_5, %c0_6] : memref<64x32xf32, #tpu.memory_space<vmem>>, vector<32x32xf32>
    %cst = arith.constant dense<0.000000e+00> : vector<8x32xf32>
    %5 = tpu.matmul %1, %4, %cst {dimension_numbers = #tpu.dot_dimension_numbers<[1], [0], [0], [1], [0, 0, 1, 1], [], []>} : vector<8x32xf32>, vector<32x32xf32>, vector<8x32xf32> -> vector<8x32xf32>
    %c32 = arith.constant 32 : index
    %c0_7 = arith.constant 0 : index
    %6 = vector.load %arg9[%c32, %c0_7] : memref<64x32xf32, #tpu.memory_space<vmem>>, vector<32x32xf32>
    %cst_8 = arith.constant dense<0.000000e+00> : vector<1x32xf32>
    %7 = tpu.matmul %3, %6, %cst_8 {dimension_numbers = #tpu.dot_dimension_numbers<[1], [0], [0], [1], [0, 0, 1, 1], [], []>} : vector<1x32xf32>, vector<32x32xf32>, vector<1x32xf32> -> vector<1x32xf32>
    %8 = vector.broadcast %7 : vector<1x32xf32> to vector<8x32xf32>
    %9 = arith.addf %5, %8 : vector<8x32xf32>
    %c0_9 = arith.constant 0 : index
    %c0_10 = arith.constant 0 : index
    %10 = vector.load %arg7[%c0_9, %c0_10] : memref<27x32xf32, #tpu.memory_space<vmem>>, vector<1x32xf32>
    %11 = vector.broadcast %10 : vector<1x32xf32> to vector<8x32xf32>
    %12 = arith.addf %9, %11 : vector<8x32xf32>
    %13 = arith.negf %12 : vector<8x32xf32>
    %14 = math.exp %13 : vector<8x32xf32>
    %cst_11 = arith.constant 1.000000e+00 : f32
    %15 = vector.broadcast %cst_11 : f32 to vector<8x32xf32>
    %16 = arith.addf %15, %14 : vector<8x32xf32>
    %17 = arith.divf %15, %16 : vector<8x32xf32>
    %18 = vector.broadcast %3 : vector<1x32xf32> to vector<8x32xf32>
    %19 = arith.mulf %17, %18 : vector<8x32xf32>
    %c0_12 = arith.constant 0 : index
    %c0_13 = arith.constant 0 : index
    %20 = vector.load %arg10[%c0_12, %c0_13] : memref<64x64xf32, #tpu.memory_space<vmem>>, vector<32x64xf32>
    %cst_14 = arith.constant dense<0.000000e+00> : vector<8x64xf32>
    %21 = tpu.matmul %1, %20, %cst_14 {dimension_numbers = #tpu.dot_dimension_numbers<[1], [0], [0], [1], [0, 0, 1, 1], [], []>} : vector<8x32xf32>, vector<32x64xf32>, vector<8x64xf32> -> vector<8x64xf32>
    %c32_15 = arith.constant 32 : index
    %c0_16 = arith.constant 0 : index
    %22 = vector.load %arg10[%c32_15, %c0_16] : memref<64x64xf32, #tpu.memory_space<vmem>>, vector<32x64xf32>
    %cst_17 = arith.constant dense<0.000000e+00> : vector<8x64xf32>
    %23 = tpu.matmul %19, %22, %cst_17 {dimension_numbers = #tpu.dot_dimension_numbers<[1], [0], [0], [1], [0, 0, 1, 1], [], []>} : vector<8x32xf32>, vector<32x64xf32>, vector<8x64xf32> -> vector<8x64xf32>
    %24 = arith.addf %21, %23 : vector<8x64xf32>
    %c0_18 = arith.constant 0 : index
    %c0_19 = arith.constant 0 : index
    %25 = vector.load %arg8[%c0_18, %c0_19] : memref<2x64xf32, #tpu.memory_space<vmem>>, vector<1x64xf32>
    %26 = vector.broadcast %25 : vector<1x64xf32> to vector<8x64xf32>
    %27 = arith.addf %24, %26 : vector<8x64xf32>
    %cst_20 = arith.constant 0.000000e+00 : f32
    %28 = vector.broadcast %cst_20 : f32 to vector<8x64xf32>
    %29 = arith.maximumf %27, %28 : vector<8x64xf32>
    %c0_21 = arith.constant 0 : index
    %c0_22 = arith.constant 0 : index
    %30 = vector.load %arg11[%c0_21, %c0_22] : memref<64x32xf32, #tpu.memory_space<vmem>>, vector<64x32xf32>
    %cst_23 = arith.constant dense<0.000000e+00> : vector<8x32xf32>
    %31 = tpu.matmul %29, %30, %cst_23 {dimension_numbers = #tpu.dot_dimension_numbers<[1], [0], [0], [1], [0, 0, 1, 1], [], []>} : vector<8x64xf32>, vector<64x32xf32>, vector<8x32xf32> -> vector<8x32xf32>
    %c1 = arith.constant 1 : index
    %c0_24 = arith.constant 0 : index
    %32 = vector.load %arg7[%c1, %c0_24] : memref<27x32xf32, #tpu.memory_space<vmem>>, vector<1x32xf32>
    %33 = vector.broadcast %32 : vector<1x32xf32> to vector<8x32xf32>
    %34 = arith.addf %31, %33 : vector<8x32xf32>
    %35 = arith.addf %1, %34 : vector<8x32xf32>
    %c2 = arith.constant 2 : index
    %c0_25 = arith.constant 0 : index
    %36 = vector.load %arg7[%c2, %c0_25] : memref<27x32xf32, #tpu.memory_space<vmem>>, vector<1x32xf32>
    %c3 = arith.constant 3 : index
    %c0_26 = arith.constant 0 : index
    %37 = vector.load %arg7[%c3, %c0_26] : memref<27x32xf32, #tpu.memory_space<vmem>>, vector<1x32xf32>
    %cst_27 = arith.constant dense<0.000000e+00> : vector<8xf32>
    %38 = vector.multi_reduction <add>, %35, %cst_27 [1] : vector<8x32xf32> to vector<8xf32>
    %39 = vector.shape_cast %38 : vector<8xf32> to vector<8x1xf32>
    %cst_28 = arith.constant 3.200000e+01 : f32
    %40 = vector.broadcast %cst_28 : f32 to vector<8x1xf32>
    %41 = arith.divf %39, %40 : vector<8x1xf32>
    %42 = vector.broadcast %41 : vector<8x1xf32> to vector<8x32xf32>
    %43 = arith.subf %35, %42 : vector<8x32xf32>
    %44 = arith.mulf %43, %43 : vector<8x32xf32>
    %cst_29 = arith.constant dense<0.000000e+00> : vector<8xf32>
    %45 = vector.multi_reduction <add>, %44, %cst_29 [1] : vector<8x32xf32> to vector<8xf32>
    %46 = vector.shape_cast %45 : vector<8xf32> to vector<8x1xf32>
    %cst_30 = arith.constant 3.200000e+01 : f32
    %47 = vector.broadcast %cst_30 : f32 to vector<8x1xf32>
    %48 = arith.divf %46, %47 : vector<8x1xf32>
    %49 = vector.broadcast %41 : vector<8x1xf32> to vector<8x32xf32>
    %50 = arith.subf %35, %49 : vector<8x32xf32>
    %cst_31 = arith.constant 9.99999974E-6 : f32
    %51 = vector.broadcast %cst_31 : f32 to vector<8x1xf32>
    %52 = arith.addf %48, %51 : vector<8x1xf32>
    %53 = math.rsqrt %52 : vector<8x1xf32>
    %54 = vector.broadcast %53 : vector<8x1xf32> to vector<8x32xf32>
    %55 = arith.mulf %50, %54 : vector<8x32xf32>
    %56 = vector.broadcast %36 : vector<1x32xf32> to vector<8x32xf32>
    %57 = arith.mulf %55, %56 : vector<8x32xf32>
    %58 = vector.broadcast %37 : vector<1x32xf32> to vector<8x32xf32>
    %59 = arith.addf %57, %58 : vector<8x32xf32>
    %c0_32 = arith.constant 0 : index
    %c0_33 = arith.constant 0 : index
    %60 = vector.load %arg12[%c0_32, %c0_33] : memref<32x96xf32, #tpu.memory_space<vmem>>, vector<32x96xf32>
    %cst_34 = arith.constant dense<0.000000e+00> : vector<8x96xf32>
    %61 = tpu.matmul %59, %60, %cst_34 {dimension_numbers = #tpu.dot_dimension_numbers<[1], [0], [0], [1], [0, 0, 1, 1], [], []>} : vector<8x32xf32>, vector<32x96xf32>, vector<8x96xf32> -> vector<8x96xf32>
    %62 = vector.extract_strided_slice %61 {offsets = [0, 0], sizes = [8, 32], strides = [1, 1]} : vector<8x96xf32> to vector<8x32xf32>
    %c4 = arith.constant 4 : index
    %c0_35 = arith.constant 0 : index
    %63 = vector.load %arg7[%c4, %c0_35] : memref<27x32xf32, #tpu.memory_space<vmem>>, vector<1x32xf32>
    %64 = vector.broadcast %63 : vector<1x32xf32> to vector<8x32xf32>
    %65 = arith.addf %62, %64 : vector<8x32xf32>
    %66 = vector.extract_strided_slice %61 {offsets = [0, 32], sizes = [8, 32], strides = [1, 1]} : vector<8x96xf32> to vector<8x32xf32>
    %c5 = arith.constant 5 : index
    %c0_36 = arith.constant 0 : index
    %67 = vector.load %arg7[%c5, %c0_36] : memref<27x32xf32, #tpu.memory_space<vmem>>, vector<1x32xf32>
    %68 = vector.broadcast %67 : vector<1x32xf32> to vector<8x32xf32>
    %69 = arith.addf %66, %68 : vector<8x32xf32>
    %70 = vector.extract_strided_slice %61 {offsets = [0, 64], sizes = [8, 32], strides = [1, 1]} : vector<8x96xf32> to vector<8x32xf32>
    %c6 = arith.constant 6 : index
    %c0_37 = arith.constant 0 : index
    %71 = vector.load %arg7[%c6, %c0_37] : memref<27x32xf32, #tpu.memory_space<vmem>>, vector<1x32xf32>
    %72 = vector.broadcast %71 : vector<1x32xf32> to vector<8x32xf32>
    %73 = arith.addf %70, %72 : vector<8x32xf32>
    %74 = tpu.iota {dimensions = array<i32: 0>} : vector<8x8xi32>
    %75 = tpu.iota {dimensions = array<i32: 1>} : vector<8x8xi32>
    %76 = arith.cmpi sle, %75, %74 : vector<8x8xi32>
    %cst_38 = arith.constant 0.000000e+00 : f32
    %cst_39 = arith.constant -1.000000e+20 : f32
    %77 = vector.broadcast %cst_38 : f32 to vector<8x8xf32>
    %78 = vector.broadcast %cst_39 : f32 to vector<8x8xf32>
    %79 = arith.select %76, %77, %78 : vector<8x8xi1>, vector<8x8xf32>
    %c7 = arith.constant 7 : index
    %c0_40 = arith.constant 0 : index
    %80 = vector.load %arg7[%c7, %c0_40] : memref<27x32xf32, #tpu.memory_space<vmem>>, vector<1x32xf32>
    %81 = vector.extract_strided_slice %65 {offsets = [0, 0], sizes = [8, 8], strides = [1, 1]} : vector<8x32xf32> to vector<8x8xf32>
    %82 = vector.extract_strided_slice %69 {offsets = [0, 0], sizes = [8, 8], strides = [1, 1]} : vector<8x32xf32> to vector<8x8xf32>
    %cst_41 = arith.constant dense<0.000000e+00> : vector<8x8xf32>
    %83 = tpu.matmul %81, %82, %cst_41 {dimension_numbers = #tpu.dot_dimension_numbers<[1], [1], [0], [0], [0, 0, 1, 0], [], []>} : vector<8x8xf32>, vector<8x8xf32>, vector<8x8xf32> -> vector<8x8xf32>
    %cst_42 = arith.constant 0.353553385 : f32
    %84 = vector.broadcast %cst_42 : f32 to vector<8x8xf32>
    %85 = arith.mulf %83, %84 : vector<8x8xf32>
    %86 = arith.addf %85, %79 : vector<8x8xf32>
    %87 = vector.extract_strided_slice %65 {offsets = [0, 8], sizes = [8, 8], strides = [1, 1]} : vector<8x32xf32> to vector<8x8xf32>
    %88 = vector.extract_strided_slice %69 {offsets = [0, 8], sizes = [8, 8], strides = [1, 1]} : vector<8x32xf32> to vector<8x8xf32>
    %cst_43 = arith.constant dense<0.000000e+00> : vector<8x8xf32>
    %89 = tpu.matmul %87, %88, %cst_43 {dimension_numbers = #tpu.dot_dimension_numbers<[1], [1], [0], [0], [0, 0, 1, 0], [], []>} : vector<8x8xf32>, vector<8x8xf32>, vector<8x8xf32> -> vector<8x8xf32>
    %cst_44 = arith.constant 0.353553385 : f32
    %90 = vector.broadcast %cst_44 : f32 to vector<8x8xf32>
    %91 = arith.mulf %89, %90 : vector<8x8xf32>
    %92 = arith.addf %91, %79 : vector<8x8xf32>
    %93 = vector.extract_strided_slice %65 {offsets = [0, 16], sizes = [8, 8], strides = [1, 1]} : vector<8x32xf32> to vector<8x8xf32>
    %94 = vector.extract_strided_slice %69 {offsets = [0, 16], sizes = [8, 8], strides = [1, 1]} : vector<8x32xf32> to vector<8x8xf32>
    %cst_45 = arith.constant dense<0.000000e+00> : vector<8x8xf32>
    %95 = tpu.matmul %93, %94, %cst_45 {dimension_numbers = #tpu.dot_dimension_numbers<[1], [1], [0], [0], [0, 0, 1, 0], [], []>} : vector<8x8xf32>, vector<8x8xf32>, vector<8x8xf32> -> vector<8x8xf32>
    %cst_46 = arith.constant 0.353553385 : f32
    %96 = vector.broadcast %cst_46 : f32 to vector<8x8xf32>
    %97 = arith.mulf %95, %96 : vector<8x8xf32>
    %98 = arith.addf %97, %79 : vector<8x8xf32>
    %99 = vector.extract_strided_slice %65 {offsets = [0, 24], sizes = [8, 8], strides = [1, 1]} : vector<8x32xf32> to vector<8x8xf32>
    %100 = vector.extract_strided_slice %69 {offsets = [0, 24], sizes = [8, 8], strides = [1, 1]} : vector<8x32xf32> to vector<8x8xf32>
    %cst_47 = arith.constant dense<0.000000e+00> : vector<8x8xf32>
    %101 = tpu.matmul %99, %100, %cst_47 {dimension_numbers = #tpu.dot_dimension_numbers<[1], [1], [0], [0], [0, 0, 1, 0], [], []>} : vector<8x8xf32>, vector<8x8xf32>, vector<8x8xf32> -> vector<8x8xf32>
    %cst_48 = arith.constant 0.353553385 : f32
    %102 = vector.broadcast %cst_48 : f32 to vector<8x8xf32>
    %103 = arith.mulf %101, %102 : vector<8x8xf32>
    %104 = arith.addf %103, %79 : vector<8x8xf32>
    %105 = tpu.concatenate %86, %92, %98, %104 in 0 : vector<8x8xf32>, vector<8x8xf32>, vector<8x8xf32>, vector<8x8xf32> -> vector<32x8xf32>
    %cst_49 = arith.constant dense<0xFF800000> : vector<32xf32>
    %106 = vector.multi_reduction <maximumf>, %105, %cst_49 [1] : vector<32x8xf32> to vector<32xf32>
    %107 = vector.shape_cast %106 : vector<32xf32> to vector<32x1xf32>
    %108 = vector.broadcast %107 : vector<32x1xf32> to vector<32x8xf32>
    %109 = arith.subf %105, %108 : vector<32x8xf32>
    %110 = math.exp %109 : vector<32x8xf32>
    %cst_50 = arith.constant dense<0.000000e+00> : vector<32xf32>
    %111 = vector.multi_reduction <add>, %110, %cst_50 [1] : vector<32x8xf32> to vector<32xf32>
    %112 = vector.shape_cast %111 : vector<32xf32> to vector<32x1xf32>
    %113 = tpu.reciprocal %112 {approx = true} : vector<32x1xf32> -> vector<32x1xf32>
    %114 = arith.mulf %112, %113 : vector<32x1xf32>
    %cst_51 = arith.constant 2.000000e+00 : f32
    %115 = vector.broadcast %cst_51 : f32 to vector<32x1xf32>
    %116 = arith.subf %115, %114 : vector<32x1xf32>
    %117 = arith.mulf %113, %116 : vector<32x1xf32>
    %118 = vector.broadcast %117 : vector<32x1xf32> to vector<32x8xf32>
    %119 = arith.mulf %110, %118 : vector<32x8xf32>
    %120 = vector.extract_strided_slice %119 {offsets = [0, 0], sizes = [8, 8], strides = [1, 1]} : vector<32x8xf32> to vector<8x8xf32>
    %121 = vector.extract_strided_slice %73 {offsets = [0, 0], sizes = [8, 8], strides = [1, 1]} : vector<8x32xf32> to vector<8x8xf32>
    %cst_52 = arith.constant dense<0.000000e+00> : vector<8x8xf32>
    %122 = tpu.matmul %120, %121, %cst_52 {dimension_numbers = #tpu.dot_dimension_numbers<[1], [0], [0], [1], [0, 0, 1, 1], [], []>} : vector<8x8xf32>, vector<8x8xf32>, vector<8x8xf32> -> vector<8x8xf32>
    %123 = vector.extract_strided_slice %119 {offsets = [8, 0], sizes = [8, 8], strides = [1, 1]} : vector<32x8xf32> to vector<8x8xf32>
    %124 = vector.extract_strided_slice %73 {offsets = [0, 8], sizes = [8, 8], strides = [1, 1]} : vector<8x32xf32> to vector<8x8xf32>
    %cst_53 = arith.constant dense<0.000000e+00> : vector<8x8xf32>
    %125 = tpu.matmul %123, %124, %cst_53 {dimension_numbers = #tpu.dot_dimension_numbers<[1], [0], [0], [1], [0, 0, 1, 1], [], []>} : vector<8x8xf32>, vector<8x8xf32>, vector<8x8xf32> -> vector<8x8xf32>
    %126 = vector.extract_strided_slice %119 {offsets = [16, 0], sizes = [8, 8], strides = [1, 1]} : vector<32x8xf32> to vector<8x8xf32>
    %127 = vector.extract_strided_slice %73 {offsets = [0, 16], sizes = [8, 8], strides = [1, 1]} : vector<8x32xf32> to vector<8x8xf32>
    %cst_54 = arith.constant dense<0.000000e+00> : vector<8x8xf32>
    %128 = tpu.matmul %126, %127, %cst_54 {dimension_numbers = #tpu.dot_dimension_numbers<[1], [0], [0], [1], [0, 0, 1, 1], [], []>} : vector<8x8xf32>, vector<8x8xf32>, vector<8x8xf32> -> vector<8x8xf32>
    %129 = vector.extract_strided_slice %119 {offsets = [24, 0], sizes = [8, 8], strides = [1, 1]} : vector<32x8xf32> to vector<8x8xf32>
    %130 = vector.extract_strided_slice %73 {offsets = [0, 24], sizes = [8, 8], strides = [1, 1]} : vector<8x32xf32> to vector<8x8xf32>
    %cst_55 = arith.constant dense<0.000000e+00> : vector<8x8xf32>
    %131 = tpu.matmul %129, %130, %cst_55 {dimension_numbers = #tpu.dot_dimension_numbers<[1], [0], [0], [1], [0, 0, 1, 1], [], []>} : vector<8x8xf32>, vector<8x8xf32>, vector<8x8xf32> -> vector<8x8xf32>
    %132 = tpu.concatenate %122, %125, %128, %131 in 1 : vector<8x8xf32>, vector<8x8xf32>, vector<8x8xf32>, vector<8x8xf32> -> vector<8x32xf32>
    %c0_56 = arith.constant 0 : index
    %c0_57 = arith.constant 0 : index
    %133 = vector.load %arg13[%c0_56, %c0_57] : memref<32x32xf32, #tpu.memory_space<vmem>>, vector<32x32xf32>
    %cst_58 = arith.constant dense<0.000000e+00> : vector<8x32xf32>
    %134 = tpu.matmul %132, %133, %cst_58 {dimension_numbers = #tpu.dot_dimension_numbers<[1], [0], [0], [1], [0, 0, 1, 1], [], []>} : vector<8x32xf32>, vector<32x32xf32>, vector<8x32xf32> -> vector<8x32xf32>
    %135 = vector.broadcast %80 : vector<1x32xf32> to vector<8x32xf32>
    %136 = arith.addf %134, %135 : vector<8x32xf32>
    %137 = arith.addf %136, %59 : vector<8x32xf32>
    %c8 = arith.constant 8 : index
    %c0_59 = arith.constant 0 : index
    %138 = vector.load %arg7[%c8, %c0_59] : memref<27x32xf32, #tpu.memory_space<vmem>>, vector<1x32xf32>
    %c9 = arith.constant 9 : index
    %c0_60 = arith.constant 0 : index
    %139 = vector.load %arg7[%c9, %c0_60] : memref<27x32xf32, #tpu.memory_space<vmem>>, vector<1x32xf32>
    %cst_61 = arith.constant dense<0.000000e+00> : vector<8xf32>
    %140 = vector.multi_reduction <add>, %137, %cst_61 [1] : vector<8x32xf32> to vector<8xf32>
    %141 = vector.shape_cast %140 : vector<8xf32> to vector<8x1xf32>
    %cst_62 = arith.constant 3.200000e+01 : f32
    %142 = vector.broadcast %cst_62 : f32 to vector<8x1xf32>
    %143 = arith.divf %141, %142 : vector<8x1xf32>
    %144 = vector.broadcast %143 : vector<8x1xf32> to vector<8x32xf32>
    %145 = arith.subf %137, %144 : vector<8x32xf32>
    %146 = arith.mulf %145, %145 : vector<8x32xf32>
    %cst_63 = arith.constant dense<0.000000e+00> : vector<8xf32>
    %147 = vector.multi_reduction <add>, %146, %cst_63 [1] : vector<8x32xf32> to vector<8xf32>
    %148 = vector.shape_cast %147 : vector<8xf32> to vector<8x1xf32>
    %cst_64 = arith.constant 3.200000e+01 : f32
    %149 = vector.broadcast %cst_64 : f32 to vector<8x1xf32>
    %150 = arith.divf %148, %149 : vector<8x1xf32>
    %151 = vector.broadcast %143 : vector<8x1xf32> to vector<8x32xf32>
    %152 = arith.subf %137, %151 : vector<8x32xf32>
    %cst_65 = arith.constant 9.99999974E-6 : f32
    %153 = vector.broadcast %cst_65 : f32 to vector<8x1xf32>
    %154 = arith.addf %150, %153 : vector<8x1xf32>
    %155 = math.rsqrt %154 : vector<8x1xf32>
    %156 = vector.broadcast %155 : vector<8x1xf32> to vector<8x32xf32>
    %157 = arith.mulf %152, %156 : vector<8x32xf32>
    %158 = vector.broadcast %138 : vector<1x32xf32> to vector<8x32xf32>
    %159 = arith.mulf %157, %158 : vector<8x32xf32>
    %160 = vector.broadcast %139 : vector<1x32xf32> to vector<8x32xf32>
    %161 = arith.addf %159, %160 : vector<8x32xf32>
    %c0_66 = arith.constant 0 : index
    %c0_67 = arith.constant 0 : index
    %c0_68 = arith.constant 0 : index
    %162 = vector.load %arg3[%c0_66, %c0_67, %c0_68] : memref<1x8x32xf32, #tpu.memory_space<vmem>>, vector<1x8x32xf32>
    %163 = vector.shape_cast %162 : vector<1x8x32xf32> to vector<8x32xf32>
    %c0_69 = arith.constant 0 : index
    %c0_70 = arith.constant 0 : index
    %164 = vector.load %arg14[%c0_69, %c0_70] : memref<32x32xf32, #tpu.memory_space<vmem>>, vector<32x32xf32>
    %cst_71 = arith.constant dense<0.000000e+00> : vector<8x32xf32>
    %165 = tpu.matmul %161, %164, %cst_71 {dimension_numbers = #tpu.dot_dimension_numbers<[1], [0], [0], [1], [0, 0, 1, 1], [], []>} : vector<8x32xf32>, vector<32x32xf32>, vector<8x32xf32> -> vector<8x32xf32>
    %c10 = arith.constant 10 : index
    %c0_72 = arith.constant 0 : index
    %166 = vector.load %arg7[%c10, %c0_72] : memref<27x32xf32, #tpu.memory_space<vmem>>, vector<1x32xf32>
    %167 = vector.broadcast %166 : vector<1x32xf32> to vector<8x32xf32>
    %168 = arith.addf %165, %167 : vector<8x32xf32>
    %c0_73 = arith.constant 0 : index
    %c0_74 = arith.constant 0 : index
    %169 = vector.load %arg15[%c0_73, %c0_74] : memref<32x64xf32, #tpu.memory_space<vmem>>, vector<32x64xf32>
    %cst_75 = arith.constant dense<0.000000e+00> : vector<8x64xf32>
    %170 = tpu.matmul %163, %169, %cst_75 {dimension_numbers = #tpu.dot_dimension_numbers<[1], [0], [0], [1], [0, 0, 1, 1], [], []>} : vector<8x32xf32>, vector<32x64xf32>, vector<8x64xf32> -> vector<8x64xf32>
    %171 = vector.extract_strided_slice %170 {offsets = [0, 0], sizes = [8, 32], strides = [1, 1]} : vector<8x64xf32> to vector<8x32xf32>
    %c11 = arith.constant 11 : index
    %c0_76 = arith.constant 0 : index
    %172 = vector.load %arg7[%c11, %c0_76] : memref<27x32xf32, #tpu.memory_space<vmem>>, vector<1x32xf32>
    %173 = vector.broadcast %172 : vector<1x32xf32> to vector<8x32xf32>
    %174 = arith.addf %171, %173 : vector<8x32xf32>
    %175 = vector.extract_strided_slice %170 {offsets = [0, 32], sizes = [8, 32], strides = [1, 1]} : vector<8x64xf32> to vector<8x32xf32>
    %c12 = arith.constant 12 : index
    %c0_77 = arith.constant 0 : index
    %176 = vector.load %arg7[%c12, %c0_77] : memref<27x32xf32, #tpu.memory_space<vmem>>, vector<1x32xf32>
    %177 = vector.broadcast %176 : vector<1x32xf32> to vector<8x32xf32>
    %178 = arith.addf %175, %177 : vector<8x32xf32>
    %c0_78 = arith.constant 0 : index
    %c0_79 = arith.constant 0 : index
    %c0_80 = arith.constant 0 : index
    %179 = vector.load %arg4[%c0_78, %c0_79, %c0_80] : memref<1x1x8xf32, #tpu.memory_space<vmem>>, vector<1x1x8xf32>
    %180 = vector.shape_cast %179 : vector<1x1x8xf32> to vector<1x8xf32>
    %c13 = arith.constant 13 : index
    %c0_81 = arith.constant 0 : index
    %181 = vector.load %arg7[%c13, %c0_81] : memref<27x32xf32, #tpu.memory_space<vmem>>, vector<1x32xf32>
    %182 = vector.extract_strided_slice %168 {offsets = [0, 0], sizes = [8, 8], strides = [1, 1]} : vector<8x32xf32> to vector<8x8xf32>
    %183 = vector.extract_strided_slice %174 {offsets = [0, 0], sizes = [8, 8], strides = [1, 1]} : vector<8x32xf32> to vector<8x8xf32>
    %cst_82 = arith.constant dense<0.000000e+00> : vector<8x8xf32>
    %184 = tpu.matmul %182, %183, %cst_82 {dimension_numbers = #tpu.dot_dimension_numbers<[1], [1], [0], [0], [0, 0, 1, 0], [], []>} : vector<8x8xf32>, vector<8x8xf32>, vector<8x8xf32> -> vector<8x8xf32>
    %cst_83 = arith.constant 0.353553385 : f32
    %185 = vector.broadcast %cst_83 : f32 to vector<8x8xf32>
    %186 = arith.mulf %184, %185 : vector<8x8xf32>
    %187 = vector.broadcast %180 : vector<1x8xf32> to vector<8x8xf32>
    %188 = arith.addf %186, %187 : vector<8x8xf32>
    %189 = vector.extract_strided_slice %168 {offsets = [0, 8], sizes = [8, 8], strides = [1, 1]} : vector<8x32xf32> to vector<8x8xf32>
    %190 = vector.extract_strided_slice %174 {offsets = [0, 8], sizes = [8, 8], strides = [1, 1]} : vector<8x32xf32> to vector<8x8xf32>
    %cst_84 = arith.constant dense<0.000000e+00> : vector<8x8xf32>
    %191 = tpu.matmul %189, %190, %cst_84 {dimension_numbers = #tpu.dot_dimension_numbers<[1], [1], [0], [0], [0, 0, 1, 0], [], []>} : vector<8x8xf32>, vector<8x8xf32>, vector<8x8xf32> -> vector<8x8xf32>
    %cst_85 = arith.constant 0.353553385 : f32
    %192 = vector.broadcast %cst_85 : f32 to vector<8x8xf32>
    %193 = arith.mulf %191, %192 : vector<8x8xf32>
    %194 = vector.broadcast %180 : vector<1x8xf32> to vector<8x8xf32>
    %195 = arith.addf %193, %194 : vector<8x8xf32>
    %196 = vector.extract_strided_slice %168 {offsets = [0, 16], sizes = [8, 8], strides = [1, 1]} : vector<8x32xf32> to vector<8x8xf32>
    %197 = vector.extract_strided_slice %174 {offsets = [0, 16], sizes = [8, 8], strides = [1, 1]} : vector<8x32xf32> to vector<8x8xf32>
    %cst_86 = arith.constant dense<0.000000e+00> : vector<8x8xf32>
    %198 = tpu.matmul %196, %197, %cst_86 {dimension_numbers = #tpu.dot_dimension_numbers<[1], [1], [0], [0], [0, 0, 1, 0], [], []>} : vector<8x8xf32>, vector<8x8xf32>, vector<8x8xf32> -> vector<8x8xf32>
    %cst_87 = arith.constant 0.353553385 : f32
    %199 = vector.broadcast %cst_87 : f32 to vector<8x8xf32>
    %200 = arith.mulf %198, %199 : vector<8x8xf32>
    %201 = vector.broadcast %180 : vector<1x8xf32> to vector<8x8xf32>
    %202 = arith.addf %200, %201 : vector<8x8xf32>
    %203 = vector.extract_strided_slice %168 {offsets = [0, 24], sizes = [8, 8], strides = [1, 1]} : vector<8x32xf32> to vector<8x8xf32>
    %204 = vector.extract_strided_slice %174 {offsets = [0, 24], sizes = [8, 8], strides = [1, 1]} : vector<8x32xf32> to vector<8x8xf32>
    %cst_88 = arith.constant dense<0.000000e+00> : vector<8x8xf32>
    %205 = tpu.matmul %203, %204, %cst_88 {dimension_numbers = #tpu.dot_dimension_numbers<[1], [1], [0], [0], [0, 0, 1, 0], [], []>} : vector<8x8xf32>, vector<8x8xf32>, vector<8x8xf32> -> vector<8x8xf32>
    %cst_89 = arith.constant 0.353553385 : f32
    %206 = vector.broadcast %cst_89 : f32 to vector<8x8xf32>
    %207 = arith.mulf %205, %206 : vector<8x8xf32>
    %208 = vector.broadcast %180 : vector<1x8xf32> to vector<8x8xf32>
    %209 = arith.addf %207, %208 : vector<8x8xf32>
    %210 = tpu.concatenate %188, %195, %202, %209 in 0 : vector<8x8xf32>, vector<8x8xf32>, vector<8x8xf32>, vector<8x8xf32> -> vector<32x8xf32>
    %cst_90 = arith.constant dense<0xFF800000> : vector<32xf32>
    %211 = vector.multi_reduction <maximumf>, %210, %cst_90 [1] : vector<32x8xf32> to vector<32xf32>
    %212 = vector.shape_cast %211 : vector<32xf32> to vector<32x1xf32>
    %213 = vector.broadcast %212 : vector<32x1xf32> to vector<32x8xf32>
    %214 = arith.subf %210, %213 : vector<32x8xf32>
    %215 = math.exp %214 : vector<32x8xf32>
    %cst_91 = arith.constant dense<0.000000e+00> : vector<32xf32>
    %216 = vector.multi_reduction <add>, %215, %cst_91 [1] : vector<32x8xf32> to vector<32xf32>
    %217 = vector.shape_cast %216 : vector<32xf32> to vector<32x1xf32>
    %218 = tpu.reciprocal %217 {approx = true} : vector<32x1xf32> -> vector<32x1xf32>
    %219 = arith.mulf %217, %218 : vector<32x1xf32>
    %cst_92 = arith.constant 2.000000e+00 : f32
    %220 = vector.broadcast %cst_92 : f32 to vector<32x1xf32>
    %221 = arith.subf %220, %219 : vector<32x1xf32>
    %222 = arith.mulf %218, %221 : vector<32x1xf32>
    %223 = vector.broadcast %222 : vector<32x1xf32> to vector<32x8xf32>
    %224 = arith.mulf %215, %223 : vector<32x8xf32>
    %225 = vector.extract_strided_slice %224 {offsets = [0, 0], sizes = [8, 8], strides = [1, 1]} : vector<32x8xf32> to vector<8x8xf32>
    %226 = vector.extract_strided_slice %178 {offsets = [0, 0], sizes = [8, 8], strides = [1, 1]} : vector<8x32xf32> to vector<8x8xf32>
    %cst_93 = arith.constant dense<0.000000e+00> : vector<8x8xf32>
    %227 = tpu.matmul %225, %226, %cst_93 {dimension_numbers = #tpu.dot_dimension_numbers<[1], [0], [0], [1], [0, 0, 1, 1], [], []>} : vector<8x8xf32>, vector<8x8xf32>, vector<8x8xf32> -> vector<8x8xf32>
    %228 = vector.extract_strided_slice %224 {offsets = [8, 0], sizes = [8, 8], strides = [1, 1]} : vector<32x8xf32> to vector<8x8xf32>
    %229 = vector.extract_strided_slice %178 {offsets = [0, 8], sizes = [8, 8], strides = [1, 1]} : vector<8x32xf32> to vector<8x8xf32>
    %cst_94 = arith.constant dense<0.000000e+00> : vector<8x8xf32>
    %230 = tpu.matmul %228, %229, %cst_94 {dimension_numbers = #tpu.dot_dimension_numbers<[1], [0], [0], [1], [0, 0, 1, 1], [], []>} : vector<8x8xf32>, vector<8x8xf32>, vector<8x8xf32> -> vector<8x8xf32>
    %231 = vector.extract_strided_slice %224 {offsets = [16, 0], sizes = [8, 8], strides = [1, 1]} : vector<32x8xf32> to vector<8x8xf32>
    %232 = vector.extract_strided_slice %178 {offsets = [0, 16], sizes = [8, 8], strides = [1, 1]} : vector<8x32xf32> to vector<8x8xf32>
    %cst_95 = arith.constant dense<0.000000e+00> : vector<8x8xf32>
    %233 = tpu.matmul %231, %232, %cst_95 {dimension_numbers = #tpu.dot_dimension_numbers<[1], [0], [0], [1], [0, 0, 1, 1], [], []>} : vector<8x8xf32>, vector<8x8xf32>, vector<8x8xf32> -> vector<8x8xf32>
    %234 = vector.extract_strided_slice %224 {offsets = [24, 0], sizes = [8, 8], strides = [1, 1]} : vector<32x8xf32> to vector<8x8xf32>
    %235 = vector.extract_strided_slice %178 {offsets = [0, 24], sizes = [8, 8], strides = [1, 1]} : vector<8x32xf32> to vector<8x8xf32>
    %cst_96 = arith.constant dense<0.000000e+00> : vector<8x8xf32>
    %236 = tpu.matmul %234, %235, %cst_96 {dimension_numbers = #tpu.dot_dimension_numbers<[1], [0], [0], [1], [0, 0, 1, 1], [], []>} : vector<8x8xf32>, vector<8x8xf32>, vector<8x8xf32> -> vector<8x8xf32>
    %237 = tpu.concatenate %227, %230, %233, %236 in 1 : vector<8x8xf32>, vector<8x8xf32>, vector<8x8xf32>, vector<8x8xf32> -> vector<8x32xf32>
    %c0_97 = arith.constant 0 : index
    %c0_98 = arith.constant 0 : index
    %238 = vector.load %arg16[%c0_97, %c0_98] : memref<32x32xf32, #tpu.memory_space<vmem>>, vector<32x32xf32>
    %cst_99 = arith.constant dense<0.000000e+00> : vector<8x32xf32>
    %239 = tpu.matmul %237, %238, %cst_99 {dimension_numbers = #tpu.dot_dimension_numbers<[1], [0], [0], [1], [0, 0, 1, 1], [], []>} : vector<8x32xf32>, vector<32x32xf32>, vector<8x32xf32> -> vector<8x32xf32>
    %240 = vector.broadcast %181 : vector<1x32xf32> to vector<8x32xf32>
    %241 = arith.addf %239, %240 : vector<8x32xf32>
    %242 = arith.addf %161, %241 : vector<8x32xf32>
    %c14 = arith.constant 14 : index
    %c0_100 = arith.constant 0 : index
    %243 = vector.load %arg7[%c14, %c0_100] : memref<27x32xf32, #tpu.memory_space<vmem>>, vector<1x32xf32>
    %c15 = arith.constant 15 : index
    %c0_101 = arith.constant 0 : index
    %244 = vector.load %arg7[%c15, %c0_101] : memref<27x32xf32, #tpu.memory_space<vmem>>, vector<1x32xf32>
    %cst_102 = arith.constant dense<0.000000e+00> : vector<8xf32>
    %245 = vector.multi_reduction <add>, %242, %cst_102 [1] : vector<8x32xf32> to vector<8xf32>
    %246 = vector.shape_cast %245 : vector<8xf32> to vector<8x1xf32>
    %cst_103 = arith.constant 3.200000e+01 : f32
    %247 = vector.broadcast %cst_103 : f32 to vector<8x1xf32>
    %248 = arith.divf %246, %247 : vector<8x1xf32>
    %249 = vector.broadcast %248 : vector<8x1xf32> to vector<8x32xf32>
    %250 = arith.subf %242, %249 : vector<8x32xf32>
    %251 = arith.mulf %250, %250 : vector<8x32xf32>
    %cst_104 = arith.constant dense<0.000000e+00> : vector<8xf32>
    %252 = vector.multi_reduction <add>, %251, %cst_104 [1] : vector<8x32xf32> to vector<8xf32>
    %253 = vector.shape_cast %252 : vector<8xf32> to vector<8x1xf32>
    %cst_105 = arith.constant 3.200000e+01 : f32
    %254 = vector.broadcast %cst_105 : f32 to vector<8x1xf32>
    %255 = arith.divf %253, %254 : vector<8x1xf32>
    %256 = vector.broadcast %248 : vector<8x1xf32> to vector<8x32xf32>
    %257 = arith.subf %242, %256 : vector<8x32xf32>
    %cst_106 = arith.constant 9.99999974E-6 : f32
    %258 = vector.broadcast %cst_106 : f32 to vector<8x1xf32>
    %259 = arith.addf %255, %258 : vector<8x1xf32>
    %260 = math.rsqrt %259 : vector<8x1xf32>
    %261 = vector.broadcast %260 : vector<8x1xf32> to vector<8x32xf32>
    %262 = arith.mulf %257, %261 : vector<8x32xf32>
    %263 = vector.broadcast %243 : vector<1x32xf32> to vector<8x32xf32>
    %264 = arith.mulf %262, %263 : vector<8x32xf32>
    %265 = vector.broadcast %244 : vector<1x32xf32> to vector<8x32xf32>
    %266 = arith.addf %264, %265 : vector<8x32xf32>
    %c0_107 = arith.constant 0 : index
    %c0_108 = arith.constant 0 : index
    %c0_109 = arith.constant 0 : index
    %267 = vector.load %arg5[%c0_107, %c0_108, %c0_109] : memref<1x16x32xf32, #tpu.memory_space<vmem>>, vector<1x16x32xf32>
    %268 = vector.shape_cast %267 : vector<1x16x32xf32> to vector<16x32xf32>
    %c0_110 = arith.constant 0 : index
    %c0_111 = arith.constant 0 : index
    %269 = vector.load %arg17[%c0_110, %c0_111] : memref<32x32xf32, #tpu.memory_space<vmem>>, vector<32x32xf32>
    %cst_112 = arith.constant dense<0.000000e+00> : vector<8x32xf32>
    %270 = tpu.matmul %161, %269, %cst_112 {dimension_numbers = #tpu.dot_dimension_numbers<[1], [0], [0], [1], [0, 0, 1, 1], [], []>} : vector<8x32xf32>, vector<32x32xf32>, vector<8x32xf32> -> vector<8x32xf32>
    %c16 = arith.constant 16 : index
    %c0_113 = arith.constant 0 : index
    %271 = vector.load %arg7[%c16, %c0_113] : memref<27x32xf32, #tpu.memory_space<vmem>>, vector<1x32xf32>
    %272 = vector.broadcast %271 : vector<1x32xf32> to vector<8x32xf32>
    %273 = arith.addf %270, %272 : vector<8x32xf32>
    %c0_114 = arith.constant 0 : index
    %c0_115 = arith.constant 0 : index
    %274 = vector.load %arg18[%c0_114, %c0_115] : memref<32x64xf32, #tpu.memory_space<vmem>>, vector<32x64xf32>
    %cst_116 = arith.constant dense<0.000000e+00> : vector<16x64xf32>
    %275 = tpu.matmul %268, %274, %cst_116 {dimension_numbers = #tpu.dot_dimension_numbers<[1], [0], [0], [1], [0, 0, 1, 1], [], []>} : vector<16x32xf32>, vector<32x64xf32>, vector<16x64xf32> -> vector<16x64xf32>
    %276 = vector.extract_strided_slice %275 {offsets = [0, 0], sizes = [16, 32], strides = [1, 1]} : vector<16x64xf32> to vector<16x32xf32>
    %c17 = arith.constant 17 : index
    %c0_117 = arith.constant 0 : index
    %277 = vector.load %arg7[%c17, %c0_117] : memref<27x32xf32, #tpu.memory_space<vmem>>, vector<1x32xf32>
    %278 = vector.broadcast %277 : vector<1x32xf32> to vector<16x32xf32>
    %279 = arith.addf %276, %278 : vector<16x32xf32>
    %280 = vector.extract_strided_slice %275 {offsets = [0, 32], sizes = [16, 32], strides = [1, 1]} : vector<16x64xf32> to vector<16x32xf32>
    %c18 = arith.constant 18 : index
    %c0_118 = arith.constant 0 : index
    %281 = vector.load %arg7[%c18, %c0_118] : memref<27x32xf32, #tpu.memory_space<vmem>>, vector<1x32xf32>
    %282 = vector.broadcast %281 : vector<1x32xf32> to vector<16x32xf32>
    %283 = arith.addf %280, %282 : vector<16x32xf32>
    %c0_119 = arith.constant 0 : index
    %c0_120 = arith.constant 0 : index
    %c0_121 = arith.constant 0 : index
    %284 = vector.load %arg6[%c0_119, %c0_120, %c0_121] : memref<1x1x16xf32, #tpu.memory_space<vmem>>, vector<1x1x16xf32>
    %285 = vector.shape_cast %284 : vector<1x1x16xf32> to vector<1x16xf32>
    %c19 = arith.constant 19 : index
    %c0_122 = arith.constant 0 : index
    %286 = vector.load %arg7[%c19, %c0_122] : memref<27x32xf32, #tpu.memory_space<vmem>>, vector<1x32xf32>
    %287 = vector.extract_strided_slice %273 {offsets = [0, 0], sizes = [8, 8], strides = [1, 1]} : vector<8x32xf32> to vector<8x8xf32>
    %288 = vector.extract_strided_slice %279 {offsets = [0, 0], sizes = [16, 8], strides = [1, 1]} : vector<16x32xf32> to vector<16x8xf32>
    %cst_123 = arith.constant dense<0.000000e+00> : vector<8x16xf32>
    %289 = tpu.matmul %287, %288, %cst_123 {dimension_numbers = #tpu.dot_dimension_numbers<[1], [1], [0], [0], [0, 0, 1, 0], [], []>} : vector<8x8xf32>, vector<16x8xf32>, vector<8x16xf32> -> vector<8x16xf32>
    %cst_124 = arith.constant 0.353553385 : f32
    %290 = vector.broadcast %cst_124 : f32 to vector<8x16xf32>
    %291 = arith.mulf %289, %290 : vector<8x16xf32>
    %292 = vector.broadcast %285 : vector<1x16xf32> to vector<8x16xf32>
    %293 = arith.addf %291, %292 : vector<8x16xf32>
    %294 = vector.extract_strided_slice %273 {offsets = [0, 8], sizes = [8, 8], strides = [1, 1]} : vector<8x32xf32> to vector<8x8xf32>
    %295 = vector.extract_strided_slice %279 {offsets = [0, 8], sizes = [16, 8], strides = [1, 1]} : vector<16x32xf32> to vector<16x8xf32>
    %cst_125 = arith.constant dense<0.000000e+00> : vector<8x16xf32>
    %296 = tpu.matmul %294, %295, %cst_125 {dimension_numbers = #tpu.dot_dimension_numbers<[1], [1], [0], [0], [0, 0, 1, 0], [], []>} : vector<8x8xf32>, vector<16x8xf32>, vector<8x16xf32> -> vector<8x16xf32>
    %cst_126 = arith.constant 0.353553385 : f32
    %297 = vector.broadcast %cst_126 : f32 to vector<8x16xf32>
    %298 = arith.mulf %296, %297 : vector<8x16xf32>
    %299 = vector.broadcast %285 : vector<1x16xf32> to vector<8x16xf32>
    %300 = arith.addf %298, %299 : vector<8x16xf32>
    %301 = vector.extract_strided_slice %273 {offsets = [0, 16], sizes = [8, 8], strides = [1, 1]} : vector<8x32xf32> to vector<8x8xf32>
    %302 = vector.extract_strided_slice %279 {offsets = [0, 16], sizes = [16, 8], strides = [1, 1]} : vector<16x32xf32> to vector<16x8xf32>
    %cst_127 = arith.constant dense<0.000000e+00> : vector<8x16xf32>
    %303 = tpu.matmul %301, %302, %cst_127 {dimension_numbers = #tpu.dot_dimension_numbers<[1], [1], [0], [0], [0, 0, 1, 0], [], []>} : vector<8x8xf32>, vector<16x8xf32>, vector<8x16xf32> -> vector<8x16xf32>
    %cst_128 = arith.constant 0.353553385 : f32
    %304 = vector.broadcast %cst_128 : f32 to vector<8x16xf32>
    %305 = arith.mulf %303, %304 : vector<8x16xf32>
    %306 = vector.broadcast %285 : vector<1x16xf32> to vector<8x16xf32>
    %307 = arith.addf %305, %306 : vector<8x16xf32>
    %308 = vector.extract_strided_slice %273 {offsets = [0, 24], sizes = [8, 8], strides = [1, 1]} : vector<8x32xf32> to vector<8x8xf32>
    %309 = vector.extract_strided_slice %279 {offsets = [0, 24], sizes = [16, 8], strides = [1, 1]} : vector<16x32xf32> to vector<16x8xf32>
    %cst_129 = arith.constant dense<0.000000e+00> : vector<8x16xf32>
    %310 = tpu.matmul %308, %309, %cst_129 {dimension_numbers = #tpu.dot_dimension_numbers<[1], [1], [0], [0], [0, 0, 1, 0], [], []>} : vector<8x8xf32>, vector<16x8xf32>, vector<8x16xf32> -> vector<8x16xf32>
    %cst_130 = arith.constant 0.353553385 : f32
    %311 = vector.broadcast %cst_130 : f32 to vector<8x16xf32>
    %312 = arith.mulf %310, %311 : vector<8x16xf32>
    %313 = vector.broadcast %285 : vector<1x16xf32> to vector<8x16xf32>
    %314 = arith.addf %312, %313 : vector<8x16xf32>
    %315 = tpu.concatenate %293, %300, %307, %314 in 0 : vector<8x16xf32>, vector<8x16xf32>, vector<8x16xf32>, vector<8x16xf32> -> vector<32x16xf32>
    %cst_131 = arith.constant dense<0xFF800000> : vector<32xf32>
    %316 = vector.multi_reduction <maximumf>, %315, %cst_131 [1] : vector<32x16xf32> to vector<32xf32>
    %317 = vector.shape_cast %316 : vector<32xf32> to vector<32x1xf32>
    %318 = vector.broadcast %317 : vector<32x1xf32> to vector<32x16xf32>
    %319 = arith.subf %315, %318 : vector<32x16xf32>
    %320 = math.exp %319 : vector<32x16xf32>
    %cst_132 = arith.constant dense<0.000000e+00> : vector<32xf32>
    %321 = vector.multi_reduction <add>, %320, %cst_132 [1] : vector<32x16xf32> to vector<32xf32>
    %322 = vector.shape_cast %321 : vector<32xf32> to vector<32x1xf32>
    %323 = tpu.reciprocal %322 {approx = true} : vector<32x1xf32> -> vector<32x1xf32>
    %324 = arith.mulf %322, %323 : vector<32x1xf32>
    %cst_133 = arith.constant 2.000000e+00 : f32
    %325 = vector.broadcast %cst_133 : f32 to vector<32x1xf32>
    %326 = arith.subf %325, %324 : vector<32x1xf32>
    %327 = arith.mulf %323, %326 : vector<32x1xf32>
    %328 = vector.broadcast %327 : vector<32x1xf32> to vector<32x16xf32>
    %329 = arith.mulf %320, %328 : vector<32x16xf32>
    %330 = vector.extract_strided_slice %329 {offsets = [0, 0], sizes = [8, 16], strides = [1, 1]} : vector<32x16xf32> to vector<8x16xf32>
    %331 = vector.extract_strided_slice %283 {offsets = [0, 0], sizes = [16, 8], strides = [1, 1]} : vector<16x32xf32> to vector<16x8xf32>
    %cst_134 = arith.constant dense<0.000000e+00> : vector<8x8xf32>
    %332 = tpu.matmul %330, %331, %cst_134 {dimension_numbers = #tpu.dot_dimension_numbers<[1], [0], [0], [1], [0, 0, 1, 1], [], []>} : vector<8x16xf32>, vector<16x8xf32>, vector<8x8xf32> -> vector<8x8xf32>
    %333 = vector.extract_strided_slice %329 {offsets = [8, 0], sizes = [8, 16], strides = [1, 1]} : vector<32x16xf32> to vector<8x16xf32>
    %334 = vector.extract_strided_slice %283 {offsets = [0, 8], sizes = [16, 8], strides = [1, 1]} : vector<16x32xf32> to vector<16x8xf32>
    %cst_135 = arith.constant dense<0.000000e+00> : vector<8x8xf32>
    %335 = tpu.matmul %333, %334, %cst_135 {dimension_numbers = #tpu.dot_dimension_numbers<[1], [0], [0], [1], [0, 0, 1, 1], [], []>} : vector<8x16xf32>, vector<16x8xf32>, vector<8x8xf32> -> vector<8x8xf32>
    %336 = vector.extract_strided_slice %329 {offsets = [16, 0], sizes = [8, 16], strides = [1, 1]} : vector<32x16xf32> to vector<8x16xf32>
    %337 = vector.extract_strided_slice %283 {offsets = [0, 16], sizes = [16, 8], strides = [1, 1]} : vector<16x32xf32> to vector<16x8xf32>
    %cst_136 = arith.constant dense<0.000000e+00> : vector<8x8xf32>
    %338 = tpu.matmul %336, %337, %cst_136 {dimension_numbers = #tpu.dot_dimension_numbers<[1], [0], [0], [1], [0, 0, 1, 1], [], []>} : vector<8x16xf32>, vector<16x8xf32>, vector<8x8xf32> -> vector<8x8xf32>
    %339 = vector.extract_strided_slice %329 {offsets = [24, 0], sizes = [8, 16], strides = [1, 1]} : vector<32x16xf32> to vector<8x16xf32>
    %340 = vector.extract_strided_slice %283 {offsets = [0, 24], sizes = [16, 8], strides = [1, 1]} : vector<16x32xf32> to vector<16x8xf32>
    %cst_137 = arith.constant dense<0.000000e+00> : vector<8x8xf32>
    %341 = tpu.matmul %339, %340, %cst_137 {dimension_numbers = #tpu.dot_dimension_numbers<[1], [0], [0], [1], [0, 0, 1, 1], [], []>} : vector<8x16xf32>, vector<16x8xf32>, vector<8x8xf32> -> vector<8x8xf32>
    %342 = tpu.concatenate %332, %335, %338, %341 in 1 : vector<8x8xf32>, vector<8x8xf32>, vector<8x8xf32>, vector<8x8xf32> -> vector<8x32xf32>
    %c0_138 = arith.constant 0 : index
    %c0_139 = arith.constant 0 : index
    %343 = vector.load %arg19[%c0_138, %c0_139] : memref<32x32xf32, #tpu.memory_space<vmem>>, vector<32x32xf32>
    %cst_140 = arith.constant dense<0.000000e+00> : vector<8x32xf32>
    %344 = tpu.matmul %342, %343, %cst_140 {dimension_numbers = #tpu.dot_dimension_numbers<[1], [0], [0], [1], [0, 0, 1, 1], [], []>} : vector<8x32xf32>, vector<32x32xf32>, vector<8x32xf32> -> vector<8x32xf32>
    %345 = vector.broadcast %286 : vector<1x32xf32> to vector<8x32xf32>
    %346 = arith.addf %344, %345 : vector<8x32xf32>
    %347 = arith.addf %161, %346 : vector<8x32xf32>
    %c20 = arith.constant 20 : index
    %c0_141 = arith.constant 0 : index
    %348 = vector.load %arg7[%c20, %c0_141] : memref<27x32xf32, #tpu.memory_space<vmem>>, vector<1x32xf32>
    %c21 = arith.constant 21 : index
    %c0_142 = arith.constant 0 : index
    %349 = vector.load %arg7[%c21, %c0_142] : memref<27x32xf32, #tpu.memory_space<vmem>>, vector<1x32xf32>
    %cst_143 = arith.constant dense<0.000000e+00> : vector<8xf32>
    %350 = vector.multi_reduction <add>, %347, %cst_143 [1] : vector<8x32xf32> to vector<8xf32>
    %351 = vector.shape_cast %350 : vector<8xf32> to vector<8x1xf32>
    %cst_144 = arith.constant 3.200000e+01 : f32
    %352 = vector.broadcast %cst_144 : f32 to vector<8x1xf32>
    %353 = arith.divf %351, %352 : vector<8x1xf32>
    %354 = vector.broadcast %353 : vector<8x1xf32> to vector<8x32xf32>
    %355 = arith.subf %347, %354 : vector<8x32xf32>
    %356 = arith.mulf %355, %355 : vector<8x32xf32>
    %cst_145 = arith.constant dense<0.000000e+00> : vector<8xf32>
    %357 = vector.multi_reduction <add>, %356, %cst_145 [1] : vector<8x32xf32> to vector<8xf32>
    %358 = vector.shape_cast %357 : vector<8xf32> to vector<8x1xf32>
    %cst_146 = arith.constant 3.200000e+01 : f32
    %359 = vector.broadcast %cst_146 : f32 to vector<8x1xf32>
    %360 = arith.divf %358, %359 : vector<8x1xf32>
    %361 = vector.broadcast %353 : vector<8x1xf32> to vector<8x32xf32>
    %362 = arith.subf %347, %361 : vector<8x32xf32>
    %cst_147 = arith.constant 9.99999974E-6 : f32
    %363 = vector.broadcast %cst_147 : f32 to vector<8x1xf32>
    %364 = arith.addf %360, %363 : vector<8x1xf32>
    %365 = math.rsqrt %364 : vector<8x1xf32>
    %366 = vector.broadcast %365 : vector<8x1xf32> to vector<8x32xf32>
    %367 = arith.mulf %362, %366 : vector<8x32xf32>
    %368 = vector.broadcast %348 : vector<1x32xf32> to vector<8x32xf32>
    %369 = arith.mulf %367, %368 : vector<8x32xf32>
    %370 = vector.broadcast %349 : vector<1x32xf32> to vector<8x32xf32>
    %371 = arith.addf %369, %370 : vector<8x32xf32>
    %c0_148 = arith.constant 0 : index
    %c0_149 = arith.constant 0 : index
    %372 = vector.load %arg20[%c0_148, %c0_149] : memref<64x32xf32, #tpu.memory_space<vmem>>, vector<32x32xf32>
    %cst_150 = arith.constant dense<0.000000e+00> : vector<8x32xf32>
    %373 = tpu.matmul %161, %372, %cst_150 {dimension_numbers = #tpu.dot_dimension_numbers<[1], [0], [0], [1], [0, 0, 1, 1], [], []>} : vector<8x32xf32>, vector<32x32xf32>, vector<8x32xf32> -> vector<8x32xf32>
    %c32_151 = arith.constant 32 : index
    %c0_152 = arith.constant 0 : index
    %374 = vector.load %arg20[%c32_151, %c0_152] : memref<64x32xf32, #tpu.memory_space<vmem>>, vector<32x32xf32>
    %cst_153 = arith.constant dense<0.000000e+00> : vector<8x32xf32>
    %375 = tpu.matmul %266, %374, %cst_153 {dimension_numbers = #tpu.dot_dimension_numbers<[1], [0], [0], [1], [0, 0, 1, 1], [], []>} : vector<8x32xf32>, vector<32x32xf32>, vector<8x32xf32> -> vector<8x32xf32>
    %376 = arith.addf %373, %375 : vector<8x32xf32>
    %c22 = arith.constant 22 : index
    %c0_154 = arith.constant 0 : index
    %377 = vector.load %arg7[%c22, %c0_154] : memref<27x32xf32, #tpu.memory_space<vmem>>, vector<1x32xf32>
    %378 = vector.broadcast %377 : vector<1x32xf32> to vector<8x32xf32>
    %379 = arith.addf %376, %378 : vector<8x32xf32>
    %380 = arith.negf %379 : vector<8x32xf32>
    %381 = math.exp %380 : vector<8x32xf32>
    %cst_155 = arith.constant 1.000000e+00 : f32
    %382 = vector.broadcast %cst_155 : f32 to vector<8x32xf32>
    %383 = arith.addf %382, %381 : vector<8x32xf32>
    %384 = arith.divf %382, %383 : vector<8x32xf32>
    %c0_156 = arith.constant 0 : index
    %c0_157 = arith.constant 0 : index
    %385 = vector.load %arg21[%c0_156, %c0_157] : memref<64x32xf32, #tpu.memory_space<vmem>>, vector<32x32xf32>
    %cst_158 = arith.constant dense<0.000000e+00> : vector<8x32xf32>
    %386 = tpu.matmul %161, %385, %cst_158 {dimension_numbers = #tpu.dot_dimension_numbers<[1], [0], [0], [1], [0, 0, 1, 1], [], []>} : vector<8x32xf32>, vector<32x32xf32>, vector<8x32xf32> -> vector<8x32xf32>
    %c32_159 = arith.constant 32 : index
    %c0_160 = arith.constant 0 : index
    %387 = vector.load %arg21[%c32_159, %c0_160] : memref<64x32xf32, #tpu.memory_space<vmem>>, vector<32x32xf32>
    %cst_161 = arith.constant dense<0.000000e+00> : vector<8x32xf32>
    %388 = tpu.matmul %371, %387, %cst_161 {dimension_numbers = #tpu.dot_dimension_numbers<[1], [0], [0], [1], [0, 0, 1, 1], [], []>} : vector<8x32xf32>, vector<32x32xf32>, vector<8x32xf32> -> vector<8x32xf32>
    %389 = arith.addf %386, %388 : vector<8x32xf32>
    %c23 = arith.constant 23 : index
    %c0_162 = arith.constant 0 : index
    %390 = vector.load %arg7[%c23, %c0_162] : memref<27x32xf32, #tpu.memory_space<vmem>>, vector<1x32xf32>
    %391 = vector.broadcast %390 : vector<1x32xf32> to vector<8x32xf32>
    %392 = arith.addf %389, %391 : vector<8x32xf32>
    %393 = arith.negf %392 : vector<8x32xf32>
    %394 = math.exp %393 : vector<8x32xf32>
    %cst_163 = arith.constant 1.000000e+00 : f32
    %395 = vector.broadcast %cst_163 : f32 to vector<8x32xf32>
    %396 = arith.addf %395, %394 : vector<8x32xf32>
    %397 = arith.divf %395, %396 : vector<8x32xf32>
    %c0_164 = arith.constant 0 : index
    %c0_165 = arith.constant 0 : index
    %398 = vector.load %arg22[%c0_164, %c0_165] : memref<96x64xf32, #tpu.memory_space<vmem>>, vector<32x64xf32>
    %cst_166 = arith.constant dense<0.000000e+00> : vector<8x64xf32>
    %399 = tpu.matmul %161, %398, %cst_166 {dimension_numbers = #tpu.dot_dimension_numbers<[1], [0], [0], [1], [0, 0, 1, 1], [], []>} : vector<8x32xf32>, vector<32x64xf32>, vector<8x64xf32> -> vector<8x64xf32>
    %400 = arith.mulf %384, %266 : vector<8x32xf32>
    %c32_167 = arith.constant 32 : index
    %c0_168 = arith.constant 0 : index
    %401 = vector.load %arg22[%c32_167, %c0_168] : memref<96x64xf32, #tpu.memory_space<vmem>>, vector<32x64xf32>
    %cst_169 = arith.constant dense<0.000000e+00> : vector<8x64xf32>
    %402 = tpu.matmul %400, %401, %cst_169 {dimension_numbers = #tpu.dot_dimension_numbers<[1], [0], [0], [1], [0, 0, 1, 1], [], []>} : vector<8x32xf32>, vector<32x64xf32>, vector<8x64xf32> -> vector<8x64xf32>
    %403 = arith.addf %399, %402 : vector<8x64xf32>
    %404 = arith.mulf %397, %371 : vector<8x32xf32>
    %c64 = arith.constant 64 : index
    %c0_170 = arith.constant 0 : index
    %405 = vector.load %arg22[%c64, %c0_170] : memref<96x64xf32, #tpu.memory_space<vmem>>, vector<32x64xf32>
    %cst_171 = arith.constant dense<0.000000e+00> : vector<8x64xf32>
    %406 = tpu.matmul %404, %405, %cst_171 {dimension_numbers = #tpu.dot_dimension_numbers<[1], [0], [0], [1], [0, 0, 1, 1], [], []>} : vector<8x32xf32>, vector<32x64xf32>, vector<8x64xf32> -> vector<8x64xf32>
    %407 = arith.addf %403, %406 : vector<8x64xf32>
    %c1_172 = arith.constant 1 : index
    %c0_173 = arith.constant 0 : index
    %408 = vector.load %arg8[%c1_172, %c0_173] : memref<2x64xf32, #tpu.memory_space<vmem>>, vector<1x64xf32>
    %409 = vector.broadcast %408 : vector<1x64xf32> to vector<8x64xf32>
    %410 = arith.addf %407, %409 : vector<8x64xf32>
    %cst_174 = arith.constant 0.000000e+00 : f32
    %411 = vector.broadcast %cst_174 : f32 to vector<8x64xf32>
    %412 = arith.maximumf %410, %411 : vector<8x64xf32>
    %c0_175 = arith.constant 0 : index
    %c0_176 = arith.constant 0 : index
    %413 = vector.load %arg23[%c0_175, %c0_176] : memref<64x32xf32, #tpu.memory_space<vmem>>, vector<64x32xf32>
    %cst_177 = arith.constant dense<0.000000e+00> : vector<8x32xf32>
    %414 = tpu.matmul %412, %413, %cst_177 {dimension_numbers = #tpu.dot_dimension_numbers<[1], [0], [0], [1], [0, 0, 1, 1], [], []>} : vector<8x64xf32>, vector<64x32xf32>, vector<8x32xf32> -> vector<8x32xf32>
    %c24 = arith.constant 24 : index
    %c0_178 = arith.constant 0 : index
    %415 = vector.load %arg7[%c24, %c0_178] : memref<27x32xf32, #tpu.memory_space<vmem>>, vector<1x32xf32>
    %416 = vector.broadcast %415 : vector<1x32xf32> to vector<8x32xf32>
    %417 = arith.addf %414, %416 : vector<8x32xf32>
    %418 = arith.addf %161, %266 : vector<8x32xf32>
    %419 = arith.addf %418, %371 : vector<8x32xf32>
    %420 = arith.addf %419, %417 : vector<8x32xf32>
    %c25 = arith.constant 25 : index
    %c0_179 = arith.constant 0 : index
    %421 = vector.load %arg7[%c25, %c0_179] : memref<27x32xf32, #tpu.memory_space<vmem>>, vector<1x32xf32>
    %c26 = arith.constant 26 : index
    %c0_180 = arith.constant 0 : index
    %422 = vector.load %arg7[%c26, %c0_180] : memref<27x32xf32, #tpu.memory_space<vmem>>, vector<1x32xf32>
    %cst_181 = arith.constant dense<0.000000e+00> : vector<8xf32>
    %423 = vector.multi_reduction <add>, %420, %cst_181 [1] : vector<8x32xf32> to vector<8xf32>
    %424 = vector.shape_cast %423 : vector<8xf32> to vector<8x1xf32>
    %cst_182 = arith.constant 3.200000e+01 : f32
    %425 = vector.broadcast %cst_182 : f32 to vector<8x1xf32>
    %426 = arith.divf %424, %425 : vector<8x1xf32>
    %427 = vector.broadcast %426 : vector<8x1xf32> to vector<8x32xf32>
    %428 = arith.subf %420, %427 : vector<8x32xf32>
    %429 = arith.mulf %428, %428 : vector<8x32xf32>
    %cst_183 = arith.constant dense<0.000000e+00> : vector<8xf32>
    %430 = vector.multi_reduction <add>, %429, %cst_183 [1] : vector<8x32xf32> to vector<8xf32>
    %431 = vector.shape_cast %430 : vector<8xf32> to vector<8x1xf32>
    %cst_184 = arith.constant 3.200000e+01 : f32
    %432 = vector.broadcast %cst_184 : f32 to vector<8x1xf32>
    %433 = arith.divf %431, %432 : vector<8x1xf32>
    %434 = vector.broadcast %426 : vector<8x1xf32> to vector<8x32xf32>
    %435 = arith.subf %420, %434 : vector<8x32xf32>
    %cst_185 = arith.constant 9.99999974E-6 : f32
    %436 = vector.broadcast %cst_185 : f32 to vector<8x1xf32>
    %437 = arith.addf %433, %436 : vector<8x1xf32>
    %438 = math.rsqrt %437 : vector<8x1xf32>
    %439 = vector.broadcast %438 : vector<8x1xf32> to vector<8x32xf32>
    %440 = arith.mulf %435, %439 : vector<8x32xf32>
    %441 = vector.broadcast %421 : vector<1x32xf32> to vector<8x32xf32>
    %442 = arith.mulf %440, %441 : vector<8x32xf32>
    %443 = vector.broadcast %422 : vector<1x32xf32> to vector<8x32xf32>
    %444 = arith.addf %442, %443 : vector<8x32xf32>
    %c0_186 = arith.constant 0 : index
    %c0_187 = arith.constant 0 : index
    %c0_188 = arith.constant 0 : index
    %445 = vector.load %arg24[%c0_186, %c0_187, %c0_188] : memref<1x8x32xf32, #tpu.memory_space<vmem>>, vector<1x8x32xf32>
    %446 = vector.shape_cast %445 : vector<1x8x32xf32> to vector<8x32xf32>
    %447 = vector.shape_cast %444 : vector<8x32xf32> to vector<1x8x32xf32>
    tpu.vector_store %arg24[%c0_186, %c0_187, %c0_188], %447 {strides = array<i32>} : memref<1x8x32xf32, #tpu.memory_space<vmem>>, vector<1x8x32xf32>,
    return
  }
  func.func @transform_0(%arg0: i32) -> (i32, i32, i32) {
    %c0_i32 = arith.constant 0 : i32
    %c0_i32_0 = arith.constant 0 : i32
    %c0_i32_1 = arith.constant 0 : i32
    return %arg0, %c0_i32, %c0_i32_0 : i32, i32, i32
  }
  func.func @transform_1(%arg0: i32) -> (i32, i32, i32) {
    %c0_i32 = arith.constant 0 : i32
    %c0_i32_0 = arith.constant 0 : i32
    %c0_i32_1 = arith.constant 0 : i32
    return %arg0, %c0_i32, %c0_i32_0 : i32, i32, i32
  }
  func.func @transform_2(%arg0: i32) -> (i32, i32, i32) {
    %c0_i32 = arith.constant 0 : i32
    %c0_i32_0 = arith.constant 0 : i32
    %c0_i32_1 = arith.constant 0 : i32
    return %arg0, %c0_i32, %c0_i32_0 : i32, i32, i32
  }
  func.func @transform_3(%arg0: i32) -> (i32, i32, i32) {
    %c0_i32 = arith.constant 0 : i32
    %c0_i32_0 = arith.constant 0 : i32
    %c0_i32_1 = arith.constant 0 : i32
    return %arg0, %c0_i32, %c0_i32_0 : i32, i32, i32
  }
  func.func @transform_4(%arg0: i32) -> (i32, i32, i32) {
    %c0_i32 = arith.constant 0 : i32
    %c0_i32_0 = arith.constant 0 : i32
    %c0_i32_1 = arith.constant 0 : i32
    return %arg0, %c0_i32, %c0_i32_0 : i32, i32, i32
  }
  func.func @transform_5(%arg0: i32) -> (i32, i32, i32) {
    %c0_i32 = arith.constant 0 : i32
    %c0_i32_0 = arith.constant 0 : i32
    %c0_i32_1 = arith.constant 0 : i32
    return %arg0, %c0_i32, %c0_i32_0 : i32, i32, i32
  }
  func.func @transform_6(%arg0: i32) -> (i32, i32) {
    %c0_i32 = arith.constant 0 : i32
    %c0_i32_0 = arith.constant 0 : i32
    %c0_i32_1 = arith.constant 0 : i32
    return %c0_i32, %c0_i32_0 : i32, i32
  }
  func.func @transform_7(%arg0: i32) -> (i32, i32) {
    %c0_i32 = arith.constant 0 : i32
    %c0_i32_0 = arith.constant 0 : i32
    %c0_i32_1 = arith.constant 0 : i32
    return %c0_i32, %c0_i32_0 : i32, i32
  }
  func.func @transform_8(%arg0: i32) -> (i32, i32) {
    %c0_i32 = arith.constant 0 : i32
    %c0_i32_0 = arith.constant 0 : i32
    %c0_i32_1 = arith.constant 0 : i32
    return %c0_i32, %c0_i32_0 : i32, i32
  }
  func.func @transform_9(%arg0: i32) -> (i32, i32) {
    %c0_i32 = arith.constant 0 : i32
    %c0_i32_0 = arith.constant 0 : i32
    %c0_i32_1 = arith.constant 0 : i32
    return %c0_i32, %c0_i32_0 : i32, i32
  }
  func.func @transform_10(%arg0: i32) -> (i32, i32) {
    %c0_i32 = arith.constant 0 : i32
    %c0_i32_0 = arith.constant 0 : i32
    %c0_i32_1 = arith.constant 0 : i32
    return %c0_i32, %c0_i32_0 : i32, i32
  }
  func.func @transform_11(%arg0: i32) -> (i32, i32) {
    %c0_i32 = arith.constant 0 : i32
    %c0_i32_0 = arith.constant 0 : i32
    %c0_i32_1 = arith.constant 0 : i32
    return %c0_i32, %c0_i32_0 : i32, i32
  }
  func.func @transform_12(%arg0: i32) -> (i32, i32) {
    %c0_i32 = arith.constant 0 : i32
    %c0_i32_0 = arith.constant 0 : i32
    %c0_i32_1 = arith.constant 0 : i32
    return %c0_i32, %c0_i32_0 : i32, i32
  }
  func.func @transform_13(%arg0: i32) -> (i32, i32) {
    %c0_i32 = arith.constant 0 : i32
    %c0_i32_0 = arith.constant 0 : i32
    %c0_i32_1 = arith.constant 0 : i32
    return %c0_i32, %c0_i32_0 : i32, i32
  }
  func.func @transform_14(%arg0: i32) -> (i32, i32) {
    %c0_i32 = arith.constant 0 : i32
    %c0_i32_0 = arith.constant 0 : i32
    %c0_i32_1 = arith.constant 0 : i32
    return %c0_i32, %c0_i32_0 : i32, i32
  }
  func.func @transform_15(%arg0: i32) -> (i32, i32) {
    %c0_i32 = arith.constant 0 : i32
    %c0_i32_0 = arith.constant 0 : i32
    %c0_i32_1 = arith.constant 0 : i32
    return %c0_i32, %c0_i32_0 : i32, i32
  }
  func.func @transform_16(%arg0: i32) -> (i32, i32) {
    %c0_i32 = arith.constant 0 : i32
    %c0_i32_0 = arith.constant 0 : i32
    %c0_i32_1 = arith.constant 0 : i32
    return %c0_i32, %c0_i32_0 : i32, i32
  }
  func.func @transform_17(%arg0: i32) -> (i32, i32) {
    %c0_i32 = arith.constant 0 : i32
    %c0_i32_0 = arith.constant 0 : i32
    %c0_i32_1 = arith.constant 0 : i32
    return %c0_i32, %c0_i32_0 : i32, i32
  }
  func.func @transform_18(%arg0: i32) -> (i32, i32) {
    %c0_i32 = arith.constant 0 : i32
    %c0_i32_0 = arith.constant 0 : i32
    %c0_i32_1 = arith.constant 0 : i32
    return %c0_i32, %c0_i32_0 : i32, i32
  }
  func.func @transform_19(%arg0: i32) -> (i32, i32) {
    %c0_i32 = arith.constant 0 : i32
    %c0_i32_0 = arith.constant 0 : i32
    %c0_i32_1 = arith.constant 0 : i32
    return %c0_i32, %c0_i32_0 : i32, i32
  }
  func.func @transform_20(%arg0: i32) -> (i32, i32) {
    %c0_i32 = arith.constant 0 : i32
    %c0_i32_0 = arith.constant 0 : i32
    %c0_i32_1 = arith.constant 0 : i32
    return %c0_i32, %c0_i32_0 : i32, i32
  }
  func.func @transform_21(%arg0: i32) -> (i32, i32) {
    %c0_i32 = arith.constant 0 : i32
    %c0_i32_0 = arith.constant 0 : i32
    %c0_i32_1 = arith.constant 0 : i32
    return %c0_i32, %c0_i32_0 : i32, i32
  }
  func.func @transform_22(%arg0: i32) -> (i32, i32) {
    %c0_i32 = arith.constant 0 : i32
    %c0_i32_0 = arith.constant 0 : i32
    %c0_i32_1 = arith.constant 0 : i32
    return %c0_i32, %c0_i32_0 : i32, i32
  }
  func.func @transform_23(%arg0: i32) -> (i32, i32, i32) {
    %c0_i32 = arith.constant 0 : i32
    %c0_i32_0 = arith.constant 0 : i32
    %c0_i32_1 = arith.constant 0 : i32
    return %arg0, %c0_i32, %c0_i32_0 : i32, i32, i32
  }
}

</mosaic_0001>

<llo_original>
// kernel: trans_ikg_decoder_layer.1
$region0: #{trans_ikg_decoder_layer.1}
  #allocation0 [shape = 'u32[]', space=smem, size = 0x4, offset = 0x4, fixed_abs, tag = 'smem constant byte address 0x4 - core index']
  #allocation1 [shape = 'u32[72,128]{1,0:T(1,128)}', space=vmem, size = 0x9000, scoped, tag = 'internal scratch']
  %s0 = inlined_call_operand.vmem [shape: f32[2,8,32], index: 0, kind: input, shape index: {}]
  %s1 = inlined_call_operand.vmem [shape: f32[2,1,32], index: 1, kind: input, shape index: {}]
  %s2 = inlined_call_operand.vmem [shape: f32[2,8,32], index: 2, kind: input, shape index: {}]
  %s3 = inlined_call_operand.vmem [shape: f32[2,1,8], index: 3, kind: input, shape index: {}]
  %s4 = inlined_call_operand.vmem [shape: f32[2,16,32], index: 4, kind: input, shape index: {}]
  %s5 = inlined_call_operand.vmem [shape: f32[2,1,16], index: 5, kind: input, shape index: {}]
  %s6 = inlined_call_operand.vmem [shape: f32[27,32], index: 6, kind: input, shape index: {}]
  %s7 = inlined_call_operand.vmem [shape: f32[2,64], index: 7, kind: input, shape index: {}]
  %s8 = inlined_call_operand.vmem [shape: f32[64,32], index: 8, kind: input, shape index: {}]
  %s9 = inlined_call_operand.vmem [shape: f32[64,64], index: 9, kind: input, shape index: {}]
  %s10 = inlined_call_operand.vmem [shape: f32[64,32], index: 10, kind: input, shape index: {}]
  %s11 = inlined_call_operand.vmem [shape: f32[32,96], index: 11, kind: input, shape index: {}]
  %s12 = inlined_call_operand.vmem [shape: f32[32,32], index: 12, kind: input, shape index: {}]
  %s13 = inlined_call_operand.vmem [shape: f32[32,32], index: 13, kind: input, shape index: {}]
  %s14 = inlined_call_operand.vmem [shape: f32[32,64], index: 14, kind: input, shape index: {}]
  %s15 = inlined_call_operand.vmem [shape: f32[32,32], index: 15, kind: input, shape index: {}]
  %s16 = inlined_call_operand.vmem [shape: f32[32,32], index: 16, kind: input, shape index: {}]
  %s17 = inlined_call_operand.vmem [shape: f32[32,64], index: 17, kind: input, shape index: {}]
  %s18 = inlined_call_operand.vmem [shape: f32[32,32], index: 18, kind: input, shape index: {}]
  %s19 = inlined_call_operand.vmem [shape: f32[64,32], index: 19, kind: input, shape index: {}]
  %s20 = inlined_call_operand.vmem [shape: f32[64,32], index: 20, kind: input, shape index: {}]
  %s21 = inlined_call_operand.vmem [shape: f32[96,64], index: 21, kind: input, shape index: {}]
  %s22 = inlined_call_operand.vmem [shape: f32[64,32], index: 22, kind: input, shape index: {}]
  %s23 = inlined_call_operand.hbm [shape: f32[2,8,32], index: 23, kind: output, shape index: {}]
  %s24 = sld [smem:[#allocation0]]
  $region125: #{trans_ikg_decoder_layer.1} parent=0
    _
  %s26 = ssub.s32 1, %s24
  %s27 = scalar_select 0, %s26, %s24
  $region1: #{trans_ikg_decoder_layer.1} parent=0
    #allocation2 [shape = 'u8[8192]{0}', space=vmem, size = 0x2000, scoped, tag = 'output window, operand 0']
    #allocation3 [shape = 's32[2]{0}', space=sflag, size = 0x8, scoped, tag = 'scoped memory for trans_ikg_decoder_layer.1']
    %28 = vsyncpa [#allocation3], 0
    %s29 = scalar_lea.sflag [#allocation3], 1
    %30 = vsyncpa %s29, 0
    loop: start=0, step=1, limit=4
    $region2: #{trans_ikg_decoder_layer.1} parent=1 // loop_pre_header
      _
    $region3: #{trans_ikg_decoder_layer.1} parent=1 // loop_header
      %s32 = sphi 0, %s36
      %p33 = scmp.ge.s32.totalorder %s32, 4
      %s42 = sphi 0, %s44
      %s45 = sphi 0, %s42
      %s46 = sphi 0, %s45
      %s62 = sphi 0, %s46
      %s68 = sphi 0, %s70
      %s71 = sphi 0, %s68
      %s72 = sphi 0, %s71
      %s88 = sphi 0, %s72
      %s94 = sphi 0, %s96
      %s97 = sphi 0, %s94
      %s98 = sphi 0, %s97
      %s114 = sphi 0, %s98
      %s120 = sphi 0, %s122
      %s123 = sphi 0, %s120
      %s124 = sphi 0, %s123
      %s140 = sphi 0, %s124
      %s146 = sphi 0, %s148
      %s149 = sphi 0, %s146
      %s150 = sphi 0, %s149
      %s166 = sphi 0, %s150
      %s172 = sphi 0, %s174
      %s175 = sphi 0, %s172
      %s176 = sphi 0, %s175
      %s192 = sphi 0, %s176
      %s196 = sphi 0, %s196
      %s198 = sphi 0, %s196
      %s199 = sphi 0, %s198
      %s213 = sphi 0, %s199
      %s217 = sphi 0, %s217
      %s219 = sphi 0, %s217
      %s220 = sphi 0, %s219
      %s234 = sphi 0, %s220
      %s238 = sphi 0, %s238
      %s240 = sphi 0, %s238
      %s241 = sphi 0, %s240
      %s255 = sphi 0, %s241
      %s259 = sphi 0, %s259
      %s261 = sphi 0, %s259
      %s262 = sphi 0, %s261
      %s276 = sphi 0, %s262
      %s280 = sphi 0, %s280
      %s282 = sphi 0, %s280
      %s283 = sphi 0, %s282
      %s297 = sphi 0, %s283
      %s301 = sphi 0, %s301
      %s303 = sphi 0, %s301
      %s304 = sphi 0, %s303
      %s318 = sphi 0, %s304
      %s322 = sphi 0, %s322
      %s324 = sphi 0, %s322
      %s325 = sphi 0, %s324
      %s339 = sphi 0, %s325
      %s343 = sphi 0, %s343
      %s345 = sphi 0, %s343
      %s346 = sphi 0, %s345
      %s360 = sphi 0, %s346
      %s364 = sphi 0, %s364
      %s366 = sphi 0, %s364
      %s367 = sphi 0, %s366
      %s381 = sphi 0, %s367
      %s385 = sphi 0, %s385
      %s387 = sphi 0, %s385
      %s388 = sphi 0, %s387
      %s402 = sphi 0, %s388
      %s406 = sphi 0, %s406
      %s408 = sphi 0, %s406
      %s409 = sphi 0, %s408
      %s423 = sphi 0, %s409
      %s427 = sphi 0, %s427
      %s429 = sphi 0, %s427
      %s430 = sphi 0, %s429
      %s444 = sphi 0, %s430
      %s448 = sphi 0, %s448
      %s450 = sphi 0, %s448
      %s451 = sphi 0, %s450
      %s465 = sphi 0, %s451
      %s469 = sphi 0, %s469
      %s471 = sphi 0, %s469
      %s472 = sphi 0, %s471
      %s486 = sphi 0, %s472
      %s490 = sphi 0, %s490
      %s492 = sphi 0, %s490
      %s493 = sphi 0, %s492
      %s507 = sphi 0, %s493
      %s511 = sphi 0, %s511
      %s513 = sphi 0, %s511
      %s514 = sphi 0, %s513
      %s528 = sphi 0, %s514
      %s532 = sphi 0, %s532
      %s534 = sphi 0, %s532
      %s535 = sphi 0, %s534
      %s549 = sphi 0, %s535
      %s555 = sphi 0, %s557
      %s558 = sphi 0, %s555
      %s559 = sphi 0, %s558
      %s575 = sphi 0, %s559
    $region4: #{trans_ikg_decoder_layer.1} parent=1 // loop_header_branch
      %35 = sbr.rel (%p33) target = $region8
    $region5: #{trans_ikg_decoder_layer.1} parent=1 // loop_body
      %s37 = ssub.s32 %s32, 1
      %s38 = ssub.s32 %s32, 2
      %s39 = sadd.s32 %s32, 1
      %s40 = ssub.s32 %s32, %s39
      %p41 = scmp.eq.s32.totalorder %s40, 0
      %s43 = sadd.s32 %s42, 1
      %s44 = scalar_select %p41, %s42, %s43
      %p47 = pneg %p41
      %p48 = scmp.eq.s32.totalorder %s32, 1
      %p49 = por %p47, %p48
      %p50 = scmp.ne.s32.totalorder %s42, %s45
      %p51 = scmp.eq.s32.totalorder %s32, 0
      %p52 = por %p50, %p51
      %p53 = scmp.ne.s32.totalorder %s42, %s45
      %p54 = scmp.eq.s32.totalorder %s37, 1
      %p55 = por %p53, %p54
      %p56 = scmp.ne.s32.totalorder %s45, %s46
      %p57 = scmp.eq.s32.totalorder %s37, 0
      %p58 = por %p56, %p57
      %p59 = scmp.ne.s32.totalorder %s45, %s46
      %p60 = scmp.eq.s32.totalorder %s38, 1
      %p61 = por %p59, %p60
      %p63 = scmp.ne.s32.totalorder %s46, %s62
      %p64 = scmp.eq.s32.totalorder %s38, 0
      %p65 = por %p63, %p64
      %s66 = ssub.s32 %s32, %s39
      %p67 = scmp.eq.s32.totalorder %s66, 0
      %s69 = sadd.s32 %s68, 1
      %s70 = scalar_select %p67, %s68, %s69
      %p73 = pneg %p67
      %p74 = scmp.eq.s32.totalorder %s32, 1
      %p75 = por %p73, %p74
      %p76 = scmp.ne.s32.totalorder %s68, %s71
      %p77 = scmp.eq.s32.totalorder %s32, 0
      %p78 = por %p76, %p77
      %p79 = scmp.ne.s32.totalorder %s68, %s71
      %p80 = scmp.eq.s32.totalorder %s37, 1
      %p81 = por %p79, %p80
      %p82 = scmp.ne.s32.totalorder %s71, %s72
      %p83 = scmp.eq.s32.totalorder %s37, 0
      %p84 = por %p82, %p83
      %p85 = scmp.ne.s32.totalorder %s71, %s72
      %p86 = scmp.eq.s32.totalorder %s38, 1
      %p87 = por %p85, %p86
      %p89 = scmp.ne.s32.totalorder %s72, %s88
      %p90 = scmp.eq.s32.totalorder %s38, 0
      %p91 = por %p89, %p90
      %s92 = ssub.s32 %s32, %s39
      %p93 = scmp.eq.s32.totalorder %s92, 0
      %s95 = sadd.s32 %s94, 1
      %s96 = scalar_select %p93, %s94, %s95
      %p99 = pneg %p93
      %p100 = scmp.eq.s32.totalorder %s32, 1
      %p101 = por %p99, %p100
      %p102 = scmp.ne.s32.totalorder %s94, %s97
      %p103 = scmp.eq.s32.totalorder %s32, 0
      %p104 = por %p102, %p103
      %p105 = scmp.ne.s32.totalorder %s94, %s97
      %p106 = scmp.eq.s32.totalorder %s37, 1
      %p107 = por %p105, %p106
      %p108 = scmp.ne.s32.totalorder %s97, %s98
      %p109 = scmp.eq.s32.totalorder %s37, 0
      %p110 = por %p108, %p109
      %p111 = scmp.ne.s32.totalorder %s97, %s98
      %p112 = scmp.eq.s32.totalorder %s38, 1
      %p113 = por %p111, %p112
      %p115 = scmp.ne.s32.totalorder %s98, %s114
      %p116 = scmp.eq.s32.totalorder %s38, 0
      %p117 = por %p115, %p116
      %s118 = ssub.s32 %s32, %s39
      %p119 = scmp.eq.s32.totalorder %s118, 0
      %s121 = sadd.s32 %s120, 1
      %s122 = scalar_select %p119, %s120, %s121
      %p125 = pneg %p119
      %p126 = scmp.eq.s32.totalorder %s32, 1
      %p127 = por %p125, %p126
      %p128 = scmp.ne.s32.totalorder %s120, %s123
      %p129 = scmp.eq.s32.totalorder %s32, 0
      %p130 = por %p128, %p129
      %p131 = scmp.ne.s32.totalorder %s120, %s123
      %p132 = scmp.eq.s32.totalorder %s37, 1
      %p133 = por %p131, %p132
      %p134 = scmp.ne.s32.totalorder %s123, %s124
      %p135 = scmp.eq.s32.totalorder %s37, 0
      %p136 = por %p134, %p135
      %p137 = scmp.ne.s32.totalorder %s123, %s124
      %p138 = scmp.eq.s32.totalorder %s38, 1
      %p139 = por %p137, %p138
      %p141 = scmp.ne.s32.totalorder %s124, %s140
      %p142 = scmp.eq.s32.totalorder %s38, 0
      %p143 = por %p141, %p142
      %s144 = ssub.s32 %s32, %s39
      %p145 = scmp.eq.s32.totalorder %s144, 0
      %s147 = sadd.s32 %s146, 1
      %s148 = scalar_select %p145, %s146, %s147
      %p151 = pneg %p145
      %p152 = scmp.eq.s32.totalorder %s32, 1
      %p153 = por %p151, %p152
      %p154 = scmp.ne.s32.totalorder %s146, %s149
      %p155 = scmp.eq.s32.totalorder %s32, 0
      %p156 = por %p154, %p155
      %p157 = scmp.ne.s32.totalorder %s146, %s149
      %p158 = scmp.eq.s32.totalorder %s37, 1
      %p159 = por %p157, %p158
      %p160 = scmp.ne.s32.totalorder %s149, %s150
      %p161 = scmp.eq.s32.totalorder %s37, 0
      %p162 = por %p160, %p161
      %p163 = scmp.ne.s32.totalorder %s149, %s150
      %p164 = scmp.eq.s32.totalorder %s38, 1
      %p165 = por %p163, %p164
      %p167 = scmp.ne.s32.totalorder %s150, %s166
      %p168 = scmp.eq.s32.totalorder %s38, 0
      %p169 = por %p167, %p168
      %s170 = ssub.s32 %s32, %s39
      %p171 = scmp.eq.s32.totalorder %s170, 0
      %s173 = sadd.s32 %s172, 1
      %s174 = scalar_select %p171, %s172, %s173
      %p177 = pneg %p171
      %p178 = scmp.eq.s32.totalorder %s32, 1
      %p179 = por %p177, %p178
      %p180 = scmp.ne.s32.totalorder %s172, %s175
      %p181 = scmp.eq.s32.totalorder %s32, 0
      %p182 = por %p180, %p181
      %p183 = scmp.ne.s32.totalorder %s172, %s175
      %p184 = scmp.eq.s32.totalorder %s37, 1
      %p185 = por %p183, %p184
      %p186 = scmp.ne.s32.totalorder %s175, %s176
      %p187 = scmp.eq.s32.totalorder %s37, 0
      %p188 = por %p186, %p187
      %p189 = scmp.ne.s32.totalorder %s175, %s176
      %p190 = scmp.eq.s32.totalorder %s38, 1
      %p191 = por %p189, %p190
      %p193 = scmp.ne.s32.totalorder %s176, %s192
      %p194 = scmp.eq.s32.totalorder %s38, 0
      %p195 = por %p193, %p194
      %s197 = sadd.s32 %s196, 1
      %p200 = scmp.eq.s32.totalorder %s32, 1
      %p201 = scmp.ne.s32.totalorder %s196, %s198
      %p202 = scmp.eq.s32.totalorder %s32, 0
      %p203 = por %p201, %p202
      %p204 = scmp.ne.s32.totalorder %s196, %s198
      %p205 = scmp.eq.s32.totalorder %s37, 1
      %p206 = por %p204, %p205
      %p207 = scmp.ne.s32.totalorder %s198, %s199
      %p208 = scmp.eq.s32.totalorder %s37, 0
      %p209 = por %p207, %p208
      %p210 = scmp.ne.s32.totalorder %s198, %s199
      %p211 = scmp.eq.s32.totalorder %s38, 1
      %p212 = por %p210, %p211
      %p214 = scmp.ne.s32.totalorder %s199, %s213
      %p215 = scmp.eq.s32.totalorder %s38, 0
      %p216 = por %p214, %p215
      %s218 = sadd.s32 %s217, 1
      %p221 = scmp.eq.s32.totalorder %s32, 1
      %p222 = scmp.ne.s32.totalorder %s217, %s219
      %p223 = scmp.eq.s32.totalorder %s32, 0
      %p224 = por %p222, %p223
      %p225 = scmp.ne.s32.totalorder %s217, %s219
      %p226 = scmp.eq.s32.totalorder %s37, 1
      %p227 = por %p225, %p226
      %p228 = scmp.ne.s32.totalorder %s219, %s220
      %p229 = scmp.eq.s32.totalorder %s37, 0
      %p230 = por %p228, %p229
      %p231 = scmp.ne.s32.totalorder %s219, %s220
      %p232 = scmp.eq.s32.totalorder %s38, 1
      %p233 = por %p231, %p232
      %p235 = scmp.ne.s32.totalorder %s220, %s234
      %p236 = scmp.eq.s32.totalorder %s38, 0
      %p237 = por %p235, %p236
      %s239 = sadd.s32 %s238, 1
      %p242 = scmp.eq.s32.totalorder %s32, 1
      %p243 = scmp.ne.s32.totalorder %s238, %s240
      %p244 = scmp.eq.s32.totalorder %s32, 0
      %p245 = por %p243, %p244
      %p246 = scmp.ne.s32.totalorder %s238, %s240
      %p247 = scmp.eq.s32.totalorder %s37, 1
      %p248 = por %p246, %p247
      %p249 = scmp.ne.s32.totalorder %s240, %s241
      %p250 = scmp.eq.s32.totalorder %s37, 0
      %p251 = por %p249, %p250
      %p252 = scmp.ne.s32.totalorder %s240, %s241
      %p253 = scmp.eq.s32.totalorder %s38, 1
      %p254 = por %p252, %p253
      %p256 = scmp.ne.s32.totalorder %s241, %s255
      %p257 = scmp.eq.s32.totalorder %s38, 0
      %p258 = por %p256, %p257
      %s260 = sadd.s32 %s259, 1
      %p263 = scmp.eq.s32.totalorder %s32, 1
      %p264 = scmp.ne.s32.totalorder %s259, %s261
      %p265 = scmp.eq.s32.totalorder %s32, 0
      %p266 = por %p264, %p265
      %p267 = scmp.ne.s32.totalorder %s259, %s261
      %p268 = scmp.eq.s32.totalorder %s37, 1
      %p269 = por %p267, %p268
      %p270 = scmp.ne.s32.totalorder %s261, %s262
      %p271 = scmp.eq.s32.totalorder %s37, 0
      %p272 = por %p270, %p271
      %p273 = scmp.ne.s32.totalorder %s261, %s262
      %p274 = scmp.eq.s32.totalorder %s38, 1
      %p275 = por %p273, %p274
      %p277 = scmp.ne.s32.totalorder %s262, %s276
      %p278 = scmp.eq.s32.totalorder %s38, 0
      %p279 = por %p277, %p278
      %s281 = sadd.s32 %s280, 1
      %p284 = scmp.eq.s32.totalorder %s32, 1
      %p285 = scmp.ne.s32.totalorder %s280, %s282
      %p286 = scmp.eq.s32.totalorder %s32, 0
      %p287 = por %p285, %p286
      %p288 = scmp.ne.s32.totalorder %s280, %s282
      %p289 = scmp.eq.s32.totalorder %s37, 1
      %p290 = por %p288, %p289
      %p291 = scmp.ne.s32.totalorder %s282, %s283
      %p292 = scmp.eq.s32.totalorder %s37, 0
      %p293 = por %p291, %p292
      %p294 = scmp.ne.s32.totalorder %s282, %s283
      %p295 = scmp.eq.s32.totalorder %s38, 1
      %p296 = por %p294, %p295
      %p298 = scmp.ne.s32.totalorder %s283, %s297
      %p299 = scmp.eq.s32.totalorder %s38, 0
      %p300 = por %p298, %p299
      %s302 = sadd.s32 %s301, 1
      %p305 = scmp.eq.s32.totalorder %s32, 1
      %p306 = scmp.ne.s32.totalorder %s301, %s303
      %p307 = scmp.eq.s32.totalorder %s32, 0
      %p308 = por %p306, %p307
      %p309 = scmp.ne.s32.totalorder %s301, %s303
      %p310 = scmp.eq.s32.totalorder %s37, 1
      %p311 = por %p309, %p310
      %p312 = scmp.ne.s32.totalorder %s303, %s304
      %p313 = scmp.eq.s32.totalorder %s37, 0
      %p314 = por %p312, %p313
      %p315 = scmp.ne.s32.totalorder %s303, %s304
      %p316 = scmp.eq.s32.totalorder %s38, 1
      %p317 = por %p315, %p316
      %p319 = scmp.ne.s32.totalorder %s304, %s318
      %p320 = scmp.eq.s32.totalorder %s38, 0
      %p321 = por %p319, %p320
      %s323 = sadd.s32 %s322, 1
      %p326 = scmp.eq.s32.totalorder %s32, 1
      %p327 = scmp.ne.s32.totalorder %s322, %s324
      %p328 = scmp.eq.s32.totalorder %s32, 0
      %p329 = por %p327, %p328
      %p330 = scmp.ne.s32.totalorder %s322, %s324
      %p331 = scmp.eq.s32.totalorder %s37, 1
      %p332 = por %p330, %p331
      %p333 = scmp.ne.s32.totalorder %s324, %s325
      %p334 = scmp.eq.s32.totalorder %s37, 0
      %p335 = por %p333, %p334
      %p336 = scmp.ne.s32.totalorder %s324, %s325
      %p337 = scmp.eq.s32.totalorder %s38, 1
      %p338 = por %p336, %p337
      %p340 = scmp.ne.s32.totalorder %s325, %s339
      %p341 = scmp.eq.s32.totalorder %s38, 0
      %p342 = por %p340, %p341
      %s344 = sadd.s32 %s343, 1
      %p347 = scmp.eq.s32.totalorder %s32, 1
      %p348 = scmp.ne.s32.totalorder %s343, %s345
      %p349 = scmp.eq.s32.totalorder %s32, 0
      %p350 = por %p348, %p349
      %p351 = scmp.ne.s32.totalorder %s343, %s345
      %p352 = scmp.eq.s32.totalorder %s37, 1
      %p353 = por %p351, %p352
      %p354 = scmp.ne.s32.totalorder %s345, %s346
      %p355 = scmp.eq.s32.totalorder %s37, 0
      %p356 = por %p354, %p355
      %p357 = scmp.ne.s32.totalorder %s345, %s346
      %p358 = scmp.eq.s32.totalorder %s38, 1
      %p359 = por %p357, %p358
      %p361 = scmp.ne.s32.totalorder %s346, %s360
      %p362 = scmp.eq.s32.totalorder %s38, 0
      %p363 = por %p361, %p362
      %s365 = sadd.s32 %s364, 1
      %p368 = scmp.eq.s32.totalorder %s32, 1
      %p369 = scmp.ne.s32.totalorder %s364, %s366
      %p370 = scmp.eq.s32.totalorder %s32, 0
      %p371 = por %p369, %p370
      %p372 = scmp.ne.s32.totalorder %s364, %s366
      %p373 = scmp.eq.s32.totalorder %s37, 1
      %p374 = por %p372, %p373
      %p375 = scmp.ne.s32.totalorder %s366, %s367
      %p376 = scmp.eq.s32.totalorder %s37, 0
      %p377 = por %p375, %p376
      %p378 = scmp.ne.s32.totalorder %s366, %s367
      %p379 = scmp.eq.s32.totalorder %s38, 1
      %p380 = por %p378, %p379
      %p382 = scmp.ne.s32.totalorder %s367, %s381
      %p383 = scmp.eq.s32.totalorder %s38, 0
      %p384 = por %p382, %p383
      %s386 = sadd.s32 %s385, 1
      %p389 = scmp.eq.s32.totalorder %s32, 1
      %p390 = scmp.ne.s32.totalorder %s385, %s387
      %p391 = scmp.eq.s32.totalorder %s32, 0
      %p392 = por %p390, %p391
      %p393 = scmp.ne.s32.totalorder %s385, %s387
      %p394 = scmp.eq.s32.totalorder %s37, 1
      %p395 = por %p393, %p394
      %p396 = scmp.ne.s32.totalorder %s387, %s388
      %p397 = scmp.eq.s32.totalorder %s37, 0
      %p398 = por %p396, %p397
      %p399 = scmp.ne.s32.totalorder %s387, %s388
      %p400 = scmp.eq.s32.totalorder %s38, 1
      %p401 = por %p399, %p400
      %p403 = scmp.ne.s32.totalorder %s388, %s402
      %p404 = scmp.eq.s32.totalorder %s38, 0
      %p405 = por %p403, %p404
      %s407 = sadd.s32 %s406, 1
      %p410 = scmp.eq.s32.totalorder %s32, 1
      %p411 = scmp.ne.s32.totalorder %s406, %s408
      %p412 = scmp.eq.s32.totalorder %s32, 0
      %p413 = por %p411, %p412
      %p414 = scmp.ne.s32.totalorder %s406, %s408
      %p415 = scmp.eq.s32.totalorder %s37, 1
      %p416 = por %p414, %p415
      %p417 = scmp.ne.s32.totalorder %s408, %s409
      %p418 = scmp.eq.s32.totalorder %s37, 0
      %p419 = por %p417, %p418
      %p420 = scmp.ne.s32.totalorder %s408, %s409
      %p421 = scmp.eq.s32.totalorder %s38, 1
      %p422 = por %p420, %p421
      %p424 = scmp.ne.s32.totalorder %s409, %s423
      %p425 = scmp.eq.s32.totalorder %s38, 0
      %p426 = por %p424, %p425
      %s428 = sadd.s32 %s427, 1
      %p431 = scmp.eq.s32.totalorder %s32, 1
      %p432 = scmp.ne.s32.totalorder %s427, %s429
      %p433 = scmp.eq.s32.totalorder %s32, 0
      %p434 = por %p432, %p433
      %p435 = scmp.ne.s32.totalorder %s427, %s429
      %p436 = scmp.eq.s32.totalorder %s37, 1
      %p437 = por %p435, %p436
      %p438 = scmp.ne.s32.totalorder %s429, %s430
      %p439 = scmp.eq.s32.totalorder %s37, 0
      %p440 = por %p438, %p439
      %p441 = scmp.ne.s32.totalorder %s429, %s430
      %p442 = scmp.eq.s32.totalorder %s38, 1
      %p443 = por %p441, %p442
      %p445 = scmp.ne.s32.totalorder %s430, %s444
      %p446 = scmp.eq.s32.totalorder %s38, 0
      %p447 = por %p445, %p446
      %s449 = sadd.s32 %s448, 1
      %p452 = scmp.eq.s32.totalorder %s32, 1
      %p453 = scmp.ne.s32.totalorder %s448, %s450
      %p454 = scmp.eq.s32.totalorder %s32, 0
      %p455 = por %p453, %p454
      %p456 = scmp.ne.s32.totalorder %s448, %s450
      %p457 = scmp.eq.s32.totalorder %s37, 1
      %p458 = por %p456, %p457
      %p459 = scmp.ne.s32.totalorder %s450, %s451
      %p460 = scmp.eq.s32.totalorder %s37, 0
      %p461 = por %p459, %p460
      %p462 = scmp.ne.s32.totalorder %s450, %s451
      %p463 = scmp.eq.s32.totalorder %s38, 1
      %p464 = por %p462, %p463
      %p466 = scmp.ne.s32.totalorder %s451, %s465
      %p467 = scmp.eq.s32.totalorder %s38, 0
      %p468 = por %p466, %p467
      %s470 = sadd.s32 %s469, 1
      %p473 = scmp.eq.s32.totalorder %s32, 1
      %p474 = scmp.ne.s32.totalorder %s469, %s471
      %p475 = scmp.eq.s32.totalorder %s32, 0
      %p476 = por %p474, %p475
      %p477 = scmp.ne.s32.totalorder %s469, %s471
      %p478 = scmp.eq.s32.totalorder %s37, 1
      %p479 = por %p477, %p478
      %p480 = scmp.ne.s32.totalorder %s471, %s472
      %p481 = scmp.eq.s32.totalorder %s37, 0
      %p482 = por %p480, %p481
      %p483 = scmp.ne.s32.totalorder %s471, %s472
      %p484 = scmp.eq.s32.totalorder %s38, 1
      %p485 = por %p483, %p484
      %p487 = scmp.ne.s32.totalorder %s472, %s486
      %p488 = scmp.eq.s32.totalorder %s38, 0
      %p489 = por %p487, %p488
      %s491 = sadd.s32 %s490, 1
      %p494 = scmp.eq.s32.totalorder %s32, 1
      %p495 = scmp.ne.s32.totalorder %s490, %s492
      %p496 = scmp.eq.s32.totalorder %s32, 0
      %p497 = por %p495, %p496
      %p498 = scmp.ne.s32.totalorder %s490, %s492
      %p499 = scmp.eq.s32.totalorder %s37, 1
      %p500 = por %p498, %p499
      %p501 = scmp.ne.s32.totalorder %s492, %s493
      %p502 = scmp.eq.s32.totalorder %s37, 0
      %p503 = por %p501, %p502
      %p504 = scmp.ne.s32.totalorder %s492, %s493
      %p505 = scmp.eq.s32.totalorder %s38, 1
      %p506 = por %p504, %p505
      %p508 = scmp.ne.s32.totalorder %s493, %s507
      %p509 = scmp.eq.s32.totalorder %s38, 0
      %p510 = por %p508, %p509
      %s512 = sadd.s32 %s511, 1
      %p515 = scmp.eq.s32.totalorder %s32, 1
      %p516 = scmp.ne.s32.totalorder %s511, %s513
      %p517 = scmp.eq.s32.totalorder %s32, 0
      %p518 = por %p516, %p517
      %p519 = scmp.ne.s32.totalorder %s511, %s513
      %p520 = scmp.eq.s32.totalorder %s37, 1
      %p521 = por %p519, %p520
      %p522 = scmp.ne.s32.totalorder %s513, %s514
      %p523 = scmp.eq.s32.totalorder %s37, 0
      %p524 = por %p522, %p523
      %p525 = scmp.ne.s32.totalorder %s513, %s514
      %p526 = scmp.eq.s32.totalorder %s38, 1
      %p527 = por %p525, %p526
      %p529 = scmp.ne.s32.totalorder %s514, %s528
      %p530 = scmp.eq.s32.totalorder %s38, 0
      %p531 = por %p529, %p530
      %s533 = sadd.s32 %s532, 1
      %p536 = scmp.eq.s32.totalorder %s32, 1
      %p537 = scmp.ne.s32.totalorder %s532, %s534
      %p538 = scmp.eq.s32.totalorder %s32, 0
      %p539 = por %p537, %p538
      %p540 = scmp.ne.s32.totalorder %s532, %s534
      %p541 = scmp.eq.s32.totalorder %s37, 1
      %p542 = por %p540, %p541
      %p543 = scmp.ne.s32.totalorder %s534, %s535
      %p544 = scmp.eq.s32.totalorder %s37, 0
      %p545 = por %p543, %p544
      %p546 = scmp.ne.s32.totalorder %s534, %s535
      %p547 = scmp.eq.s32.totalorder %s38, 1
      %p548 = por %p546, %p547
      %p550 = scmp.ne.s32.totalorder %s535, %s549
      %p551 = scmp.eq.s32.totalorder %s38, 0
      %p552 = por %p550, %p551
      %s553 = ssub.s32 %s32, %s39
      %p554 = scmp.eq.s32.totalorder %s553, 0
      %s556 = sadd.s32 %s555, 1
      %s557 = scalar_select %p554, %s555, %s556
      %p560 = pneg %p554
      %p561 = scmp.eq.s32.totalorder %s32, 1
      %p562 = por %p560, %p561
      %p563 = scmp.ne.s32.totalorder %s555, %s558
      %p564 = scmp.eq.s32.totalorder %s32, 0
      %p565 = por %p563, %p564
      %p566 = scmp.ne.s32.totalorder %s555, %s558
      %p567 = scmp.eq.s32.totalorder %s37, 1
      %p568 = por %p566, %p567
      %p569 = scmp.ne.s32.totalorder %s558, %s559
      %p570 = scmp.eq.s32.totalorder %s37, 0
      %p571 = por %p569, %p570
      %p572 = scmp.ne.s32.totalorder %s558, %s559
      %p573 = scmp.eq.s32.totalorder %s38, 1
      %p574 = por %p572, %p573
      %p576 = scmp.ne.s32.totalorder %s559, %s575
      %p577 = scmp.eq.s32.totalorder %s38, 0
      %p578 = por %p576, %p577
      %p579 = scmp.le.s32.totalorder 1, %s32
      %p580 = scmp.lt.s32.totalorder %s32, 3
      %p581 = pnand %p579, %p580
      %p582 = pneg %p581
      // Predicated region
      $region9: #{trans_ikg_decoder_layer.1} parent=5 // pred_check
        _
      $region10: #{trans_ikg_decoder_layer.1} parent=5 // pred_check_branch
        %584 = sbr.rel (%p581) target = $region12
      $region11: #{trans_ikg_decoder_layer.1} parent=5 // pred_region
        %s585 = ssub.s32 %s32, 1
        // Predicated region
        $region13: #{trans_ikg_decoder_layer.1} parent=11 // pred_check
          %p586 = pneg %p209
        $region14: #{trans_ikg_decoder_layer.1} parent=11 // pred_check_branch
          %588 = sbr.rel (%p586) target = $region16
        $region15: #{trans_ikg_decoder_layer.1} parent=11 // pred_region
          _
        $region16: #{trans_ikg_decoder_layer.1} parent=11 // pred_fallthru
          _
        // Predicated region
        $region17: #{trans_ikg_decoder_layer.1} parent=11 // pred_check
          %p589 = pneg %p230
        $region18: #{trans_ikg_decoder_layer.1} parent=11 // pred_check_branch
          %591 = sbr.rel (%p589) target = $region20
        $region19: #{trans_ikg_decoder_layer.1} parent=11 // pred_region
          _
        $region20: #{trans_ikg_decoder_layer.1} parent=11 // pred_fallthru
          _
        // Predicated region
        $region21: #{trans_ikg_decoder_layer.1} parent=11 // pred_check
          %p592 = pneg %p251
        $region22: #{trans_ikg_decoder_layer.1} parent=11 // pred_check_branch
          %594 = sbr.rel (%p592) target = $region24
        $region23: #{trans_ikg_decoder_layer.1} parent=11 // pred_region
          _
        $region24: #{trans_ikg_decoder_layer.1} parent=11 // pred_fallthru
          _
        // Predicated region
        $region25: #{trans_ikg_decoder_layer.1} parent=11 // pred_check
          %p595 = pneg %p272
        $region26: #{trans_ikg_decoder_layer.1} parent=11 // pred_check_branch
          %597 = sbr.rel (%p595) target = $region28
        $region27: #{trans_ikg_decoder_layer.1} parent=11 // pred_region
          _
        $region28: #{trans_ikg_decoder_layer.1} parent=11 // pred_fallthru
          _
        // Predicated region
        $region29: #{trans_ikg_decoder_layer.1} parent=11 // pred_check
          %p598 = pneg %p293
        $region30: #{trans_ikg_decoder_layer.1} parent=11 // pred_check_branch
          %600 = sbr.rel (%p598) target = $region32
        $region31: #{trans_ikg_decoder_layer.1} parent=11 // pred_region
          _
        $region32: #{trans_ikg_decoder_layer.1} parent=11 // pred_fallthru
          _
        // Predicated region
        $region33: #{trans_ikg_decoder_layer.1} parent=11 // pred_check
          %p601 = pneg %p314
        $region34: #{trans_ikg_decoder_layer.1} parent=11 // pred_check_branch
          %603 = sbr.rel (%p601) target = $region36
        $region35: #{trans_ikg_decoder_layer.1} parent=11 // pred_region
          _
        $region36: #{trans_ikg_decoder_layer.1} parent=11 // pred_fallthru
          _
        // Predicated region
        $region37: #{trans_ikg_decoder_layer.1} parent=11 // pred_check
          %p604 = pneg %p335
        $region38: #{trans_ikg_decoder_layer.1} parent=11 // pred_check_branch
          %606 = sbr.rel (%p604) target = $region40
        $region39: #{trans_ikg_decoder_layer.1} parent=11 // pred_region
          _
        $region40: #{trans_ikg_decoder_layer.1} parent=11 // pred_fallthru
          _
        // Predicated region
        $region41: #{trans_ikg_decoder_layer.1} parent=11 // pred_check
          %p607 = pneg %p356
        $region42: #{trans_ikg_decoder_layer.1} parent=11 // pred_check_branch
          %609 = sbr.rel (%p607) target = $region44
        $region43: #{trans_ikg_decoder_layer.1} parent=11 // pred_region
          _
        $region44: #{trans_ikg_decoder_layer.1} parent=11 // pred_fallthru
          _
        // Predicated region
        $region45: #{trans_ikg_decoder_layer.1} parent=11 // pred_check
          %p610 = pneg %p377
        $region46: #{trans_ikg_decoder_layer.1} parent=11 // pred_check_branch
          %612 = sbr.rel (%p610) target = $region48
        $region47: #{trans_ikg_decoder_layer.1} parent=11 // pred_region
          _
        $region48: #{trans_ikg_decoder_layer.1} parent=11 // pred_fallthru
          _
        // Predicated region
        $region49: #{trans_ikg_decoder_layer.1} parent=11 // pred_check
          %p613 = pneg %p398
        $region50: #{trans_ikg_decoder_layer.1} parent=11 // pred_check_branch
          %615 = sbr.rel (%p613) target = $region52
        $region51: #{trans_ikg_decoder_layer.1} parent=11 // pred_region
          _
        $region52: #{trans_ikg_decoder_layer.1} parent=11 // pred_fallthru
          _
        // Predicated region
        $region53: #{trans_ikg_decoder_layer.1} parent=11 // pred_check
          %p616 = pneg %p419
        $region54: #{trans_ikg_decoder_layer.1} parent=11 // pred_check_branch
          %618 = sbr.rel (%p616) target = $region56
        $region55: #{trans_ikg_decoder_layer.1} parent=11 // pred_region
          _
        $region56: #{trans_ikg_decoder_layer.1} parent=11 // pred_fallthru
          _
        // Predicated region
        $region57: #{trans_ikg_decoder_layer.1} parent=11 // pred_check
          %p619 = pneg %p440
        $region58: #{trans_ikg_decoder_layer.1} parent=11 // pred_check_branch
          %621 = sbr.rel (%p619) target = $region60
        $region59: #{trans_ikg_decoder_layer.1} parent=11 // pred_region
          _
        $region60: #{trans_ikg_decoder_layer.1} parent=11 // pred_fallthru
          _
        // Predicated region
        $region61: #{trans_ikg_decoder_layer.1} parent=11 // pred_check
          %p622 = pneg %p461
        $region62: #{trans_ikg_decoder_layer.1} parent=11 // pred_check_branch
          %624 = sbr.rel (%p622) target = $region64
        $region63: #{trans_ikg_decoder_layer.1} parent=11 // pred_region
          _
        $region64: #{trans_ikg_decoder_layer.1} parent=11 // pred_fallthru
          _
        // Predicated region
        $region65: #{trans_ikg_decoder_layer.1} parent=11 // pred_check
          %p625 = pneg %p482
        $region66: #{trans_ikg_decoder_layer.1} parent=11 // pred_check_branch
          %627 = sbr.rel (%p625) target = $region68
        $region67: #{trans_ikg_decoder_layer.1} parent=11 // pred_region
          _
        $region68: #{trans_ikg_decoder_layer.1} parent=11 // pred_fallthru
          _
        // Predicated region
        $region69: #{trans_ikg_decoder_layer.1} parent=11 // pred_check
          %p628 = pneg %p503
        $region70: #{trans_ikg_decoder_layer.1} parent=11 // pred_check_branch
          %630 = sbr.rel (%p628) target = $region72
        $region71: #{trans_ikg_decoder_layer.1} parent=11 // pred_region
          _
        $region72: #{trans_ikg_decoder_layer.1} parent=11 // pred_fallthru
          _
        // Predicated region
        $region73: #{trans_ikg_decoder_layer.1} parent=11 // pred_check
          %p631 = pneg %p524
        $region74: #{trans_ikg_decoder_layer.1} parent=11 // pred_check_branch
          %633 = sbr.rel (%p631) target = $region76
        $region75: #{trans_ikg_decoder_layer.1} parent=11 // pred_region
          _
        $region76: #{trans_ikg_decoder_layer.1} parent=11 // pred_fallthru
          _
        // Predicated region
        $region77: #{trans_ikg_decoder_layer.1} parent=11 // pred_check
          %p634 = pneg %p545
        $region78: #{trans_ikg_decoder_layer.1} parent=11 // pred_check_branch
          %636 = sbr.rel (%p634) target = $region80
        $region79: #{trans_ikg_decoder_layer.1} parent=11 // pred_region
          _
        $region80: #{trans_ikg_decoder_layer.1} parent=11 // pred_fallthru
          _
      $region12: #{trans_ikg_decoder_layer.1} parent=5 // pred_fallthru
        _
      %p637 = scmp.lt.s32.totalorder %s32, 2
      // Predicated region
      $region81: #{trans_ikg_decoder_layer.1} parent=5 // pred_check
        %p638 = pneg %p637
      $region82: #{trans_ikg_decoder_layer.1} parent=5 // pred_check_branch
        %640 = sbr.rel (%p638) target = $region84
      $region83: #{trans_ikg_decoder_layer.1} parent=5 // pred_region
        // Predicated region
        $region85: #{trans_ikg_decoder_layer.1} parent=83 // pred_check
          %p641 = pneg %p52
        $region86: #{trans_ikg_decoder_layer.1} parent=83 // pred_check_branch
          %643 = sbr.rel (%p641) target = $region88
        $region87: #{trans_ikg_decoder_layer.1} parent=83 // pred_region
          %p644 = scmp.lt.s32.totalorder %s32, 1
          %s645 = scalar_select %p644, %s32, 1
          %s646 = smul.addr %s645, 8
          %s647 = scalar_lea.vmem %s0, %s646
        $region88: #{trans_ikg_decoder_layer.1} parent=83 // pred_fallthru
          _
        // Predicated region
        $region89: #{trans_ikg_decoder_layer.1} parent=83 // pred_check
          %p648 = pneg %p78
        $region90: #{trans_ikg_decoder_layer.1} parent=83 // pred_check_branch
          %650 = sbr.rel (%p648) target = $region92
        $region91: #{trans_ikg_decoder_layer.1} parent=83 // pred_region
          %p651 = scmp.lt.s32.totalorder %s32, 1
          %s652 = scalar_select %p651, %s32, 1
          %s653 = scalar_lea.vmem %s1, %s652
        $region92: #{trans_ikg_decoder_layer.1} parent=83 // pred_fallthru
          _
        // Predicated region
        $region93: #{trans_ikg_decoder_layer.1} parent=83 // pred_check
          %p654 = pneg %p104
        $region94: #{trans_ikg_decoder_layer.1} parent=83 // pred_check_branch
          %656 = sbr.rel (%p654) target = $region96
        $region95: #{trans_ikg_decoder_layer.1} parent=83 // pred_region
          %p657 = scmp.lt.s32.totalorder %s32, 1
          %s658 = scalar_select %p657, %s32, 1
          %s659 = smul.addr %s658, 8
          %s660 = scalar_lea.vmem %s2, %s659
        $region96: #{trans_ikg_decoder_layer.1} parent=83 // pred_fallthru
          _
        // Predicated region
        $region97: #{trans_ikg_decoder_layer.1} parent=83 // pred_check
          %p661 = pneg %p130
        $region98: #{trans_ikg_decoder_layer.1} parent=83 // pred_check_branch
          %663 = sbr.rel (%p661) target = $region100
        $region99: #{trans_ikg_decoder_layer.1} parent=83 // pred_region
          %p664 = scmp.lt.s32.totalorder %s32, 1
          %s665 = scalar_select %p664, %s32, 1
          %s666 = scalar_lea.vmem %s3, %s665
        $region100: #{trans_ikg_decoder_layer.1} parent=83 // pred_fallthru
          _
        // Predicated region
        $region101: #{trans_ikg_decoder_layer.1} parent=83 // pred_check
          %p667 = pneg %p156
        $region102: #{trans_ikg_decoder_layer.1} parent=83 // pred_check_branch
          %669 = sbr.rel (%p667) target = $region104
        $region103: #{trans_ikg_decoder_layer.1} parent=83 // pred_region
          %p670 = scmp.lt.s32.totalorder %s32, 1
          %s671 = scalar_select %p670, %s32, 1
          %s672 = smul.addr %s671, 2
          %s673 = smul.addr %s672, 8
          %s674 = scalar_lea.vmem %s4, %s673
        $region104: #{trans_ikg_decoder_layer.1} parent=83 // pred_fallthru
          _
        // Predicated region
        $region105: #{trans_ikg_decoder_layer.1} parent=83 // pred_check
          %p675 = pneg %p182
        $region106: #{trans_ikg_decoder_layer.1} parent=83 // pred_check_branch
          %677 = sbr.rel (%p675) target = $region108
        $region107: #{trans_ikg_decoder_layer.1} parent=83 // pred_region
          %p678 = scmp.lt.s32.totalorder %s32, 1
          %s679 = scalar_select %p678, %s32, 1
          %s680 = scalar_lea.vmem %s5, %s679
        $region108: #{trans_ikg_decoder_layer.1} parent=83 // pred_fallthru
          _
      $region84: #{trans_ikg_decoder_layer.1} parent=5 // pred_fallthru
        _
      %p681 = scmp.le.s32.totalorder 1, %s32
      %p682 = scmp.lt.s32.totalorder %s32, 3
      %p683 = pnand %p681, %p682
      %p684 = pneg %p683
      // Predicated region
      $region109: #{trans_ikg_decoder_layer.1} parent=5 // pred_check
        _
      $region110: #{trans_ikg_decoder_layer.1} parent=5 // pred_check_branch
        %686 = sbr.rel (%p683) target = $region112
      $region111: #{trans_ikg_decoder_layer.1} parent=5 // pred_region
        %s687 = ssub.s32 %s32, 1
        %p688 = scmp.lt.s32.totalorder %s37, 1
        %s689 = scalar_select %p688, %s37, 1
        %s690 = smul.addr %s689, 8
        %s691 = scalar_lea.vmem %s0, %s690
        %p692 = pneg %p58
        %p693 = pneg %p55
        %p694 = scmp.lt.s32.totalorder %s37, 1
        %s695 = scalar_select %p694, %s37, 1
        %s696 = scalar_lea.vmem %s1, %s695
        %p697 = pneg %p84
        %p698 = pneg %p81
        %p699 = scmp.lt.s32.totalorder %s37, 1
        %s700 = scalar_select %p699, %s37, 1
        %s701 = smul.addr %s700, 8
        %s702 = scalar_lea.vmem %s2, %s701
        %p703 = pneg %p110
        %p704 = pneg %p107
        %p705 = scmp.lt.s32.totalorder %s37, 1
        %s706 = scalar_select %p705, %s37, 1
        %s707 = scalar_lea.vmem %s3, %s706
        %p708 = pneg %p136
        %p709 = pneg %p133
        %p710 = scmp.lt.s32.totalorder %s37, 1
        %s711 = scalar_select %p710, %s37, 1
        %s712 = smul.addr %s711, 2
        %s713 = smul.addr %s712, 8
        %s714 = scalar_lea.vmem %s4, %s713
        %p715 = pneg %p162
        %p716 = pneg %p159
        %p717 = scmp.lt.s32.totalorder %s37, 1
        %s718 = scalar_select %p717, %s37, 1
        %s719 = scalar_lea.vmem %s5, %s718
        %p720 = pneg %p188
        %p721 = pneg %p185
        %p722 = pneg %p209
        %p723 = pneg %p206
        %p724 = pneg %p230
        %p725 = pneg %p227
        %p726 = pneg %p251
        %p727 = pneg %p248
        %p728 = pneg %p272
        %p729 = pneg %p269
        %p730 = pneg %p293
        %p731 = pneg %p290
        %p732 = pneg %p314
        %p733 = pneg %p311
        %p734 = pneg %p335
        %p735 = pneg %p332
        %p736 = pneg %p356
        %p737 = pneg %p353
        %p738 = pneg %p377
        %p739 = pneg %p374
        %p740 = pneg %p398
        %p741 = pneg %p395
        %p742 = pneg %p419
        %p743 = pneg %p416
        %p744 = pneg %p440
        %p745 = pneg %p437
        %p746 = pneg %p461
        %p747 = pneg %p458
        %p748 = pneg %p482
        %p749 = pneg %p479
        %p750 = pneg %p503
        %p751 = pneg %p500
        %p752 = pneg %p524
        %p753 = pneg %p521
        %p754 = pneg %p545
        %p755 = pneg %p542
        %p756 = pneg %p571
        %p757 = pneg %p568
        %s758 = sand.u32 %s558, 1
        %s759 = scalar_lea.sflag [#allocation3], %s758
        %s760 = sand.u32 %s558, 1
        %s761 = smul.addr %s760, 8
        %s762 = scalar_lea.vmem [#allocation2], %s761
        %p763 = scmp.lt.s32.totalorder %s37, 1
        %s764 = scalar_select %p763, %s37, 1
        %s765 = smul.addr %s764, 8
        %s766 = scalar_lea.vmem %s0, %s765
        %p767 = scmp.lt.s32.totalorder %s37, 1
        %s768 = scalar_select %p767, %s37, 1
        %s769 = scalar_lea.vmem %s1, %s768
        %p770 = scmp.lt.s32.totalorder %s37, 1
        %s771 = scalar_select %p770, %s37, 1
        %s772 = smul.addr %s771, 8
        %s773 = scalar_lea.vmem %s2, %s772
        %p774 = scmp.lt.s32.totalorder %s37, 1
        %s775 = scalar_select %p774, %s37, 1
        %s776 = scalar_lea.vmem %s3, %s775
        %p777 = scmp.lt.s32.totalorder %s37, 1
        %s778 = scalar_select %p777, %s37, 1
        %s779 = smul.addr %s778, 2
        %s780 = smul.addr %s779, 8
        %s781 = scalar_lea.vmem %s4, %s780
        %p782 = scmp.lt.s32.totalorder %s37, 1
        %s783 = scalar_select %p782, %s37, 1
        %s784 = scalar_lea.vmem %s5, %s783
        %v785 = vld [vmem:[%s766] sm:$0xff]
        %v786 = vld [vmem:[%s769] sm:$0x1]
        %v787 = vld [vmem:[%s8] sm:$0xff]
        %v788 = vld [vmem:[%s8 + $0x8] sm:$0xff]
        %v789 = vld [vmem:[%s8 + $0x10] sm:$0xff]
        %v790 = vld [vmem:[%s8 + $0x18] sm:$0xff]
        %v791 = vld [vmem:[%s8 + $0x20] sm:$0xff]
        %v792 = vld [vmem:[%s8 + $0x28] sm:$0xff]
        %v793 = vld [vmem:[%s8 + $0x30] sm:$0xff]
        %v794 = vld [vmem:[%s8 + $0x38] sm:$0xff]
        %vm795 = vcmask 261120
        %v797 = vsel %vm795, %v786, 0
        %799 = vmatpush.msra.mxu0 0.0
        %800 = vmatpush.msra.mxu0 0.0
        %801 = vmatpush.msra.mxu0 0.0
        %802 = vmatpush.msra.mxu0 0.0
        %803 = vmatpush.msra.mxu0 0.0
        %804 = vmatpush.msra.mxu0 0.0
        %805 = vmatpush.msra.mxu0 0.0
        %806 = vmatpush.msra.mxu0 0.0
        %807 = vmatpush.msra.mxu0 0.0
        %808 = vmatpush.msra.mxu0 0.0
        %809 = vmatpush.msra.mxu0 0.0
        %810 = vmatpush.msra.mxu0 0.0
        %811 = vmatpush.msra.mxu0 %v794
        %812 = vmatpush.msra.mxu0 %v793
        %813 = vmatpush.msra.mxu0 %v792
        %814 = vmatpush.msra.mxu0 %v791
        %815 = vmatmul.f32.gmra.mxu0 %v797
        %v816 = vpop.f32.mrf.mxu0
        %v817 = vadd.f32 0.0, %v816
        %818 = vdwg.mxu0
        %v819 = vperm.slane %v817, 0
        %v821 = vsel %vm795, %v785, 0
        %823 = vmatpush.msra.mxu0 0.0
        %824 = vmatpush.msra.mxu0 0.0
        %825 = vmatpush.msra.mxu0 0.0
        %826 = vmatpush.msra.mxu0 0.0
        %827 = vmatpush.msra.mxu0 0.0
        %828 = vmatpush.msra.mxu0 0.0
        %829 = vmatpush.msra.mxu0 0.0
        %830 = vmatpush.msra.mxu0 0.0
        %831 = vmatpush.msra.mxu0 0.0
        %832 = vmatpush.msra.mxu0 0.0
        %833 = vmatpush.msra.mxu0 0.0
        %834 = vmatpush.msra.mxu0 0.0
        %835 = vmatpush.msra.mxu0 %v790
        %836 = vmatpush.msra.mxu0 %v789
        %837 = vmatpush.msra.mxu0 %v788
        %838 = vmatpush.msra.mxu0 %v787
        %839 = vmatmul.f32.gmra.mxu0 %v821
        %v840 = vpop.f32.mrf.mxu0
        %v841 = vadd.f32 %v819, %v840
        %842 = vdwg.mxu0
        %v843 = vld [vmem:[%s6] sm:$0x1]
        %v844 = vperm.slane %v843, 0
        %v845 = vadd.f32 %v841, %v844
        %v846 = vxor.u32 %v845, 2147483648
        %v847 = vmul.f32 %v846, 1.442695
        %v848 = vpow.pop %v847
        %v849 = vadd.f32 %v848, 1.0
        %v850 = vrcp.pop %v849
        %v851 = vmul.f32 %v849, %v850
        %v852 = vsub.f32 1.0, %v851
        %v853 = vmul.f32 %v850, %v852
        %v854 = vadd.f32 %v850, %v853
        %vm855 = vweird.f32 %v849
        %vm856 = vweird.f32 %v850
        %vm857 = vmor %vm855, %vm856
        %v858 = vsel %vm857, %v850, %v854
        %v859 = vand.u32 2147483647, %v849
        %vm860 = vcmp.eq.f32.partialorder %v859, 8.507059e+37
        %v861 = vand.u32 %v849, 2147483648
        %v862 = vor.u32 1.1754944e-38, %v861
        %v863 = vsel %vm860, %v862, %v858
        %v864 = vmul.f32 1.0, %v863
        %v865 = vperm.slane %v786, 0
        %v867 = vmul.f32 %v864, %v865
        %v868 = vld [vmem:[%s9] sm:$0xff]
        %v869 = vld [vmem:[%s9 + $0x8] sm:$0xff]
        %v870 = vld [vmem:[%s9 + $0x10] sm:$0xff]
        %v871 = vld [vmem:[%s9 + $0x18] sm:$0xff]
        %v872 = vld [vmem:[%s9 + $0x20] sm:$0xff]
        %v873 = vld [vmem:[%s9 + $0x28] sm:$0xff]
        %v874 = vld [vmem:[%s9 + $0x30] sm:$0xff]
        %v875 = vld [vmem:[%s9 + $0x38] sm:$0xff]
        %v877 = vsel %vm795, %v867, 0
        %879 = vmatpush.msra.mxu0 0.0
        %880 = vmatpush.msra.mxu0 0.0
        %881 = vmatpush.msra.mxu0 0.0
        %882 = vmatpush.msra.mxu0 0.0
        %883 = vmatpush.msra.mxu0 0.0
        %884 = vmatpush.msra.mxu0 0.0
        %885 = vmatpush.msra.mxu0 0.0
        %886 = vmatpush.msra.mxu0 0.0
        %887 = vmatpush.msra.mxu0 0.0
        %888 = vmatpush.msra.mxu0 0.0
        %889 = vmatpush.msra.mxu0 0.0
        %890 = vmatpush.msra.mxu0 0.0
        %891 = vmatpush.msra.mxu0 %v875
        %892 = vmatpush.msra.mxu0 %v874
        %893 = vmatpush.msra.mxu0 %v873
        %894 = vmatpush.msra.mxu0 %v872
        %895 = vmatmul.f32.gmra.mxu0 %v877
        %v896 = vpop.f32.mrf.mxu0
        %v897 = vadd.f32 0.0, %v896
        %898 = vdwg.mxu0
        %899 = vmatpush.msra.mxu0 0.0
        %900 = vmatpush.msra.mxu0 0.0
        %901 = vmatpush.msra.mxu0 0.0
        %902 = vmatpush.msra.mxu0 0.0
        %903 = vmatpush.msra.mxu0 0.0
        %904 = vmatpush.msra.mxu0 0.0
        %905 = vmatpush.msra.mxu0 0.0
        %906 = vmatpush.msra.mxu0 0.0
        %907 = vmatpush.msra.mxu0 0.0
        %908 = vmatpush.msra.mxu0 0.0
        %909 = vmatpush.msra.mxu0 0.0
        %910 = vmatpush.msra.mxu0 0.0
        %911 = vmatpush.msra.mxu0 %v871
        %912 = vmatpush.msra.mxu0 %v870
        %913 = vmatpush.msra.mxu0 %v869
        %914 = vmatpush.msra.mxu0 %v868
        %915 = vmatmul.f32.gmra.mxu0 %v821
        %v916 = vpop.f32.mrf.mxu0
        %v917 = vadd.f32 %v897, %v916
        %918 = vdwg.mxu0
        %v919 = vld [vmem:[%s7] sm:$0x1]
        %v920 = vperm.slane %v919, 0
        %v921 = vadd.f32 %v917, %v920
        %v922 = vmax.f32 %v921, 0.0
        %v923 = vld [vmem:[%s10] sm:$0xff]
        %v924 = vld [vmem:[%s10 + $0x8] sm:$0xff]
        %v925 = vld [vmem:[%s10 + $0x10] sm:$0xff]
        %v926 = vld [vmem:[%s10 + $0x18] sm:$0xff]
        %v927 = vld [vmem:[%s10 + $0x20] sm:$0xff]
        %v928 = vld [vmem:[%s10 + $0x28] sm:$0xff]
        %v929 = vld [vmem:[%s10 + $0x30] sm:$0xff]
        %v930 = vld [vmem:[%s10 + $0x38] sm:$0xff]
        %v931 = vld [vmem:[%s6 + $0x1] sm:$0x1]
        %v932 = vperm.slane %v931, 0
        %vm933 = vcmask 523264
        %v935 = vsel %vm933, %v922, 0
        %937 = vmatpush.msra.mxu0 0.0
        %938 = vmatpush.msra.mxu0 0.0
        %939 = vmatpush.msra.mxu0 0.0
        %940 = vmatpush.msra.mxu0 0.0
        %941 = vmatpush.msra.mxu0 0.0
        %942 = vmatpush.msra.mxu0 0.0
        %943 = vmatpush.msra.mxu0 0.0
        %944 = vmatpush.msra.mxu0 0.0
        %945 = vmatpush.msra.mxu0 %v930
        %946 = vmatpush.msra.mxu0 %v929
        %947 = vmatpush.msra.mxu0 %v928
        %948 = vmatpush.msra.mxu0 %v927
        %949 = vmatpush.msra.mxu0 %v926
        %950 = vmatpush.msra.mxu0 %v925
        %951 = vmatpush.msra.mxu0 %v924
        %952 = vmatpush.msra.mxu0 %v923
        %953 = vmatmul.f32.gmra.mxu0 %v935
        %v954 = vpop.f32.mrf.mxu0
        %v955 = vadd.f32 %v932, %v954
        %956 = vdwg.mxu0
        %v957 = vadd.f32 %v785, %v955
        %v958 = vld [vmem:[%s6 + $0x2] sm:$0x1]
        %v959 = vld [vmem:[%s6 + $0x3] sm:$0x1]
        %v960 = vsel %vm795, %v957, 0.0
        %961 = vadd.xlane.f32.xlu0 %v960
        %v962 = vpop.xlane.xlu0 %961
        %v963 = vrcp.pop 32.0
        %v964 = vmul.f32 32.0, %v963
        %v965 = vsub.f32 1.0, %v964
        %v966 = vmul.f32 %v963, %v965
        %v967 = vadd.f32 %v963, %v966
        %vm968 = vweird.f32 %v963
        %v969 = vsel %vm968, %v963, %v967
        %v970 = vmul.f32 %v962, %v969
        %v971 = vsub.f32 %v957, %v970
        %v972 = vmul.f32 %v971, %v971
        %v973 = vsel %vm795, %v972, 0.0
        %974 = vadd.xlane.f32.xlu0 %v973
        %v975 = vpop.xlane.xlu0 %974
        %v976 = vmul.f32 %v975, %v969
        %v977 = vadd.f32 %v976, 1e-05
        %v978 = vrsqrt.pop %v977
        %v979 = vmul.f32 %v978, %v977
        %v980 = vmul.f32 %v979, %v978
        %v981 = vmul.f32 0.5, %v980
        %v982 = vsub.f32 1.5, %v981
        %v983 = vmul.f32 %v978, %v982
        %vm984 = vweird.f32 %v977
        %vm985 = vweird.f32 %v978
        %vm986 = vmor %vm984, %vm985
        %v987 = vsel %vm986, %v978, %v983
        %v988 = vmul.f32 %v971, %v987
        %v989 = vperm.slane %v958, 0
        %v990 = vmul.f32 %v988, %v989
        %v991 = vperm.slane %v959, 0
        %v992 = vadd.f32 %v990, %v991
        %v993 = vld [vmem:[%s11] sm:$0xff]
        %v994 = vld [vmem:[%s11 + $0x8] sm:$0xff]
        %v995 = vld [vmem:[%s11 + $0x10] sm:$0xff]
        %v996 = vld [vmem:[%s11 + $0x18] sm:$0xff]
        %v998 = vsel %vm795, %v992, 0
        %1000 = vmatpush.msra.mxu0 0.0
        %1001 = vmatpush.msra.mxu0 0.0
        %1002 = vmatpush.msra.mxu0 0.0
        %1003 = vmatpush.msra.mxu0 0.0
        %1004 = vmatpush.msra.mxu0 0.0
        %1005 = vmatpush.msra.mxu0 0.0
        %1006 = vmatpush.msra.mxu0 0.0
        %1007 = vmatpush.msra.mxu0 0.0
        %1008 = vmatpush.msra.mxu0 0.0
        %1009 = vmatpush.msra.mxu0 0.0
        %1010 = vmatpush.msra.mxu0 0.0
        %1011 = vmatpush.msra.mxu0 0.0
        %1012 = vmatpush.msra.mxu0 %v996
        %1013 = vmatpush.msra.mxu0 %v995
        %1014 = vmatpush.msra.mxu0 %v994
        %1015 = vmatpush.msra.mxu0 %v993
        %1016 = vmatmul.f32.gmra.mxu0 %v998
        %v1017 = vpop.f32.mrf.mxu0
        %v1018 = vadd.f32 0.0, %v1017
        %1019 = vdwg.mxu0
        %v1020 = vld [vmem:[%s6 + $0x4] sm:$0x1]
        %v1021 = vperm.slane %v1020, 0
        %v1022 = vadd.f32 %v1018, %v1021
        %v1023 = vld [vmem:[%s6 + $0x5] sm:$0x1]
        %v1024 = vperm.slane %v1023, 0
        %1026 = vrot.lane.b32.xlu0 %v1024, 32
        %v1027 = vpop.permute.xlu0 %1026
        %v1029 = vadd.f32 %v1018, %v1027
        %v1030 = vld [vmem:[%s6 + $0x6] sm:$0x1]
        %v1031 = vperm.slane %v1030, 0
        %1033 = vrot.lane.b32.xlu0 %v1031, 64
        %v1034 = vpop.permute.xlu0 %1033
        %v1036 = vadd.f32 %v1018, %v1034
        %v1037 = vlaneseq
        %v1038 = vshrl.u32 %v1037, 7
        %v1039 = vlaneseq
        %v1040 = vand.u32 %v1039, 127
        %vm1041 = vcmp.le.s32.totalorder %v1040, %v1038
        %v1042 = vsel %vm1041, 0.0, -1e+20
        %v1043 = vld [vmem:[%s6 + $0x7] sm:$0x1]
        %1045 = vrot.lane.b32.xlu0 %v1029, 96
        %v1046 = vpop.permute.xlu0 %1045
        %vm1047 = vcmask 64512
        %v1049 = vsel %vm1047, %v1022, 0
        %v1051 = vsel %vm1047, %v1046, 0
        %1053 = vmatpush.xpose.msra.mxu0 0.0
        %1054 = vmatpush.xpose.msra.mxu0 0.0
        %1055 = vmatpush.xpose.msra.mxu0 0.0
        %1056 = vmatpush.xpose.msra.mxu0 0.0
        %1057 = vmatpush.xpose.msra.mxu0 0.0
        %1058 = vmatpush.xpose.msra.mxu0 0.0
        %1059 = vmatpush.xpose.msra.mxu0 0.0
        %1060 = vmatpush.xpose.msra.mxu0 0.0
        %1061 = vmatpush.xpose.msra.mxu0 0.0
        %1062 = vmatpush.xpose.msra.mxu0 0.0
        %1063 = vmatpush.xpose.msra.mxu0 0.0
        %1064 = vmatpush.xpose.msra.mxu0 0.0
        %1065 = vmatpush.xpose.msra.mxu0 0.0
        %1066 = vmatpush.xpose.msra.mxu0 0.0
        %1067 = vmatpush.xpose.msra.mxu0 0.0
        %1068 = vmatpush.xpose.msra.mxu0 %v1051
        %1069 = vmatmul.f32.gmra.mxu0 %v1049
        %v1070 = vpop.f32.mrf.mxu0
        %v1071 = vadd.f32 0.0, %v1070
        %1072 = vdwg.mxu0
        %v1073 = vmul.f32 %v1071, 0.35355338
        %v1074 = vadd.f32 %v1073, %v1042
        %1075 = vrot.lane.b32.xlu0 %v1022, 120
        %v1076 = vpop.permute.xlu0 %1075
        %1077 = vrot.lane.b32.xlu0 %v1029, 88
        %v1078 = vpop.permute.xlu0 %1077
        %v1079 = vsel %vm1047, %v1076, 0
        %v1081 = vsel %vm1047, %v1078, 0
        %1083 = vmatpush.xpose.msra.mxu0 0.0
        %1084 = vmatpush.xpose.msra.mxu0 0.0
        %1085 = vmatpush.xpose.msra.mxu0 0.0
        %1086 = vmatpush.xpose.msra.mxu0 0.0
        %1087 = vmatpush.xpose.msra.mxu0 0.0
        %1088 = vmatpush.xpose.msra.mxu0 0.0
        %1089 = vmatpush.xpose.msra.mxu0 0.0
        %1090 = vmatpush.xpose.msra.mxu0 0.0
        %1091 = vmatpush.xpose.msra.mxu0 0.0
        %1092 = vmatpush.xpose.msra.mxu0 0.0
        %1093 = vmatpush.xpose.msra.mxu0 0.0
        %1094 = vmatpush.xpose.msra.mxu0 0.0
        %1095 = vmatpush.xpose.msra.mxu0 0.0
        %1096 = vmatpush.xpose.msra.mxu0 0.0
        %1097 = vmatpush.xpose.msra.mxu0 0.0
        %1098 = vmatpush.xpose.msra.mxu0 %v1081
        %1099 = vmatmul.f32.gmra.mxu0 %v1079
        %v1100 = vpop.f32.mrf.mxu0
        %v1101 = vadd.f32 0.0, %v1100
        %1102 = vdwg.mxu0
        %v1103 = vmul.f32 %v1101, 0.35355338
        %v1104 = vadd.f32 %v1103, %v1042
        %1105 = vrot.lane.b32.xlu0 %v1022, 112
        %v1106 = vpop.permute.xlu0 %1105
        %1107 = vrot.lane.b32.xlu0 %v1029, 80
        %v1108 = vpop.permute.xlu0 %1107
        %v1109 = vsel %vm1047, %v1106, 0
        %v1111 = vsel %vm1047, %v1108, 0
        %1113 = vmatpush.xpose.msra.mxu0 0.0
        %1114 = vmatpush.xpose.msra.mxu0 0.0
        %1115 = vmatpush.xpose.msra.mxu0 0.0
        %1116 = vmatpush.xpose.msra.mxu0 0.0
        %1117 = vmatpush.xpose.msra.mxu0 0.0
        %1118 = vmatpush.xpose.msra.mxu0 0.0
        %1119 = vmatpush.xpose.msra.mxu0 0.0
        %1120 = vmatpush.xpose.msra.mxu0 0.0
        %1121 = vmatpush.xpose.msra.mxu0 0.0
        %1122 = vmatpush.xpose.msra.mxu0 0.0
        %1123 = vmatpush.xpose.msra.mxu0 0.0
        %1124 = vmatpush.xpose.msra.mxu0 0.0
        %1125 = vmatpush.xpose.msra.mxu0 0.0
        %1126 = vmatpush.xpose.msra.mxu0 0.0
        %1127 = vmatpush.xpose.msra.mxu0 0.0
        %1128 = vmatpush.xpose.msra.mxu0 %v1111
        %1129 = vmatmul.f32.gmra.mxu0 %v1109
        %v1130 = vpop.f32.mrf.mxu0
        %v1131 = vadd.f32 0.0, %v1130
        %1132 = vdwg.mxu0
        %v1133 = vmul.f32 %v1131, 0.35355338
        %v1134 = vadd.f32 %v1133, %v1042
        %1135 = vrot.lane.b32.xlu0 %v1022, 104
        %v1136 = vpop.permute.xlu0 %1135
        %1137 = vrot.lane.b32.xlu0 %v1029, 72
        %v1138 = vpop.permute.xlu0 %1137
        %v1139 = vsel %vm1047, %v1136, 0
        %v1141 = vsel %vm1047, %v1138, 0
        %1143 = vmatpush.xpose.msra.mxu0 0.0
        %1144 = vmatpush.xpose.msra.mxu0 0.0
        %1145 = vmatpush.xpose.msra.mxu0 0.0
        %1146 = vmatpush.xpose.msra.mxu0 0.0
        %1147 = vmatpush.xpose.msra.mxu0 0.0
        %1148 = vmatpush.xpose.msra.mxu0 0.0
        %1149 = vmatpush.xpose.msra.mxu0 0.0
        %1150 = vmatpush.xpose.msra.mxu0 0.0
        %1151 = vmatpush.xpose.msra.mxu0 0.0
        %1152 = vmatpush.xpose.msra.mxu0 0.0
        %1153 = vmatpush.xpose.msra.mxu0 0.0
        %1154 = vmatpush.xpose.msra.mxu0 0.0
        %1155 = vmatpush.xpose.msra.mxu0 0.0
        %1156 = vmatpush.xpose.msra.mxu0 0.0
        %1157 = vmatpush.xpose.msra.mxu0 0.0
        %1158 = vmatpush.xpose.msra.mxu0 %v1141
        %1159 = vmatmul.f32.gmra.mxu0 %v1139
        %v1160 = vpop.f32.mrf.mxu0
        %v1161 = vadd.f32 0.0, %v1160
        %1162 = vdwg.mxu0
        %v1163 = vmul.f32 %v1161, 0.35355338
        %v1164 = vadd.f32 %v1163, %v1042
        %v1165 = vsel %vm1047, %v1074, -inf
        %1166 = vmax.xlane.f32.xlu0 %v1165
        %v1167 = vpop.xlane.xlu0 %1166
        %v1168 = vsel %vm1047, %v1104, -inf
        %1169 = vmax.xlane.f32.xlu0 %v1168
        %v1170 = vpop.xlane.xlu0 %1169
        %v1171 = vsel %vm1047, %v1134, -inf
        %1172 = vmax.xlane.f32.xlu0 %v1171
        %v1173 = vpop.xlane.xlu0 %1172
        %v1174 = vsel %vm1047, %v1164, -inf
        %1175 = vmax.xlane.f32.xlu0 %v1174
        %v1176 = vpop.xlane.xlu0 %1175
        %v1177 = vsub.f32 %v1074, %v1167
        %v1178 = vsub.f32 %v1104, %v1170
        %v1179 = vsub.f32 %v1134, %v1173
        %v1180 = vsub.f32 %v1164, %v1176
        %v1181 = vmul.f32 %v1177, 1.442695
        %v1182 = vpow.pop %v1181
        %v1183 = vmul.f32 %v1178, 1.442695
        %v1184 = vpow.pop %v1183
        %v1185 = vmul.f32 %v1179, 1.442695
        %v1186 = vpow.pop %v1185
        %v1187 = vmul.f32 %v1180, 1.442695
        %v1188 = vpow.pop %v1187
        %v1189 = vsel %vm1047, %v1182, 0.0
        %1190 = vadd.xlane.f32.xlu0 %v1189
        %v1191 = vpop.xlane.xlu0 %1190
        %v1192 = vsel %vm1047, %v1184, 0.0
        %1193 = vadd.xlane.f32.xlu0 %v1192
        %v1194 = vpop.xlane.xlu0 %1193
        %v1195 = vsel %vm1047, %v1186, 0.0
        %1196 = vadd.xlane.f32.xlu0 %v1195
        %v1197 = vpop.xlane.xlu0 %1196
        %v1198 = vsel %vm1047, %v1188, 0.0
        %1199 = vadd.xlane.f32.xlu0 %v1198
        %v1200 = vpop.xlane.xlu0 %1199
        %v1201 = vrcp.pop %v1191
        %v1202 = vrcp.pop %v1194
        %v1203 = vrcp.pop %v1197
        %v1204 = vrcp.pop %v1200
        %v1205 = vmul.f32 %v1191, %v1201
        %v1206 = vmul.f32 %v1194, %v1202
        %v1207 = vmul.f32 %v1197, %v1203
        %v1208 = vmul.f32 %v1200, %v1204
        %v1209 = vsub.f32 2.0, %v1205
        %v1210 = vsub.f32 2.0, %v1206
        %v1211 = vsub.f32 2.0, %v1207
        %v1212 = vsub.f32 2.0, %v1208
        %v1213 = vmul.f32 %v1201, %v1209
        %v1214 = vmul.f32 %v1202, %v1210
        %v1215 = vmul.f32 %v1203, %v1211
        %v1216 = vmul.f32 %v1204, %v1212
        %v1217 = vmul.f32 %v1182, %v1213
        %v1218 = vmul.f32 %v1184, %v1214
        %v1219 = vmul.f32 %v1186, %v1215
        %v1220 = vmul.f32 %v1188, %v1216
        %1222 = vrot.lane.b32.xlu0 %v1036, 64
        %v1223 = vpop.permute.xlu0 %1222
        %v1226 = vsel %vm1047, %v1217, 0
        %1228 = vmatpush.msra.mxu0 0.0
        %1229 = vmatpush.msra.mxu0 0.0
        %1230 = vmatpush.msra.mxu0 0.0
        %1231 = vmatpush.msra.mxu0 0.0
        %1232 = vmatpush.msra.mxu0 0.0
        %1233 = vmatpush.msra.mxu0 0.0
        %1234 = vmatpush.msra.mxu0 0.0
        %1235 = vmatpush.msra.mxu0 0.0
        %1236 = vmatpush.msra.mxu0 0.0
        %1237 = vmatpush.msra.mxu0 0.0
        %1238 = vmatpush.msra.mxu0 0.0
        %1239 = vmatpush.msra.mxu0 0.0
        %1240 = vmatpush.msra.mxu0 0.0
        %1241 = vmatpush.msra.mxu0 0.0
        %1242 = vmatpush.msra.mxu0 0.0
        %1243 = vmatpush.msra.mxu0 %v1223
        %1244 = vmatmul.f32.gmra.mxu0 %v1226
        %v1245 = vpop.f32.mrf.mxu0
        %v1246 = vadd.f32 0.0, %v1245
        %1247 = vdwg.mxu0
        %1248 = vrot.lane.b32.xlu0 %v1036, 56
        %v1249 = vpop.permute.xlu0 %1248
        %v1252 = vsel %vm1047, %v1218, 0
        %1254 = vmatpush.msra.mxu0 0.0
        %1255 = vmatpush.msra.mxu0 0.0
        %1256 = vmatpush.msra.mxu0 0.0
        %1257 = vmatpush.msra.mxu0 0.0
        %1258 = vmatpush.msra.mxu0 0.0
        %1259 = vmatpush.msra.mxu0 0.0
        %1260 = vmatpush.msra.mxu0 0.0
        %1261 = vmatpush.msra.mxu0 0.0
        %1262 = vmatpush.msra.mxu0 0.0
        %1263 = vmatpush.msra.mxu0 0.0
        %1264 = vmatpush.msra.mxu0 0.0
        %1265 = vmatpush.msra.mxu0 0.0
        %1266 = vmatpush.msra.mxu0 0.0
        %1267 = vmatpush.msra.mxu0 0.0
        %1268 = vmatpush.msra.mxu0 0.0
        %1269 = vmatpush.msra.mxu0 %v1249
        %1270 = vmatmul.f32.gmra.mxu0 %v1252
        %v1271 = vpop.f32.mrf.mxu0
        %v1272 = vadd.f32 0.0, %v1271
        %1273 = vdwg.mxu0
        %1274 = vrot.lane.b32.xlu0 %v1036, 48
        %v1275 = vpop.permute.xlu0 %1274
        %v1278 = vsel %vm1047, %v1219, 0
        %1280 = vmatpush.msra.mxu0 0.0
        %1281 = vmatpush.msra.mxu0 0.0
        %1282 = vmatpush.msra.mxu0 0.0
        %1283 = vmatpush.msra.mxu0 0.0
        %1284 = vmatpush.msra.mxu0 0.0
        %1285 = vmatpush.msra.mxu0 0.0
        %1286 = vmatpush.msra.mxu0 0.0
        %1287 = vmatpush.msra.mxu0 0.0
        %1288 = vmatpush.msra.mxu0 0.0
        %1289 = vmatpush.msra.mxu0 0.0
        %1290 = vmatpush.msra.mxu0 0.0
        %1291 = vmatpush.msra.mxu0 0.0
        %1292 = vmatpush.msra.mxu0 0.0
        %1293 = vmatpush.msra.mxu0 0.0
        %1294 = vmatpush.msra.mxu0 0.0
        %1295 = vmatpush.msra.mxu0 %v1275
        %1296 = vmatmul.f32.gmra.mxu0 %v1278
        %v1297 = vpop.f32.mrf.mxu0
        %v1298 = vadd.f32 0.0, %v1297
        %1299 = vdwg.mxu0
        %1300 = vrot.lane.b32.xlu0 %v1036, 40
        %v1301 = vpop.permute.xlu0 %1300
        %v1304 = vsel %vm1047, %v1220, 0
        %1306 = vmatpush.msra.mxu0 0.0
        %1307 = vmatpush.msra.mxu0 0.0
        %1308 = vmatpush.msra.mxu0 0.0
        %1309 = vmatpush.msra.mxu0 0.0
        %1310 = vmatpush.msra.mxu0 0.0
        %1311 = vmatpush.msra.mxu0 0.0
        %1312 = vmatpush.msra.mxu0 0.0
        %1313 = vmatpush.msra.mxu0 0.0
        %1314 = vmatpush.msra.mxu0 0.0
        %1315 = vmatpush.msra.mxu0 0.0
        %1316 = vmatpush.msra.mxu0 0.0
        %1317 = vmatpush.msra.mxu0 0.0
        %1318 = vmatpush.msra.mxu0 0.0
        %1319 = vmatpush.msra.mxu0 0.0
        %1320 = vmatpush.msra.mxu0 0.0
        %1321 = vmatpush.msra.mxu0 %v1301
        %1322 = vmatmul.f32.gmra.mxu0 %v1304
        %v1323 = vpop.f32.mrf.mxu0
        %v1324 = vadd.f32 0.0, %v1323
        %1325 = vdwg.mxu0
        %1327 = vrot.lane.b32.xlu0 %v1272, 8
        %v1328 = vpop.permute.xlu0 %1327
        %1331 = vrot.lane.b32.xlu0 %v1298, 16
        %v1332 = vpop.permute.xlu0 %1331
        %1335 = vrot.lane.b32.xlu0 %v1324, 24
        %v1336 = vpop.permute.xlu0 %1335
        %v1338 = vsel %vm1047, %v1246, %v1328
        %vm1339 = vcmask 130048
        %v1340 = vsel %vm1339, %v1338, %v1332
        %vm1341 = vcmask 195584
        %v1342 = vsel %vm1341, %v1340, %v1336
        %v1343 = vld [vmem:[%s12] sm:$0xff]
        %v1344 = vld [vmem:[%s12 + $0x8] sm:$0xff]
        %v1345 = vld [vmem:[%s12 + $0x10] sm:$0xff]
        %v1346 = vld [vmem:[%s12 + $0x18] sm:$0xff]
        %v1347 = vperm.slane %v1043, 0
        %v1349 = vsel %vm795, %v1342, 0
        %1351 = vmatpush.msra.mxu0 0.0
        %1352 = vmatpush.msra.mxu0 0.0
        %1353 = vmatpush.msra.mxu0 0.0
        %1354 = vmatpush.msra.mxu0 0.0
        %1355 = vmatpush.msra.mxu0 0.0
        %1356 = vmatpush.msra.mxu0 0.0
        %1357 = vmatpush.msra.mxu0 0.0
        %1358 = vmatpush.msra.mxu0 0.0
        %1359 = vmatpush.msra.mxu0 0.0
        %1360 = vmatpush.msra.mxu0 0.0
        %1361 = vmatpush.msra.mxu0 0.0
        %1362 = vmatpush.msra.mxu0 0.0
        %1363 = vmatpush.msra.mxu0 %v1346
        %1364 = vmatpush.msra.mxu0 %v1345
        %1365 = vmatpush.msra.mxu0 %v1344
        %1366 = vmatpush.msra.mxu0 %v1343
        %1367 = vmatmul.f32.gmra.mxu0 %v1349
        %v1368 = vpop.f32.mrf.mxu0
        %v1369 = vadd.f32 %v1347, %v1368
        %1370 = vdwg.mxu0
        %v1371 = vadd.f32 %v1369, %v992
        %v1372 = vld [vmem:[%s6 + $0x8] sm:$0x1]
        %v1373 = vld [vmem:[%s6 + $0x9] sm:$0x1]
        %v1374 = vsel %vm795, %v1371, 0.0
        %1375 = vadd.xlane.f32.xlu0 %v1374
        %v1376 = vpop.xlane.xlu0 %1375
        %v1377 = vmul.f32 %v1376, %v969
        %v1378 = vsub.f32 %v1371, %v1377
        %v1379 = vmul.f32 %v1378, %v1378
        %v1380 = vsel %vm795, %v1379, 0.0
        %1381 = vadd.xlane.f32.xlu0 %v1380
        %v1382 = vpop.xlane.xlu0 %1381
        %v1383 = vmul.f32 %v1382, %v969
        %v1384 = vadd.f32 %v1383, 1e-05
        %v1385 = vrsqrt.pop %v1384
        %v1386 = vmul.f32 %v1385, %v1384
        %v1387 = vmul.f32 %v1386, %v1385
        %v1388 = vmul.f32 0.5, %v1387
        %v1389 = vsub.f32 1.5, %v1388
        %v1390 = vmul.f32 %v1385, %v1389
        %vm1391 = vweird.f32 %v1384
        %vm1392 = vweird.f32 %v1385
        %vm1393 = vmor %vm1391, %vm1392
        %v1394 = vsel %vm1393, %v1385, %v1390
        %v1395 = vmul.f32 %v1378, %v1394
        %v1396 = vperm.slane %v1372, 0
        %v1397 = vmul.f32 %v1395, %v1396
        %v1398 = vperm.slane %v1373, 0
        %v1399 = vadd.f32 %v1397, %v1398
        %v1400 = vld [vmem:[%s773] sm:$0xff]
        %v1401 = vld [vmem:[%s13] sm:$0xff]
        %v1402 = vld [vmem:[%s13 + $0x8] sm:$0xff]
        %v1403 = vld [vmem:[%s13 + $0x10] sm:$0xff]
        %v1404 = vld [vmem:[%s13 + $0x18] sm:$0xff]
        %v1405 = vld [vmem:[%s6 + $0xa] sm:$0x1]
        %v1406 = vperm.slane %v1405, 0
        %v1408 = vsel %vm795, %v1399, 0
        %1410 = vmatpush.msra.mxu0 0.0
        %1411 = vmatpush.msra.mxu0 0.0
        %1412 = vmatpush.msra.mxu0 0.0
        %1413 = vmatpush.msra.mxu0 0.0
        %1414 = vmatpush.msra.mxu0 0.0
        %1415 = vmatpush.msra.mxu0 0.0
        %1416 = vmatpush.msra.mxu0 0.0
        %1417 = vmatpush.msra.mxu0 0.0
        %1418 = vmatpush.msra.mxu0 0.0
        %1419 = vmatpush.msra.mxu0 0.0
        %1420 = vmatpush.msra.mxu0 0.0
        %1421 = vmatpush.msra.mxu0 0.0
        %1422 = vmatpush.msra.mxu0 %v1404
        %1423 = vmatpush.msra.mxu0 %v1403
        %1424 = vmatpush.msra.mxu0 %v1402
        %1425 = vmatpush.msra.mxu0 %v1401
        %1426 = vmatmul.f32.gmra.mxu0 %v1408
        %v1427 = vpop.f32.mrf.mxu0
        %v1428 = vadd.f32 %v1406, %v1427
        %1429 = vdwg.mxu0
        %v1430 = vld [vmem:[%s14] sm:$0xff]
        %v1431 = vld [vmem:[%s14 + $0x8] sm:$0xff]
        %v1432 = vld [vmem:[%s14 + $0x10] sm:$0xff]
        %v1433 = vld [vmem:[%s14 + $0x18] sm:$0xff]
        %v1435 = vsel %vm795, %v1400, 0
        %1437 = vmatpush.msra.mxu0 0.0
        %1438 = vmatpush.msra.mxu0 0.0
        %1439 = vmatpush.msra.mxu0 0.0
        %1440 = vmatpush.msra.mxu0 0.0
        %1441 = vmatpush.msra.mxu0 0.0
        %1442 = vmatpush.msra.mxu0 0.0
        %1443 = vmatpush.msra.mxu0 0.0
        %1444 = vmatpush.msra.mxu0 0.0
        %1445 = vmatpush.msra.mxu0 0.0
        %1446 = vmatpush.msra.mxu0 0.0
        %1447 = vmatpush.msra.mxu0 0.0
        %1448 = vmatpush.msra.mxu0 0.0
        %1449 = vmatpush.msra.mxu0 %v1433
        %1450 = vmatpush.msra.mxu0 %v1432
        %1451 = vmatpush.msra.mxu0 %v1431
        %1452 = vmatpush.msra.mxu0 %v1430
        %1453 = vmatmul.f32.gmra.mxu0 %v1435
        %v1454 = vpop.f32.mrf.mxu0
        %v1455 = vadd.f32 0.0, %v1454
        %1456 = vdwg.mxu0
        %v1457 = vld [vmem:[%s6 + $0xb] sm:$0x1]
        %v1458 = vperm.slane %v1457, 0
        %v1459 = vadd.f32 %v1455, %v1458
        %v1460 = vld [vmem:[%s6 + $0xc] sm:$0x1]
        %v1461 = vperm.slane %v1460, 0
        %1463 = vrot.lane.b32.xlu0 %v1461, 32
        %v1464 = vpop.permute.xlu0 %1463
        %v1466 = vadd.f32 %v1455, %v1464
        %v1467 = vld [vmem:[%s776] sm:$0x1]
        %v1468 = vld [vmem:[%s6 + $0xd] sm:$0x1]
        %v1470 = vsel %vm1047, %v1428, 0
        %v1473 = vsel %vm1047, %v1459, 0
        %1475 = vmatpush.xpose.msra.mxu0 0.0
        %1476 = vmatpush.xpose.msra.mxu0 0.0
        %1477 = vmatpush.xpose.msra.mxu0 0.0
        %1478 = vmatpush.xpose.msra.mxu0 0.0
        %1479 = vmatpush.xpose.msra.mxu0 0.0
        %1480 = vmatpush.xpose.msra.mxu0 0.0
        %1481 = vmatpush.xpose.msra.mxu0 0.0
        %1482 = vmatpush.xpose.msra.mxu0 0.0
        %1483 = vmatpush.xpose.msra.mxu0 0.0
        %1484 = vmatpush.xpose.msra.mxu0 0.0
        %1485 = vmatpush.xpose.msra.mxu0 0.0
        %1486 = vmatpush.xpose.msra.mxu0 0.0
        %1487 = vmatpush.xpose.msra.mxu0 0.0
        %1488 = vmatpush.xpose.msra.mxu0 0.0
        %1489 = vmatpush.xpose.msra.mxu0 0.0
        %1490 = vmatpush.xpose.msra.mxu0 %v1473
        %1491 = vmatmul.f32.gmra.mxu0 %v1470
        %v1492 = vpop.f32.mrf.mxu0
        %v1493 = vadd.f32 0.0, %v1492
        %1494 = vdwg.mxu0
        %v1495 = vmul.f32 %v1493, 0.35355338
        %v1497 = vperm.slane %v1467, 0
        %v1499 = vadd.f32 %v1495, %v1497
        %1500 = vrot.lane.b32.xlu0 %v1428, 120
        %v1501 = vpop.permute.xlu0 %1500
        %1502 = vrot.lane.b32.xlu0 %v1459, 120
        %v1503 = vpop.permute.xlu0 %1502
        %v1504 = vsel %vm1047, %v1501, 0
        %v1506 = vsel %vm1047, %v1503, 0
        %1508 = vmatpush.xpose.msra.mxu0 0.0
        %1509 = vmatpush.xpose.msra.mxu0 0.0
        %1510 = vmatpush.xpose.msra.mxu0 0.0
        %1511 = vmatpush.xpose.msra.mxu0 0.0
        %1512 = vmatpush.xpose.msra.mxu0 0.0
        %1513 = vmatpush.xpose.msra.mxu0 0.0
        %1514 = vmatpush.xpose.msra.mxu0 0.0
        %1515 = vmatpush.xpose.msra.mxu0 0.0
        %1516 = vmatpush.xpose.msra.mxu0 0.0
        %1517 = vmatpush.xpose.msra.mxu0 0.0
        %1518 = vmatpush.xpose.msra.mxu0 0.0
        %1519 = vmatpush.xpose.msra.mxu0 0.0
        %1520 = vmatpush.xpose.msra.mxu0 0.0
        %1521 = vmatpush.xpose.msra.mxu0 0.0
        %1522 = vmatpush.xpose.msra.mxu0 0.0
        %1523 = vmatpush.xpose.msra.mxu0 %v1506
        %1524 = vmatmul.f32.gmra.mxu0 %v1504
        %v1525 = vpop.f32.mrf.mxu0
        %v1526 = vadd.f32 0.0, %v1525
        %1527 = vdwg.mxu0
        %v1528 = vmul.f32 %v1526, 0.35355338
        %v1529 = vadd.f32 %v1528, %v1497
        %1530 = vrot.lane.b32.xlu0 %v1428, 112
        %v1531 = vpop.permute.xlu0 %1530
        %1532 = vrot.lane.b32.xlu0 %v1459, 112
        %v1533 = vpop.permute.xlu0 %1532
        %v1534 = vsel %vm1047, %v1531, 0
        %v1536 = vsel %vm1047, %v1533, 0
        %1538 = vmatpush.xpose.msra.mxu0 0.0
        %1539 = vmatpush.xpose.msra.mxu0 0.0
        %1540 = vmatpush.xpose.msra.mxu0 0.0
        %1541 = vmatpush.xpose.msra.mxu0 0.0
        %1542 = vmatpush.xpose.msra.mxu0 0.0
        %1543 = vmatpush.xpose.msra.mxu0 0.0
        %1544 = vmatpush.xpose.msra.mxu0 0.0
        %1545 = vmatpush.xpose.msra.mxu0 0.0
        %1546 = vmatpush.xpose.msra.mxu0 0.0
        %1547 = vmatpush.xpose.msra.mxu0 0.0
        %1548 = vmatpush.xpose.msra.mxu0 0.0
        %1549 = vmatpush.xpose.msra.mxu0 0.0
        %1550 = vmatpush.xpose.msra.mxu0 0.0
        %1551 = vmatpush.xpose.msra.mxu0 0.0
        %1552 = vmatpush.xpose.msra.mxu0 0.0
        %1553 = vmatpush.xpose.msra.mxu0 %v1536
        %1554 = vmatmul.f32.gmra.mxu0 %v1534
        %v1555 = vpop.f32.mrf.mxu0
        %v1556 = vadd.f32 0.0, %v1555
        %1557 = vdwg.mxu0
        %v1558 = vmul.f32 %v1556, 0.35355338
        %v1559 = vadd.f32 %v1558, %v1497
        %1560 = vrot.lane.b32.xlu0 %v1428, 104
        %v1561 = vpop.permute.xlu0 %1560
        %1562 = vrot.lane.b32.xlu0 %v1459, 104
        %v1563 = vpop.permute.xlu0 %1562
        %v1564 = vsel %vm1047, %v1561, 0
        %v1566 = vsel %vm1047, %v1563, 0
        %1568 = vmatpush.xpose.msra.mxu0 0.0
        %1569 = vmatpush.xpose.msra.mxu0 0.0
        %1570 = vmatpush.xpose.msra.mxu0 0.0
        %1571 = vmatpush.xpose.msra.mxu0 0.0
        %1572 = vmatpush.xpose.msra.mxu0 0.0
        %1573 = vmatpush.xpose.msra.mxu0 0.0
        %1574 = vmatpush.xpose.msra.mxu0 0.0
        %1575 = vmatpush.xpose.msra.mxu0 0.0
        %1576 = vmatpush.xpose.msra.mxu0 0.0
        %1577 = vmatpush.xpose.msra.mxu0 0.0
        %1578 = vmatpush.xpose.msra.mxu0 0.0
        %1579 = vmatpush.xpose.msra.mxu0 0.0
        %1580 = vmatpush.xpose.msra.mxu0 0.0
        %1581 = vmatpush.xpose.msra.mxu0 0.0
        %1582 = vmatpush.xpose.msra.mxu0 0.0
        %1583 = vmatpush.xpose.msra.mxu0 %v1566
        %1584 = vmatmul.f32.gmra.mxu0 %v1564
        %v1585 = vpop.f32.mrf.mxu0
        %v1586 = vadd.f32 0.0, %v1585
        %1587 = vdwg.mxu0
        %v1588 = vmul.f32 %v1586, 0.35355338
        %v1589 = vadd.f32 %v1588, %v1497
        %v1590 = vsel %vm1047, %v1499, -inf
        %1591 = vmax.xlane.f32.xlu0 %v1590
        %v1592 = vpop.xlane.xlu0 %1591
        %v1593 = vsel %vm1047, %v1529, -inf
        %1594 = vmax.xlane.f32.xlu0 %v1593
        %v1595 = vpop.xlane.xlu0 %1594
        %v1596 = vsel %vm1047, %v1559, -inf
        %1597 = vmax.xlane.f32.xlu0 %v1596
        %v1598 = vpop.xlane.xlu0 %1597
        %v1599 = vsel %vm1047, %v1589, -inf
        %1600 = vmax.xlane.f32.xlu0 %v1599
        %v1601 = vpop.xlane.xlu0 %1600
        %v1602 = vsub.f32 %v1499, %v1592
        %v1603 = vsub.f32 %v1529, %v1595
        %v1604 = vsub.f32 %v1559, %v1598
        %v1605 = vsub.f32 %v1589, %v1601
        %v1606 = vmul.f32 %v1602, 1.442695
        %v1607 = vpow.pop %v1606
        %v1608 = vmul.f32 %v1603, 1.442695
        %v1609 = vpow.pop %v1608
        %v1610 = vmul.f32 %v1604, 1.442695
        %v1611 = vpow.pop %v1610
        %v1612 = vmul.f32 %v1605, 1.442695
        %v1613 = vpow.pop %v1612
        %v1614 = vsel %vm1047, %v1607, 0.0
        %1615 = vadd.xlane.f32.xlu0 %v1614
        %v1616 = vpop.xlane.xlu0 %1615
        %v1617 = vsel %vm1047, %v1609, 0.0
        %1618 = vadd.xlane.f32.xlu0 %v1617
        %v1619 = vpop.xlane.xlu0 %1618
        %v1620 = vsel %vm1047, %v1611, 0.0
        %1621 = vadd.xlane.f32.xlu0 %v1620
        %v1622 = vpop.xlane.xlu0 %1621
        %v1623 = vsel %vm1047, %v1613, 0.0
        %1624 = vadd.xlane.f32.xlu0 %v1623
        %v1625 = vpop.xlane.xlu0 %1624
        %v1626 = vrcp.pop %v1616
        %v1627 = vrcp.pop %v1619
        %v1628 = vrcp.pop %v1622
        %v1629 = vrcp.pop %v1625
        %v1630 = vmul.f32 %v1616, %v1626
        %v1631 = vmul.f32 %v1619, %v1627
        %v1632 = vmul.f32 %v1622, %v1628
        %v1633 = vmul.f32 %v1625, %v1629
        %v1634 = vsub.f32 2.0, %v1630
        %v1635 = vsub.f32 2.0, %v1631
        %v1636 = vsub.f32 2.0, %v1632
        %v1637 = vsub.f32 2.0, %v1633
        %v1638 = vmul.f32 %v1626, %v1634
        %v1639 = vmul.f32 %v1627, %v1635
        %v1640 = vmul.f32 %v1628, %v1636
        %v1641 = vmul.f32 %v1629, %v1637
        %v1642 = vmul.f32 %v1607, %v1638
        %v1643 = vmul.f32 %v1609, %v1639
        %v1644 = vmul.f32 %v1611, %v1640
        %v1645 = vmul.f32 %v1613, %v1641
        %1647 = vrot.lane.b32.xlu0 %v1466, 96
        %v1648 = vpop.permute.xlu0 %1647
        %v1651 = vsel %vm1047, %v1642, 0
        %1653 = vmatpush.msra.mxu0 0.0
        %1654 = vmatpush.msra.mxu0 0.0
        %1655 = vmatpush.msra.mxu0 0.0
        %1656 = vmatpush.msra.mxu0 0.0
        %1657 = vmatpush.msra.mxu0 0.0
        %1658 = vmatpush.msra.mxu0 0.0
        %1659 = vmatpush.msra.mxu0 0.0
        %1660 = vmatpush.msra.mxu0 0.0
        %1661 = vmatpush.msra.mxu0 0.0
        %1662 = vmatpush.msra.mxu0 0.0
        %1663 = vmatpush.msra.mxu0 0.0
        %1664 = vmatpush.msra.mxu0 0.0
        %1665 = vmatpush.msra.mxu0 0.0
        %1666 = vmatpush.msra.mxu0 0.0
        %1667 = vmatpush.msra.mxu0 0.0
        %1668 = vmatpush.msra.mxu0 %v1648
        %1669 = vmatmul.f32.gmra.mxu0 %v1651
        %v1670 = vpop.f32.mrf.mxu0
        %v1671 = vadd.f32 0.0, %v1670
        %1672 = vdwg.mxu0
        %1673 = vrot.lane.b32.xlu0 %v1466, 88
        %v1674 = vpop.permute.xlu0 %1673
        %v1677 = vsel %vm1047, %v1643, 0
        %1679 = vmatpush.msra.mxu0 0.0
        %1680 = vmatpush.msra.mxu0 0.0
        %1681 = vmatpush.msra.mxu0 0.0
        %1682 = vmatpush.msra.mxu0 0.0
        %1683 = vmatpush.msra.mxu0 0.0
        %1684 = vmatpush.msra.mxu0 0.0
        %1685 = vmatpush.msra.mxu0 0.0
        %1686 = vmatpush.msra.mxu0 0.0
        %1687 = vmatpush.msra.mxu0 0.0
        %1688 = vmatpush.msra.mxu0 0.0
        %1689 = vmatpush.msra.mxu0 0.0
        %1690 = vmatpush.msra.mxu0 0.0
        %1691 = vmatpush.msra.mxu0 0.0
        %1692 = vmatpush.msra.mxu0 0.0
        %1693 = vmatpush.msra.mxu0 0.0
        %1694 = vmatpush.msra.mxu0 %v1674
        %1695 = vmatmul.f32.gmra.mxu0 %v1677
        %v1696 = vpop.f32.mrf.mxu0
        %v1697 = vadd.f32 0.0, %v1696
        %1698 = vdwg.mxu0
        %1699 = vrot.lane.b32.xlu0 %v1466, 80
        %v1700 = vpop.permute.xlu0 %1699
        %v1703 = vsel %vm1047, %v1644, 0
        %1705 = vmatpush.msra.mxu0 0.0
        %1706 = vmatpush.msra.mxu0 0.0
        %1707 = vmatpush.msra.mxu0 0.0
        %1708 = vmatpush.msra.mxu0 0.0
        %1709 = vmatpush.msra.mxu0 0.0
        %1710 = vmatpush.msra.mxu0 0.0
        %1711 = vmatpush.msra.mxu0 0.0
        %1712 = vmatpush.msra.mxu0 0.0
        %1713 = vmatpush.msra.mxu0 0.0
        %1714 = vmatpush.msra.mxu0 0.0
        %1715 = vmatpush.msra.mxu0 0.0
        %1716 = vmatpush.msra.mxu0 0.0
        %1717 = vmatpush.msra.mxu0 0.0
        %1718 = vmatpush.msra.mxu0 0.0
        %1719 = vmatpush.msra.mxu0 0.0
        %1720 = vmatpush.msra.mxu0 %v1700
        %1721 = vmatmul.f32.gmra.mxu0 %v1703
        %v1722 = vpop.f32.mrf.mxu0
        %v1723 = vadd.f32 0.0, %v1722
        %1724 = vdwg.mxu0
        %1725 = vrot.lane.b32.xlu0 %v1466, 72
        %v1726 = vpop.permute.xlu0 %1725
        %v1729 = vsel %vm1047, %v1645, 0
        %1731 = vmatpush.msra.mxu0 0.0
        %1732 = vmatpush.msra.mxu0 0.0
        %1733 = vmatpush.msra.mxu0 0.0
        %1734 = vmatpush.msra.mxu0 0.0
        %1735 = vmatpush.msra.mxu0 0.0
        %1736 = vmatpush.msra.mxu0 0.0
        %1737 = vmatpush.msra.mxu0 0.0
        %1738 = vmatpush.msra.mxu0 0.0
        %1739 = vmatpush.msra.mxu0 0.0
        %1740 = vmatpush.msra.mxu0 0.0
        %1741 = vmatpush.msra.mxu0 0.0
        %1742 = vmatpush.msra.mxu0 0.0
        %1743 = vmatpush.msra.mxu0 0.0
        %1744 = vmatpush.msra.mxu0 0.0
        %1745 = vmatpush.msra.mxu0 0.0
        %1746 = vmatpush.msra.mxu0 %v1726
        %1747 = vmatmul.f32.gmra.mxu0 %v1729
        %v1748 = vpop.f32.mrf.mxu0
        %v1749 = vadd.f32 0.0, %v1748
        %1750 = vdwg.mxu0
        %1752 = vrot.lane.b32.xlu0 %v1697, 8
        %v1753 = vpop.permute.xlu0 %1752
        %1756 = vrot.lane.b32.xlu0 %v1723, 16
        %v1757 = vpop.permute.xlu0 %1756
        %1760 = vrot.lane.b32.xlu0 %v1749, 24
        %v1761 = vpop.permute.xlu0 %1760
        %v1763 = vsel %vm1047, %v1671, %v1753
        %v1764 = vsel %vm1339, %v1763, %v1757
        %v1765 = vsel %vm1341, %v1764, %v1761
        %v1766 = vld [vmem:[%s15] sm:$0xff]
        %v1767 = vld [vmem:[%s15 + $0x8] sm:$0xff]
        %v1768 = vld [vmem:[%s15 + $0x10] sm:$0xff]
        %v1769 = vld [vmem:[%s15 + $0x18] sm:$0xff]
        %v1770 = vperm.slane %v1468, 0
        %v1772 = vsel %vm795, %v1765, 0
        %1774 = vmatpush.msra.mxu0 0.0
        %1775 = vmatpush.msra.mxu0 0.0
        %1776 = vmatpush.msra.mxu0 0.0
        %1777 = vmatpush.msra.mxu0 0.0
        %1778 = vmatpush.msra.mxu0 0.0
        %1779 = vmatpush.msra.mxu0 0.0
        %1780 = vmatpush.msra.mxu0 0.0
        %1781 = vmatpush.msra.mxu0 0.0
        %1782 = vmatpush.msra.mxu0 0.0
        %1783 = vmatpush.msra.mxu0 0.0
        %1784 = vmatpush.msra.mxu0 0.0
        %1785 = vmatpush.msra.mxu0 0.0
        %1786 = vmatpush.msra.mxu0 %v1769
        %1787 = vmatpush.msra.mxu0 %v1768
        %1788 = vmatpush.msra.mxu0 %v1767
        %1789 = vmatpush.msra.mxu0 %v1766
        %1790 = vmatmul.f32.gmra.mxu0 %v1772
        %v1791 = vpop.f32.mrf.mxu0
        %v1792 = vadd.f32 %v1770, %v1791
        %1793 = vdwg.mxu0
        %v1794 = vadd.f32 %v1399, %v1792
        %v1795 = vld [vmem:[%s6 + $0xe] sm:$0x1]
        %v1796 = vld [vmem:[%s6 + $0xf] sm:$0x1]
        %v1797 = vsel %vm795, %v1794, 0.0
        %1798 = vadd.xlane.f32.xlu0 %v1797
        %v1799 = vpop.xlane.xlu0 %1798
        %v1800 = vmul.f32 %v1799, %v969
        %v1801 = vsub.f32 %v1794, %v1800
        %v1802 = vmul.f32 %v1801, %v1801
        %v1803 = vsel %vm795, %v1802, 0.0
        %1804 = vadd.xlane.f32.xlu0 %v1803
        %v1805 = vpop.xlane.xlu0 %1804
        %v1806 = vmul.f32 %v1805, %v969
        %v1807 = vadd.f32 %v1806, 1e-05
        %v1808 = vrsqrt.pop %v1807
        %v1809 = vmul.f32 %v1808, %v1807
        %v1810 = vmul.f32 %v1809, %v1808
        %v1811 = vmul.f32 0.5, %v1810
        %v1812 = vsub.f32 1.5, %v1811
        %v1813 = vmul.f32 %v1808, %v1812
        %vm1814 = vweird.f32 %v1807
        %vm1815 = vweird.f32 %v1808
        %vm1816 = vmor %vm1814, %vm1815
        %v1817 = vsel %vm1816, %v1808, %v1813
        %v1818 = vmul.f32 %v1801, %v1817
        %v1819 = vperm.slane %v1795, 0
        %v1820 = vmul.f32 %v1818, %v1819
        %v1821 = vperm.slane %v1796, 0
        %v1822 = vadd.f32 %v1820, %v1821
        %v1823 = vld [vmem:[%s781] sm:$0xff]
        %v1824 = vld [vmem:[%s781 + $0x8] sm:$0xff]
        %v1825 = vld [vmem:[%s16] sm:$0xff]
        %v1826 = vld [vmem:[%s16 + $0x8] sm:$0xff]
        %v1827 = vld [vmem:[%s16 + $0x10] sm:$0xff]
        %v1828 = vld [vmem:[%s16 + $0x18] sm:$0xff]
        %v1829 = vld [vmem:[%s6 + $0x10] sm:$0x1]
        %v1830 = vperm.slane %v1829, 0
        %1831 = vmatpush.msra.mxu0 0.0
        %1832 = vmatpush.msra.mxu0 0.0
        %1833 = vmatpush.msra.mxu0 0.0
        %1834 = vmatpush.msra.mxu0 0.0
        %1835 = vmatpush.msra.mxu0 0.0
        %1836 = vmatpush.msra.mxu0 0.0
        %1837 = vmatpush.msra.mxu0 0.0
        %1838 = vmatpush.msra.mxu0 0.0
        %1839 = vmatpush.msra.mxu0 0.0
        %1840 = vmatpush.msra.mxu0 0.0
        %1841 = vmatpush.msra.mxu0 0.0
        %1842 = vmatpush.msra.mxu0 0.0
        %1843 = vmatpush.msra.mxu0 %v1828
        %1844 = vmatpush.msra.mxu0 %v1827
        %1845 = vmatpush.msra.mxu0 %v1826
        %1846 = vmatpush.msra.mxu0 %v1825
        %1847 = vmatmul.f32.gmra.mxu0 %v1408
        %v1848 = vpop.f32.mrf.mxu0
        %v1849 = vadd.f32 %v1830, %v1848
        %1850 = vdwg.mxu0
        %v1851 = vld [vmem:[%s17] sm:$0xff]
        %v1852 = vld [vmem:[%s17 + $0x8] sm:$0xff]
        %v1853 = vld [vmem:[%s17 + $0x10] sm:$0xff]
        %v1854 = vld [vmem:[%s17 + $0x18] sm:$0xff]
        %v1856 = vsel %vm795, %v1823, 0
        %v1859 = vsel %vm795, %v1824, 0
        %1861 = vmatpush.msra.mxu0 0.0
        %1862 = vmatpush.msra.mxu0 0.0
        %1863 = vmatpush.msra.mxu0 0.0
        %1864 = vmatpush.msra.mxu0 0.0
        %1865 = vmatpush.msra.mxu0 0.0
        %1866 = vmatpush.msra.mxu0 0.0
        %1867 = vmatpush.msra.mxu0 0.0
        %1868 = vmatpush.msra.mxu0 0.0
        %1869 = vmatpush.msra.mxu0 0.0
        %1870 = vmatpush.msra.mxu0 0.0
        %1871 = vmatpush.msra.mxu0 0.0
        %1872 = vmatpush.msra.mxu0 0.0
        %1873 = vmatpush.msra.mxu0 %v1854
        %1874 = vmatpush.msra.mxu0 %v1853
        %1875 = vmatpush.msra.mxu0 %v1852
        %1876 = vmatpush.msra.mxu0 %v1851
        %1877 = vmatmul.f32.gmra.mxu0 %v1856
        %v1878 = vpop.f32.mrf.mxu0
        %v1879 = vadd.f32 0.0, %v1878
        %1880 = vmatmul.f32.gmra.mxu0 %v1859
        %v1881 = vpop.f32.mrf.mxu0
        %v1882 = vadd.f32 0.0, %v1881
        %1883 = vdwg.mxu0
        %v1884 = vld [vmem:[%s6 + $0x11] sm:$0x1]
        %v1885 = vperm.slane %v1884, 0
        %v1886 = vadd.f32 %v1879, %v1885
        %v1887 = vadd.f32 %v1882, %v1885
        %v1888 = vld [vmem:[%s6 + $0x12] sm:$0x1]
        %v1889 = vperm.slane %v1888, 0
        %1891 = vrot.lane.b32.xlu0 %v1889, 32
        %v1892 = vpop.permute.xlu0 %1891
        %v1894 = vadd.f32 %v1879, %v1892
        %v1895 = vadd.f32 %v1882, %v1892
        %v1896 = vld [vmem:[%s784] sm:$0x1]
        %v1897 = vld [vmem:[%s6 + $0x13] sm:$0x1]
        %v1899 = vsel %vm1047, %v1849, 0
        %v1902 = vsel %vm1047, %v1886, 0
        %v1905 = vsel %vm1047, %v1887, 0
        %1907 = vmatpush.xpose.msra.mxu0 0.0
        %1908 = vmatpush.xpose.msra.mxu0 0.0
        %1909 = vmatpush.xpose.msra.mxu0 0.0
        %1910 = vmatpush.xpose.msra.mxu0 0.0
        %1911 = vmatpush.xpose.msra.mxu0 0.0
        %1912 = vmatpush.xpose.msra.mxu0 0.0
        %1913 = vmatpush.xpose.msra.mxu0 0.0
        %1914 = vmatpush.xpose.msra.mxu0 0.0
        %1915 = vmatpush.xpose.msra.mxu0 0.0
        %1916 = vmatpush.xpose.msra.mxu0 0.0
        %1917 = vmatpush.xpose.msra.mxu0 0.0
        %1918 = vmatpush.xpose.msra.mxu0 0.0
        %1919 = vmatpush.xpose.msra.mxu0 0.0
        %1920 = vmatpush.xpose.msra.mxu0 0.0
        %1921 = vmatpush.xpose.msra.mxu0 %v1905
        %1922 = vmatpush.xpose.msra.mxu0 %v1902
        %1923 = vmatmul.f32.gmra.mxu0 %v1899
        %v1924 = vpop.f32.mrf.mxu0
        %v1925 = vadd.f32 0.0, %v1924
        %1926 = vdwg.mxu0
        %v1927 = vmul.f32 %v1925, 0.35355338
        %v1929 = vperm.slane %v1896, 0
        %v1931 = vadd.f32 %v1927, %v1929
        %1932 = vrot.lane.b32.xlu0 %v1849, 120
        %v1933 = vpop.permute.xlu0 %1932
        %1934 = vrot.lane.b32.xlu0 %v1886, 120
        %v1935 = vpop.permute.xlu0 %1934
        %1936 = vrot.lane.b32.xlu0 %v1887, 120
        %v1937 = vpop.permute.xlu0 %1936
        %v1938 = vsel %vm1047, %v1933, 0
        %v1940 = vsel %vm1047, %v1935, 0
        %v1942 = vsel %vm1047, %v1937, 0
        %1944 = vmatpush.xpose.msra.mxu0 0.0
        %1945 = vmatpush.xpose.msra.mxu0 0.0
        %1946 = vmatpush.xpose.msra.mxu0 0.0
        %1947 = vmatpush.xpose.msra.mxu0 0.0
        %1948 = vmatpush.xpose.msra.mxu0 0.0
        %1949 = vmatpush.xpose.msra.mxu0 0.0
        %1950 = vmatpush.xpose.msra.mxu0 0.0
        %1951 = vmatpush.xpose.msra.mxu0 0.0
        %1952 = vmatpush.xpose.msra.mxu0 0.0
        %1953 = vmatpush.xpose.msra.mxu0 0.0
        %1954 = vmatpush.xpose.msra.mxu0 0.0
        %1955 = vmatpush.xpose.msra.mxu0 0.0
        %1956 = vmatpush.xpose.msra.mxu0 0.0
        %1957 = vmatpush.xpose.msra.mxu0 0.0
        %1958 = vmatpush.xpose.msra.mxu0 %v1942
        %1959 = vmatpush.xpose.msra.mxu0 %v1940
        %1960 = vmatmul.f32.gmra.mxu0 %v1938
        %v1961 = vpop.f32.mrf.mxu0
        %v1962 = vadd.f32 0.0, %v1961
        %1963 = vdwg.mxu0
        %v1964 = vmul.f32 %v1962, 0.35355338
        %v1965 = vadd.f32 %v1964, %v1929
        %1966 = vrot.lane.b32.xlu0 %v1849, 112
        %v1967 = vpop.permute.xlu0 %1966
        %1968 = vrot.lane.b32.xlu0 %v1886, 112
        %v1969 = vpop.permute.xlu0 %1968
        %1970 = vrot.lane.b32.xlu0 %v1887, 112
        %v1971 = vpop.permute.xlu0 %1970
        %v1972 = vsel %vm1047, %v1967, 0
        %v1974 = vsel %vm1047, %v1969, 0
        %v1976 = vsel %vm1047, %v1971, 0
        %1978 = vmatpush.xpose.msra.mxu0 0.0
        %1979 = vmatpush.xpose.msra.mxu0 0.0
        %1980 = vmatpush.xpose.msra.mxu0 0.0
        %1981 = vmatpush.xpose.msra.mxu0 0.0
        %1982 = vmatpush.xpose.msra.mxu0 0.0
        %1983 = vmatpush.xpose.msra.mxu0 0.0
        %1984 = vmatpush.xpose.msra.mxu0 0.0
        %1985 = vmatpush.xpose.msra.mxu0 0.0
        %1986 = vmatpush.xpose.msra.mxu0 0.0
        %1987 = vmatpush.xpose.msra.mxu0 0.0
        %1988 = vmatpush.xpose.msra.mxu0 0.0
        %1989 = vmatpush.xpose.msra.mxu0 0.0
        %1990 = vmatpush.xpose.msra.mxu0 0.0
        %1991 = vmatpush.xpose.msra.mxu0 0.0
        %1992 = vmatpush.xpose.msra.mxu0 %v1976
        %1993 = vmatpush.xpose.msra.mxu0 %v1974
        %1994 = vmatmul.f32.gmra.mxu0 %v1972
        %v1995 = vpop.f32.mrf.mxu0
        %v1996 = vadd.f32 0.0, %v1995
        %1997 = vdwg.mxu0
        %v1998 = vmul.f32 %v1996, 0.35355338
        %v1999 = vadd.f32 %v1998, %v1929
        %2000 = vrot.lane.b32.xlu0 %v1849, 104
        %v2001 = vpop.permute.xlu0 %2000
        %2002 = vrot.lane.b32.xlu0 %v1886, 104
        %v2003 = vpop.permute.xlu0 %2002
        %2004 = vrot.lane.b32.xlu0 %v1887, 104
        %v2005 = vpop.permute.xlu0 %2004
        %v2006 = vsel %vm1047, %v2001, 0
        %v2008 = vsel %vm1047, %v2003, 0
        %v2010 = vsel %vm1047, %v2005, 0
        %2012 = vmatpush.xpose.msra.mxu0 0.0
        %2013 = vmatpush.xpose.msra.mxu0 0.0
        %2014 = vmatpush.xpose.msra.mxu0 0.0
        %2015 = vmatpush.xpose.msra.mxu0 0.0
        %2016 = vmatpush.xpose.msra.mxu0 0.0
        %2017 = vmatpush.xpose.msra.mxu0 0.0
        %2018 = vmatpush.xpose.msra.mxu0 0.0
        %2019 = vmatpush.xpose.msra.mxu0 0.0
        %2020 = vmatpush.xpose.msra.mxu0 0.0
        %2021 = vmatpush.xpose.msra.mxu0 0.0
        %2022 = vmatpush.xpose.msra.mxu0 0.0
        %2023 = vmatpush.xpose.msra.mxu0 0.0
        %2024 = vmatpush.xpose.msra.mxu0 0.0
        %2025 = vmatpush.xpose.msra.mxu0 0.0
        %2026 = vmatpush.xpose.msra.mxu0 %v2010
        %2027 = vmatpush.xpose.msra.mxu0 %v2008
        %2028 = vmatmul.f32.gmra.mxu0 %v2006
        %v2029 = vpop.f32.mrf.mxu0
        %v2030 = vadd.f32 0.0, %v2029
        %2031 = vdwg.mxu0
        %v2032 = vmul.f32 %v2030, 0.35355338
        %v2033 = vadd.f32 %v2032, %v1929
        %v2034 = vsel %vm1339, %v1931, -inf
        %2035 = vmax.xlane.f32.xlu0 %v2034
        %v2036 = vpop.xlane.xlu0 %2035
        %v2037 = vsel %vm1339, %v1965, -inf
        %2038 = vmax.xlane.f32.xlu0 %v2037
        %v2039 = vpop.xlane.xlu0 %2038
        %v2040 = vsel %vm1339, %v1999, -inf
        %2041 = vmax.xlane.f32.xlu0 %v2040
        %v2042 = vpop.xlane.xlu0 %2041
        %v2043 = vsel %vm1339, %v2033, -inf
        %2044 = vmax.xlane.f32.xlu0 %v2043
        %v2045 = vpop.xlane.xlu0 %2044
        %v2046 = vsub.f32 %v1931, %v2036
        %v2047 = vsub.f32 %v1965, %v2039
        %v2048 = vsub.f32 %v1999, %v2042
        %v2049 = vsub.f32 %v2033, %v2045
        %v2050 = vmul.f32 %v2046, 1.442695
        %v2051 = vpow.pop %v2050
        %v2052 = vmul.f32 %v2047, 1.442695
        %v2053 = vpow.pop %v2052
        %v2054 = vmul.f32 %v2048, 1.442695
        %v2055 = vpow.pop %v2054
        %v2056 = vmul.f32 %v2049, 1.442695
        %v2057 = vpow.pop %v2056
        %v2058 = vsel %vm1339, %v2051, 0.0
        %2059 = vadd.xlane.f32.xlu0 %v2058
        %v2060 = vpop.xlane.xlu0 %2059
        %v2061 = vsel %vm1339, %v2053, 0.0
        %2062 = vadd.xlane.f32.xlu0 %v2061
        %v2063 = vpop.xlane.xlu0 %2062
        %v2064 = vsel %vm1339, %v2055, 0.0
        %2065 = vadd.xlane.f32.xlu0 %v2064
        %v2066 = vpop.xlane.xlu0 %2065
        %v2067 = vsel %vm1339, %v2057, 0.0
        %2068 = vadd.xlane.f32.xlu0 %v2067
        %v2069 = vpop.xlane.xlu0 %2068
        %v2070 = vrcp.pop %v2060
        %v2071 = vrcp.pop %v2063
        %v2072 = vrcp.pop %v2066
        %v2073 = vrcp.pop %v2069
        %v2074 = vmul.f32 %v2060, %v2070
        %v2075 = vmul.f32 %v2063, %v2071
        %v2076 = vmul.f32 %v2066, %v2072
        %v2077 = vmul.f32 %v2069, %v2073
        %v2078 = vsub.f32 2.0, %v2074
        %v2079 = vsub.f32 2.0, %v2075
        %v2080 = vsub.f32 2.0, %v2076
        %v2081 = vsub.f32 2.0, %v2077
        %v2082 = vmul.f32 %v2070, %v2078
        %v2083 = vmul.f32 %v2071, %v2079
        %v2084 = vmul.f32 %v2072, %v2080
        %v2085 = vmul.f32 %v2073, %v2081
        %v2086 = vmul.f32 %v2051, %v2082
        %v2087 = vmul.f32 %v2053, %v2083
        %v2088 = vmul.f32 %v2055, %v2084
        %v2089 = vmul.f32 %v2057, %v2085
        %2092 = vrot.lane.b32.xlu0 %v1894, 96
        %v2093 = vpop.permute.xlu0 %2092
        %2094 = vrot.lane.b32.xlu0 %v1895, 96
        %v2095 = vpop.permute.xlu0 %2094
        %v2099 = vsel %vm1339, %v2086, 0
        %2101 = vmatpush.msra.mxu0 0.0
        %2102 = vmatpush.msra.mxu0 0.0
        %2103 = vmatpush.msra.mxu0 0.0
        %2104 = vmatpush.msra.mxu0 0.0
        %2105 = vmatpush.msra.mxu0 0.0
        %2106 = vmatpush.msra.mxu0 0.0
        %2107 = vmatpush.msra.mxu0 0.0
        %2108 = vmatpush.msra.mxu0 0.0
        %2109 = vmatpush.msra.mxu0 0.0
        %2110 = vmatpush.msra.mxu0 0.0
        %2111 = vmatpush.msra.mxu0 0.0
        %2112 = vmatpush.msra.mxu0 0.0
        %2113 = vmatpush.msra.mxu0 0.0
        %2114 = vmatpush.msra.mxu0 0.0
        %2115 = vmatpush.msra.mxu0 %v2095
        %2116 = vmatpush.msra.mxu0 %v2093
        %2117 = vmatmul.f32.gmra.mxu0 %v2099
        %v2118 = vpop.f32.mrf.mxu0
        %v2119 = vadd.f32 0.0, %v2118
        %2120 = vdwg.mxu0
        %2121 = vrot.lane.b32.xlu0 %v1894, 88
        %v2122 = vpop.permute.xlu0 %2121
        %2123 = vrot.lane.b32.xlu0 %v1895, 88
        %v2124 = vpop.permute.xlu0 %2123
        %v2128 = vsel %vm1339, %v2087, 0
        %2130 = vmatpush.msra.mxu0 0.0
        %2131 = vmatpush.msra.mxu0 0.0
        %2132 = vmatpush.msra.mxu0 0.0
        %2133 = vmatpush.msra.mxu0 0.0
        %2134 = vmatpush.msra.mxu0 0.0
        %2135 = vmatpush.msra.mxu0 0.0
        %2136 = vmatpush.msra.mxu0 0.0
        %2137 = vmatpush.msra.mxu0 0.0
        %2138 = vmatpush.msra.mxu0 0.0
        %2139 = vmatpush.msra.mxu0 0.0
        %2140 = vmatpush.msra.mxu0 0.0
        %2141 = vmatpush.msra.mxu0 0.0
        %2142 = vmatpush.msra.mxu0 0.0
        %2143 = vmatpush.msra.mxu0 0.0
        %2144 = vmatpush.msra.mxu0 %v2124
        %2145 = vmatpush.msra.mxu0 %v2122
        %2146 = vmatmul.f32.gmra.mxu0 %v2128
        %v2147 = vpop.f32.mrf.mxu0
        %v2148 = vadd.f32 0.0, %v2147
        %2149 = vdwg.mxu0
        %2150 = vrot.lane.b32.xlu0 %v1894, 80
        %v2151 = vpop.permute.xlu0 %2150
        %2152 = vrot.lane.b32.xlu0 %v1895, 80
        %v2153 = vpop.permute.xlu0 %2152
        %v2157 = vsel %vm1339, %v2088, 0
        %2159 = vmatpush.msra.mxu0 0.0
        %2160 = vmatpush.msra.mxu0 0.0
        %2161 = vmatpush.msra.mxu0 0.0
        %2162 = vmatpush.msra.mxu0 0.0
        %2163 = vmatpush.msra.mxu0 0.0
        %2164 = vmatpush.msra.mxu0 0.0
        %2165 = vmatpush.msra.mxu0 0.0
        %2166 = vmatpush.msra.mxu0 0.0
        %2167 = vmatpush.msra.mxu0 0.0
        %2168 = vmatpush.msra.mxu0 0.0
        %2169 = vmatpush.msra.mxu0 0.0
        %2170 = vmatpush.msra.mxu0 0.0
        %2171 = vmatpush.msra.mxu0 0.0
        %2172 = vmatpush.msra.mxu0 0.0
        %2173 = vmatpush.msra.mxu0 %v2153
        %2174 = vmatpush.msra.mxu0 %v2151
        %2175 = vmatmul.f32.gmra.mxu0 %v2157
        %v2176 = vpop.f32.mrf.mxu0
        %v2177 = vadd.f32 0.0, %v2176
        %2178 = vdwg.mxu0
        %2179 = vrot.lane.b32.xlu0 %v1894, 72
        %v2180 = vpop.permute.xlu0 %2179
        %2181 = vrot.lane.b32.xlu0 %v1895, 72
        %v2182 = vpop.permute.xlu0 %2181
        %v2186 = vsel %vm1339, %v2089, 0
        %2188 = vmatpush.msra.mxu0 0.0
        %2189 = vmatpush.msra.mxu0 0.0
        %2190 = vmatpush.msra.mxu0 0.0
        %2191 = vmatpush.msra.mxu0 0.0
        %2192 = vmatpush.msra.mxu0 0.0
        %2193 = vmatpush.msra.mxu0 0.0
        %2194 = vmatpush.msra.mxu0 0.0
        %2195 = vmatpush.msra.mxu0 0.0
        %2196 = vmatpush.msra.mxu0 0.0
        %2197 = vmatpush.msra.mxu0 0.0
        %2198 = vmatpush.msra.mxu0 0.0
        %2199 = vmatpush.msra.mxu0 0.0
        %2200 = vmatpush.msra.mxu0 0.0
        %2201 = vmatpush.msra.mxu0 0.0
        %2202 = vmatpush.msra.mxu0 %v2182
        %2203 = vmatpush.msra.mxu0 %v2180
        %2204 = vmatmul.f32.gmra.mxu0 %v2186
        %v2205 = vpop.f32.mrf.mxu0
        %v2206 = vadd.f32 0.0, %v2205
        %2207 = vdwg.mxu0
        %2209 = vrot.lane.b32.xlu0 %v2148, 8
        %v2210 = vpop.permute.xlu0 %2209
        %2213 = vrot.lane.b32.xlu0 %v2177, 16
        %v2214 = vpop.permute.xlu0 %2213
        %2217 = vrot.lane.b32.xlu0 %v2206, 24
        %v2218 = vpop.permute.xlu0 %2217
        %v2220 = vsel %vm1047, %v2119, %v2210
        %v2221 = vsel %vm1339, %v2220, %v2214
        %v2222 = vsel %vm1341, %v2221, %v2218
        %v2223 = vld [vmem:[%s18] sm:$0xff]
        %v2224 = vld [vmem:[%s18 + $0x8] sm:$0xff]
        %v2225 = vld [vmem:[%s18 + $0x10] sm:$0xff]
        %v2226 = vld [vmem:[%s18 + $0x18] sm:$0xff]
        %v2227 = vperm.slane %v1897, 0
        %v2229 = vsel %vm795, %v2222, 0
        %2231 = vmatpush.msra.mxu0 0.0
        %2232 = vmatpush.msra.mxu0 0.0
        %2233 = vmatpush.msra.mxu0 0.0
        %2234 = vmatpush.msra.mxu0 0.0
        %2235 = vmatpush.msra.mxu0 0.0
        %2236 = vmatpush.msra.mxu0 0.0
        %2237 = vmatpush.msra.mxu0 0.0
        %2238 = vmatpush.msra.mxu0 0.0
        %2239 = vmatpush.msra.mxu0 0.0
        %2240 = vmatpush.msra.mxu0 0.0
        %2241 = vmatpush.msra.mxu0 0.0
        %2242 = vmatpush.msra.mxu0 0.0
        %2243 = vmatpush.msra.mxu0 %v2226
        %2244 = vmatpush.msra.mxu0 %v2225
        %2245 = vmatpush.msra.mxu0 %v2224
        %2246 = vmatpush.msra.mxu0 %v2223
        %2247 = vmatmul.f32.gmra.mxu0 %v2229
        %v2248 = vpop.f32.mrf.mxu0
        %v2249 = vadd.f32 %v2227, %v2248
        %2250 = vdwg.mxu0
        %v2251 = vadd.f32 %v1399, %v2249
        %v2252 = vld [vmem:[%s6 + $0x14] sm:$0x1]
        %v2253 = vld [vmem:[%s6 + $0x15] sm:$0x1]
        %v2254 = vsel %vm795, %v2251, 0.0
        %2255 = vadd.xlane.f32.xlu0 %v2254
        %v2256 = vpop.xlane.xlu0 %2255
        %v2257 = vmul.f32 %v2256, %v969
        %v2258 = vsub.f32 %v2251, %v2257
        %v2259 = vmul.f32 %v2258, %v2258
        %v2260 = vsel %vm795, %v2259, 0.0
        %2261 = vadd.xlane.f32.xlu0 %v2260
        %v2262 = vpop.xlane.xlu0 %2261
        %v2263 = vmul.f32 %v2262, %v969
        %v2264 = vadd.f32 %v2263, 1e-05
        %v2265 = vrsqrt.pop %v2264
        %v2266 = vmul.f32 %v2265, %v2264
        %v2267 = vmul.f32 %v2266, %v2265
        %v2268 = vmul.f32 0.5, %v2267
        %v2269 = vsub.f32 1.5, %v2268
        %v2270 = vmul.f32 %v2265, %v2269
        %vm2271 = vweird.f32 %v2264
        %vm2272 = vweird.f32 %v2265
        %vm2273 = vmor %vm2271, %vm2272
        %v2274 = vsel %vm2273, %v2265, %v2270
        %v2275 = vmul.f32 %v2258, %v2274
        %v2276 = vperm.slane %v2252, 0
        %v2277 = vmul.f32 %v2275, %v2276
        %v2278 = vperm.slane %v2253, 0
        %v2279 = vadd.f32 %v2277, %v2278
        %v2280 = vld [vmem:[%s19] sm:$0xff]
        %v2281 = vld [vmem:[%s19 + $0x8] sm:$0xff]
        %v2282 = vld [vmem:[%s19 + $0x10] sm:$0xff]
        %v2283 = vld [vmem:[%s19 + $0x18] sm:$0xff]
        %v2284 = vld [vmem:[%s19 + $0x20] sm:$0xff]
        %v2285 = vld [vmem:[%s19 + $0x28] sm:$0xff]
        %v2286 = vld [vmem:[%s19 + $0x30] sm:$0xff]
        %v2287 = vld [vmem:[%s19 + $0x38] sm:$0xff]
        %v2289 = vsel %vm795, %v1822, 0
        %2291 = vmatpush.msra.mxu0 0.0
        %2292 = vmatpush.msra.mxu0 0.0
        %2293 = vmatpush.msra.mxu0 0.0
        %2294 = vmatpush.msra.mxu0 0.0
        %2295 = vmatpush.msra.mxu0 0.0
        %2296 = vmatpush.msra.mxu0 0.0
        %2297 = vmatpush.msra.mxu0 0.0
        %2298 = vmatpush.msra.mxu0 0.0
        %2299 = vmatpush.msra.mxu0 0.0
        %2300 = vmatpush.msra.mxu0 0.0
        %2301 = vmatpush.msra.mxu0 0.0
        %2302 = vmatpush.msra.mxu0 0.0
        %2303 = vmatpush.msra.mxu0 %v2287
        %2304 = vmatpush.msra.mxu0 %v2286
        %2305 = vmatpush.msra.mxu0 %v2285
        %2306 = vmatpush.msra.mxu0 %v2284
        %2307 = vmatmul.f32.gmra.mxu0 %v2289
        %v2308 = vpop.f32.mrf.mxu0
        %v2309 = vadd.f32 0.0, %v2308
        %2310 = vdwg.mxu0
        %2311 = vmatpush.msra.mxu0 0.0
        %2312 = vmatpush.msra.mxu0 0.0
        %2313 = vmatpush.msra.mxu0 0.0
        %2314 = vmatpush.msra.mxu0 0.0
        %2315 = vmatpush.msra.mxu0 0.0
        %2316 = vmatpush.msra.mxu0 0.0
        %2317 = vmatpush.msra.mxu0 0.0
        %2318 = vmatpush.msra.mxu0 0.0
        %2319 = vmatpush.msra.mxu0 0.0
        %2320 = vmatpush.msra.mxu0 0.0
        %2321 = vmatpush.msra.mxu0 0.0
        %2322 = vmatpush.msra.mxu0 0.0
        %2323 = vmatpush.msra.mxu0 %v2283
        %2324 = vmatpush.msra.mxu0 %v2282
        %2325 = vmatpush.msra.mxu0 %v2281
        %2326 = vmatpush.msra.mxu0 %v2280
        %2327 = vmatmul.f32.gmra.mxu0 %v1408
        %v2328 = vpop.f32.mrf.mxu0
        %v2329 = vadd.f32 %v2309, %v2328
        %2330 = vdwg.mxu0
        %v2331 = vld [vmem:[%s6 + $0x16] sm:$0x1]
        %v2332 = vperm.slane %v2331, 0
        %v2333 = vadd.f32 %v2329, %v2332
        %v2334 = vxor.u32 %v2333, 2147483648
        %v2335 = vmul.f32 %v2334, 1.442695
        %v2336 = vpow.pop %v2335
        %v2337 = vadd.f32 %v2336, 1.0
        %v2338 = vrcp.pop %v2337
        %v2339 = vmul.f32 %v2337, %v2338
        %v2340 = vsub.f32 1.0, %v2339
        %v2341 = vmul.f32 %v2338, %v2340
        %v2342 = vadd.f32 %v2338, %v2341
        %vm2343 = vweird.f32 %v2337
        %vm2344 = vweird.f32 %v2338
        %vm2345 = vmor %vm2343, %vm2344
        %v2346 = vsel %vm2345, %v2338, %v2342
        %v2347 = vand.u32 2147483647, %v2337
        %vm2348 = vcmp.eq.f32.partialorder %v2347, 8.507059e+37
        %v2349 = vand.u32 %v2337, 2147483648
        %v2350 = vor.u32 1.1754944e-38, %v2349
        %v2351 = vsel %vm2348, %v2350, %v2346
        %v2352 = vmul.f32 1.0, %v2351
        %v2353 = vld [vmem:[%s20] sm:$0xff]
        %v2354 = vld [vmem:[%s20 + $0x8] sm:$0xff]
        %v2355 = vld [vmem:[%s20 + $0x10] sm:$0xff]
        %v2356 = vld [vmem:[%s20 + $0x18] sm:$0xff]
        %v2357 = vld [vmem:[%s20 + $0x20] sm:$0xff]
        %v2358 = vld [vmem:[%s20 + $0x28] sm:$0xff]
        %v2359 = vld [vmem:[%s20 + $0x30] sm:$0xff]
        %v2360 = vld [vmem:[%s20 + $0x38] sm:$0xff]
        %v2362 = vsel %vm795, %v2279, 0
        %2364 = vmatpush.msra.mxu0 0.0
        %2365 = vmatpush.msra.mxu0 0.0
        %2366 = vmatpush.msra.mxu0 0.0
        %2367 = vmatpush.msra.mxu0 0.0
        %2368 = vmatpush.msra.mxu0 0.0
        %2369 = vmatpush.msra.mxu0 0.0
        %2370 = vmatpush.msra.mxu0 0.0
        %2371 = vmatpush.msra.mxu0 0.0
        %2372 = vmatpush.msra.mxu0 0.0
        %2373 = vmatpush.msra.mxu0 0.0
        %2374 = vmatpush.msra.mxu0 0.0
        %2375 = vmatpush.msra.mxu0 0.0
        %2376 = vmatpush.msra.mxu0 %v2360
        %2377 = vmatpush.msra.mxu0 %v2359
        %2378 = vmatpush.msra.mxu0 %v2358
        %2379 = vmatpush.msra.mxu0 %v2357
        %2380 = vmatmul.f32.gmra.mxu0 %v2362
        %v2381 = vpop.f32.mrf.mxu0
        %v2382 = vadd.f32 0.0, %v2381
        %2383 = vdwg.mxu0
        %2384 = vmatpush.msra.mxu0 0.0
        %2385 = vmatpush.msra.mxu0 0.0
        %2386 = vmatpush.msra.mxu0 0.0
        %2387 = vmatpush.msra.mxu0 0.0
        %2388 = vmatpush.msra.mxu0 0.0
        %2389 = vmatpush.msra.mxu0 0.0
        %2390 = vmatpush.msra.mxu0 0.0
        %2391 = vmatpush.msra.mxu0 0.0
        %2392 = vmatpush.msra.mxu0 0.0
        %2393 = vmatpush.msra.mxu0 0.0
        %2394 = vmatpush.msra.mxu0 0.0
        %2395 = vmatpush.msra.mxu0 0.0
        %2396 = vmatpush.msra.mxu0 %v2356
        %2397 = vmatpush.msra.mxu0 %v2355
        %2398 = vmatpush.msra.mxu0 %v2354
        %2399 = vmatpush.msra.mxu0 %v2353
        %2400 = vmatmul.f32.gmra.mxu0 %v1408
        %v2401 = vpop.f32.mrf.mxu0
        %v2402 = vadd.f32 %v2382, %v2401
        %2403 = vdwg.mxu0
        %v2404 = vld [vmem:[%s6 + $0x17] sm:$0x1]
        %v2405 = vperm.slane %v2404, 0
        %v2406 = vadd.f32 %v2402, %v2405
        %v2407 = vxor.u32 %v2406, 2147483648
        %v2408 = vmul.f32 %v2407, 1.442695
        %v2409 = vpow.pop %v2408
        %v2410 = vadd.f32 %v2409, 1.0
        %v2411 = vrcp.pop %v2410
        %v2412 = vmul.f32 %v2410, %v2411
        %v2413 = vsub.f32 1.0, %v2412
        %v2414 = vmul.f32 %v2411, %v2413
        %v2415 = vadd.f32 %v2411, %v2414
        %vm2416 = vweird.f32 %v2410
        %vm2417 = vweird.f32 %v2411
        %vm2418 = vmor %vm2416, %vm2417
        %v2419 = vsel %vm2418, %v2411, %v2415
        %v2420 = vand.u32 2147483647, %v2410
        %vm2421 = vcmp.eq.f32.partialorder %v2420, 8.507059e+37
        %v2422 = vand.u32 %v2410, 2147483648
        %v2423 = vor.u32 1.1754944e-38, %v2422
        %v2424 = vsel %vm2421, %v2423, %v2419
        %v2425 = vmul.f32 1.0, %v2424
        %v2426 = vld [vmem:[%s21] sm:$0xff]
        %v2427 = vld [vmem:[%s21 + $0x8] sm:$0xff]
        %v2428 = vld [vmem:[%s21 + $0x10] sm:$0xff]
        %v2429 = vld [vmem:[%s21 + $0x18] sm:$0xff]
        %v2430 = vmul.f32 %v2352, %v1822
        %v2431 = vld [vmem:[%s21 + $0x20] sm:$0xff]
        %v2432 = vld [vmem:[%s21 + $0x28] sm:$0xff]
        %v2433 = vld [vmem:[%s21 + $0x30] sm:$0xff]
        %v2434 = vld [vmem:[%s21 + $0x38] sm:$0xff]
        %v2436 = vsel %vm795, %v2430, 0
        %2438 = vmatpush.msra.mxu0 0.0
        %2439 = vmatpush.msra.mxu0 0.0
        %2440 = vmatpush.msra.mxu0 0.0
        %2441 = vmatpush.msra.mxu0 0.0
        %2442 = vmatpush.msra.mxu0 0.0
        %2443 = vmatpush.msra.mxu0 0.0
        %2444 = vmatpush.msra.mxu0 0.0
        %2445 = vmatpush.msra.mxu0 0.0
        %2446 = vmatpush.msra.mxu0 0.0
        %2447 = vmatpush.msra.mxu0 0.0
        %2448 = vmatpush.msra.mxu0 0.0
        %2449 = vmatpush.msra.mxu0 0.0
        %2450 = vmatpush.msra.mxu0 %v2434
        %2451 = vmatpush.msra.mxu0 %v2433
        %2452 = vmatpush.msra.mxu0 %v2432
        %2453 = vmatpush.msra.mxu0 %v2431
        %2454 = vmatmul.f32.gmra.mxu0 %v2436
        %v2455 = vpop.f32.mrf.mxu0
        %v2456 = vadd.f32 0.0, %v2455
        %2457 = vdwg.mxu0
        %2458 = vmatpush.msra.mxu0 0.0
        %2459 = vmatpush.msra.mxu0 0.0
        %2460 = vmatpush.msra.mxu0 0.0
        %2461 = vmatpush.msra.mxu0 0.0
        %2462 = vmatpush.msra.mxu0 0.0
        %2463 = vmatpush.msra.mxu0 0.0
        %2464 = vmatpush.msra.mxu0 0.0
        %2465 = vmatpush.msra.mxu0 0.0
        %2466 = vmatpush.msra.mxu0 0.0
        %2467 = vmatpush.msra.mxu0 0.0
        %2468 = vmatpush.msra.mxu0 0.0
        %2469 = vmatpush.msra.mxu0 0.0
        %2470 = vmatpush.msra.mxu0 %v2429
        %2471 = vmatpush.msra.mxu0 %v2428
        %2472 = vmatpush.msra.mxu0 %v2427
        %2473 = vmatpush.msra.mxu0 %v2426
        %2474 = vmatmul.f32.gmra.mxu0 %v1408
        %v2475 = vpop.f32.mrf.mxu0
        %v2476 = vadd.f32 %v2456, %v2475
        %2477 = vdwg.mxu0
        %v2478 = vmul.f32 %v2425, %v2279
        %v2479 = vld [vmem:[%s21 + $0x40] sm:$0xff]
        %v2480 = vld [vmem:[%s21 + $0x48] sm:$0xff]
        %v2481 = vld [vmem:[%s21 + $0x50] sm:$0xff]
        %v2482 = vld [vmem:[%s21 + $0x58] sm:$0xff]
        %v2484 = vsel %vm795, %v2478, 0
        %2486 = vmatpush.msra.mxu0 0.0
        %2487 = vmatpush.msra.mxu0 0.0
        %2488 = vmatpush.msra.mxu0 0.0
        %2489 = vmatpush.msra.mxu0 0.0
        %2490 = vmatpush.msra.mxu0 0.0
        %2491 = vmatpush.msra.mxu0 0.0
        %2492 = vmatpush.msra.mxu0 0.0
        %2493 = vmatpush.msra.mxu0 0.0
        %2494 = vmatpush.msra.mxu0 0.0
        %2495 = vmatpush.msra.mxu0 0.0
        %2496 = vmatpush.msra.mxu0 0.0
        %2497 = vmatpush.msra.mxu0 0.0
        %2498 = vmatpush.msra.mxu0 %v2482
        %2499 = vmatpush.msra.mxu0 %v2481
        %2500 = vmatpush.msra.mxu0 %v2480
        %2501 = vmatpush.msra.mxu0 %v2479
        %2502 = vmatmul.f32.gmra.mxu0 %v2484
        %v2503 = vpop.f32.mrf.mxu0
        %v2504 = vadd.f32 0.0, %v2503
        %2505 = vdwg.mxu0
        %v2506 = vadd.f32 %v2476, %v2504
        %v2507 = vld [vmem:[%s7 + $0x1] sm:$0x1]
        %v2508 = vperm.slane %v2507, 0
        %v2509 = vadd.f32 %v2506, %v2508
        %v2510 = vmax.f32 %v2509, 0.0
        %v2511 = vld [vmem:[%s22] sm:$0xff]
        %v2512 = vld [vmem:[%s22 + $0x8] sm:$0xff]
        %v2513 = vld [vmem:[%s22 + $0x10] sm:$0xff]
        %v2514 = vld [vmem:[%s22 + $0x18] sm:$0xff]
        %v2515 = vld [vmem:[%s22 + $0x20] sm:$0xff]
        %v2516 = vld [vmem:[%s22 + $0x28] sm:$0xff]
        %v2517 = vld [vmem:[%s22 + $0x30] sm:$0xff]
        %v2518 = vld [vmem:[%s22 + $0x38] sm:$0xff]
        %v2519 = vld [vmem:[%s6 + $0x18] sm:$0x1]
        %v2520 = vperm.slane %v2519, 0
        %v2522 = vsel %vm933, %v2510, 0
        %2524 = vmatpush.msra.mxu0 0.0
        %2525 = vmatpush.msra.mxu0 0.0
        %2526 = vmatpush.msra.mxu0 0.0
        %2527 = vmatpush.msra.mxu0 0.0
        %2528 = vmatpush.msra.mxu0 0.0
        %2529 = vmatpush.msra.mxu0 0.0
        %2530 = vmatpush.msra.mxu0 0.0
        %2531 = vmatpush.msra.mxu0 0.0
        %2532 = vmatpush.msra.mxu0 %v2518
        %2533 = vmatpush.msra.mxu0 %v2517
        %2534 = vmatpush.msra.mxu0 %v2516
        %2535 = vmatpush.msra.mxu0 %v2515
        %2536 = vmatpush.msra.mxu0 %v2514
        %2537 = vmatpush.msra.mxu0 %v2513
        %2538 = vmatpush.msra.mxu0 %v2512
        %2539 = vmatpush.msra.mxu0 %v2511
        %2540 = vmatmul.f32.gmra.mxu0 %v2522
        %v2541 = vpop.f32.mrf.mxu0
        %v2542 = vadd.f32 %v2520, %v2541
        %2543 = vdwg.mxu0
        %v2544 = vadd.f32 %v1399, %v1822
        %v2545 = vadd.f32 %v2544, %v2279
        %v2546 = vadd.f32 %v2545, %v2542
        %v2547 = vld [vmem:[%s6 + $0x19] sm:$0x1]
        %v2548 = vld [vmem:[%s6 + $0x1a] sm:$0x1]
        %v2549 = vsel %vm795, %v2546, 0.0
        %2550 = vadd.xlane.f32.xlu0 %v2549
        %v2551 = vpop.xlane.xlu0 %2550
        %v2552 = vmul.f32 %v2551, %v969
        %v2553 = vsub.f32 %v2546, %v2552
        %v2554 = vmul.f32 %v2553, %v2553
        %v2555 = vsel %vm795, %v2554, 0.0
        %2556 = vadd.xlane.f32.xlu0 %v2555
        %v2557 = vpop.xlane.xlu0 %2556
        %v2558 = vmul.f32 %v2557, %v969
        %v2559 = vadd.f32 %v2558, 1e-05
        %v2560 = vrsqrt.pop %v2559
        %v2561 = vmul.f32 %v2560, %v2559
        %v2562 = vmul.f32 %v2561, %v2560
        %v2563 = vmul.f32 0.5, %v2562
        %v2564 = vsub.f32 1.5, %v2563
        %v2565 = vmul.f32 %v2560, %v2564
        %vm2566 = vweird.f32 %v2559
        %vm2567 = vweird.f32 %v2560
        %vm2568 = vmor %vm2566, %vm2567
        %v2569 = vsel %vm2568, %v2560, %v2565
        %v2570 = vmul.f32 %v2553, %v2569
        %v2571 = vperm.slane %v2547, 0
        %v2572 = vmul.f32 %v2570, %v2571
        %v2573 = vperm.slane %v2548, 0
        %v2574 = vadd.f32 %v2572, %v2573
        %2575 = vst.msk [vmem:[%s762] sm:$0xff] %vm795, %v2574
        %s2576 = sand.u32 %s558, 1
        %s2577 = scalar_lea.sflag [#allocation3], %s2576
        %s2578 = sand.u32 %s558, 1
        %s2579 = smul.addr %s2578, 8
        %s2580 = scalar_lea.vmem [#allocation2], %s2579
        // Predicated region
        $region113: #{trans_ikg_decoder_layer.1} parent=111 // pred_check
          %p2581 = pneg %p568
        $region114: #{trans_ikg_decoder_layer.1} parent=111 // pred_check_branch
          %2583 = sbr.rel (%p2581) target = $region116
        $region115: #{trans_ikg_decoder_layer.1} parent=111 // pred_region
          %2585 = vsyncadd %s2577, 0
          %s2586 = smul.addr %s37, 8
          %s2587 = scalar_lea.hbm %s23, %s2586
          %s2589 = sshll.u32 %s2580, 4
          %s2590 = int_to_ptr.vmem [resolvable:$true] %s2589
          %s2591 = sshll.u32 %s2587, 4
          %s2592 = int_to_ptr.hbm [resolvable:$true] %s2591
          %2594 = dma.vmem_to_hbm [thread:$0]  %s2590, 128, %s2592, %s2577
        $region116: #{trans_ikg_decoder_layer.1} parent=111 // pred_fallthru
          _
      $region112: #{trans_ikg_decoder_layer.1} parent=5 // pred_fallthru
        _
      %p2595 = scmp.le.s32.totalorder 2, %s32
      // Predicated region
      $region117: #{trans_ikg_decoder_layer.1} parent=5 // pred_check
        %p2596 = pneg %p2595
      $region118: #{trans_ikg_decoder_layer.1} parent=5 // pred_check_branch
        %2598 = sbr.rel (%p2596) target = $region120
      $region119: #{trans_ikg_decoder_layer.1} parent=5 // pred_region
        %s2599 = ssub.s32 %s32, 2
        // Predicated region
        $region121: #{trans_ikg_decoder_layer.1} parent=119 // pred_check
          %p2600 = pneg %p574
        $region122: #{trans_ikg_decoder_layer.1} parent=119 // pred_check_branch
          %2602 = sbr.rel (%p2600) target = $region124
        $region123: #{trans_ikg_decoder_layer.1} parent=119 // pred_region
          %s2603 = sand.u32 %s559, 1
          %s2604 = scalar_lea.sflag [#allocation3], %s2603
          %s2605 = sand.u32 %s559, 1
          %s2606 = smul.addr %s2605, 8
          %s2607 = scalar_lea.vmem [#allocation2], %s2606
          %2609 = dma.done %s2604, 128
        $region124: #{trans_ikg_decoder_layer.1} parent=119 // pred_fallthru
          _
      $region120: #{trans_ikg_decoder_layer.1} parent=5 // pred_fallthru
        _
    $region6: #{trans_ikg_decoder_layer.1} parent=1 // loop_footer
      %s36 = sadd.s32 1, %s32
    $region7: #{trans_ikg_decoder_layer.1} parent=1 // loop_footer_branch
      %31 = sbr.rel target = $region3
    $region8: #{trans_ikg_decoder_layer.1} parent=1 // loop_exit
      _
    %2610 = vsyncpa [#allocation3], 1
    %s2611 = scalar_lea.sflag [#allocation3], 1
    %2612 = vsyncpa %s2611, 1

</llo_original>
